<compile_context>
chip_gen: v7x
topology: tpu7x:2x2x1
jax: 0.10.0
libtpu: 0.0.40
codegen_flags: <defaults>
</compile_context>

<pallas_src>
import functools

import jax
import jax.numpy as jnp
import numpy as np
from jax.experimental import pallas as pl
from jax.experimental.pallas import tpu as pltpu


def _make_kernel(num_layers, seq, batch, input_size, hidden, out_dim):
    """Builds the Pallas kernel body (closure over static sizes).

    Kernel refs (in order):
      x_ref                      (seq, batch, input_size)   time-major input
      [wih_t, whh_t, b] * L      per-layer RNN weights (pre-transposed), b = b_ih + b_hh
      fcw_t, fcb                 (hidden, out_dim), (1, out_dim)
      periods_ref, conf_ref      (batch, out_dim) each
    """

    def kernel(x_ref, *refs):
        n_params = 3 * num_layers + 2
        param_refs = refs[:n_params]
        periods_ref = refs[n_params]
        conf_ref = refs[n_params + 1]

        # ---- loop-invariant weight loads (hoisted once) ----
        wih = [param_refs[3 * l][...] for l in range(num_layers)]       # (in_dim, hidden)
        whh = [param_refs[3 * l + 1][...] for l in range(num_layers)]   # (hidden, hidden)
        bias = [param_refs[3 * l + 2][...] for l in range(num_layers)]  # (1, hidden)
        fcw_t = param_refs[3 * num_layers][...]                         # (hidden, out_dim)
        fcb = param_refs[3 * num_layers + 1][...]                       # (1, out_dim)

        # ---- layer-0 input projection, hoisted (no recurrent dependence) ----
        if input_size == 1:
            # degenerate K=1 matmul -> VPU broadcast multiply
            proj0_all = x_ref[...] * wih[0] + bias[0]                   # (seq, batch, hidden)
            proj0 = [proj0_all[t] for t in range(seq)]                  # SSA (batch, hidden)
        else:
            proj0 = [jnp.dot(x_ref[t], wih[0],
                             preferred_element_type=jnp.float32) + bias[0]
                     for t in range(seq)]

        # ---- wavefront (diagonal) recurrence, all state kept as SSA values ----
        h = [jnp.zeros((batch, hidden), jnp.float32) for _ in range(num_layers)]
        out_prev = [None] * num_layers   # out_prev[l]: latest h_{l,t} (feeds layer l+1)

        for d in range(seq + num_layers - 1):
            # Reversed layer order: layer l must read out_prev[l-1] from the
            # PREVIOUS diagonal before layer l-1 overwrites it on this one.
            for l in reversed(range(num_layers)):
                t = d - l
                if 0 <= t < seq:
                    if l == 0:
                        inp = proj0[t]
                    else:
                        inp = (jnp.dot(out_prev[l - 1], wih[l],
                                       preferred_element_type=jnp.float32) + bias[l])
                    h[l] = jnp.tanh(inp + jnp.dot(h[l], whh[l],
                                                  preferred_element_type=jnp.float32))
                    out_prev[l] = h[l]

        # ---- epilogue: fc(last hidden of last layer), sigmoid, softmax(dim=0) ----
        logits = jnp.dot(h[num_layers - 1], fcw_t,
                         preferred_element_type=jnp.float32) + fcb      # (batch, out_dim)

        # exact sigmoid as a single EUP tanh (no exp overflow, no approx error)
        periods = 0.5 * (jnp.tanh(0.5 * logits) + 1.0)

        # exact softmax over dim 0 (the batch axis) -- no padded rows to mask
        m = jnp.max(logits, axis=0, keepdims=True)
        e = jnp.exp(logits - m)
        conf = e / jnp.sum(e, axis=0, keepdims=True)

        periods_ref[...] = periods
        conf_ref[...] = conf

    return kernel


def pack_params(params, *, num_layers, hidden, out_dim):
    """One-time packing (transposes + bias folding) OUTSIDE the jitted hot path."""
    flat = []
    for l in range(num_layers):
        w_ih, w_hh, b_ih, b_hh = params[f"rnn_l{l}"]
        flat.append(jnp.transpose(w_ih).astype(jnp.float32))            # (in_dim, hidden)
        flat.append(jnp.transpose(w_hh).astype(jnp.float32))            # (hidden, hidden)
        flat.append((b_ih + b_hh).reshape(1, hidden).astype(jnp.float32))
    fc_w, fc_b = params["fc"]
    flat.append(jnp.transpose(fc_w).astype(jnp.float32))                # (hidden, out_dim)
    flat.append(fc_b.reshape(1, out_dim).astype(jnp.float32))           # (1, out_dim)
    return tuple(flat)


def transit_model_pallas(x, packed, *, num_layers, hidden, out_dim):
    """x: (batch, seq, input_size), packed = pack_params(...) -> (periods, conf)."""
    batch, seq, input_size = x.shape
    # Tiny (seq*batch*input_size floats) time-major relayout; leading-dim
    # indexing in the kernel is the cheap/robust layout for per-step slices.
    x_tm = jnp.transpose(x, (1, 0, 2)).astype(jnp.float32)

    kernel = _make_kernel(num_layers, seq, batch, input_size, hidden, out_dim)
    n_inputs = 1 + len(packed)

    # Single gridless call: softmax over the batch axis couples all rows, so the
    # whole (tiny) problem runs on one TensorCore with everything VMEM-resident.
    periods, conf = pl.pallas_call(
        kernel,
        out_shape=(jax.ShapeDtypeStruct((batch, out_dim), jnp.float32),
                   jax.ShapeDtypeStruct((batch, out_dim), jnp.float32)),
        in_specs=[pl.BlockSpec(memory_space=pltpu.MemorySpace.VMEM)] * n_inputs,
        out_specs=(pl.BlockSpec(memory_space=pltpu.MemorySpace.VMEM),
                   pl.BlockSpec(memory_space=pltpu.MemorySpace.VMEM)),
    )(x_tm, *packed)
    return periods, conf


def transit_model_ref(x, params, *, num_layers, hidden, out_dim):
    """Pure-JAX reference of the PyTorch forward pass."""
    batch, seq, _ = x.shape
    layer_in = x.astype(jnp.float32)
    for l in range(num_layers):
        w_ih, w_hh, b_ih, b_hh = params[f"rnn_l{l}"]
        h = jnp.zeros((batch, hidden), jnp.float32)
        outs = []
        for t in range(seq):
            h = jnp.tanh(layer_in[:, t] @ w_ih.T + b_ih + h @ w_hh.T + b_hh)
            outs.append(h)
        layer_in = jnp.stack(outs, axis=1)
    fc_w, fc_b = params["fc"]
    logits = layer_in[:, -1] @ fc_w.T + fc_b
    periods = jax.nn.sigmoid(logits)
    conf = jax.nn.softmax(logits, axis=0)
    return periods, conf


def init_params(key, *, input_size, hidden, out_dim, num_layers):
    """Deterministic uniform(-1/sqrt(H), 1/sqrt(H)) init, PyTorch-style shapes."""
    params = {}
    k = 1.0 / jnp.sqrt(hidden)
    for l in range(num_layers):
        in_dim = input_size if l == 0 else hidden
        key, k1, k2, k3, k4 = jax.random.split(key, 5)
        params[f"rnn_l{l}"] = (
            jax.random.uniform(k1, (hidden, in_dim), jnp.float32, -k, k),   # W_ih
            jax.random.uniform(k2, (hidden, hidden), jnp.float32, -k, k),   # W_hh
            jax.random.uniform(k3, (hidden,), jnp.float32, -k, k),          # b_ih
            jax.random.uniform(k4, (hidden,), jnp.float32, -k, k),          # b_hh
        )
    key, k1, k2 = jax.random.split(key, 3)
    params["fc"] = (
        jax.random.uniform(k1, (out_dim, hidden), jnp.float32, -k, k),      # fc.weight
        jax.random.uniform(k2, (out_dim,), jnp.float32, -k, k),             # fc.bias
    )
    return params


if __name__ == "__main__":
    # Small shapes consistent with the module's forward: (batch, seq, input_size)
    batch, seq, input_size = 2, 8, 1
    hidden, out_dim, num_layers = 32, 10, 3

    key = jax.random.PRNGKey(0)
    key, xk = jax.random.split(key)
    x = jax.random.normal(xk, (batch, seq, input_size), jnp.float32)
    params = init_params(key, input_size=input_size, hidden=hidden,
                         out_dim=out_dim, num_layers=num_layers)

    # Pack (transpose / fold biases) ONCE, outside the jitted hot path.
    packed = pack_params(params, num_layers=num_layers, hidden=hidden, out_dim=out_dim)

    run = jax.jit(functools.partial(transit_model_pallas,
                                    num_layers=num_layers, hidden=hidden,
                                    out_dim=out_dim))
    periods, conf = run(x, packed)
    jax.block_until_ready((periods, conf))

    # sanity check against pure-JAX reference (exact sigmoid/softmax -> tight tol)
    ref_p, ref_c = transit_model_ref(x, params, num_layers=num_layers,
                                     hidden=hidden, out_dim=out_dim)
    np.testing.assert_allclose(np.asarray(periods), np.asarray(ref_p),
                               rtol=5e-4, atol=1e-5)
    np.testing.assert_allclose(np.asarray(conf), np.asarray(ref_c),
                               rtol=5e-4, atol=1e-5)

    print("KERNEL_OK")
</pallas_src>

<mosaic_0001>
module attributes {stable_mosaic.version = 11 : i64} {
  func.func @kernel(%arg0: memref<8x2x1xf32, #tpu.memory_space<vmem>>, %arg1: memref<1x32xf32, #tpu.memory_space<vmem>>, %arg2: memref<32x32xf32, #tpu.memory_space<vmem>>, %arg3: memref<1x32xf32, #tpu.memory_space<vmem>>, %arg4: memref<32x32xf32, #tpu.memory_space<vmem>>, %arg5: memref<32x32xf32, #tpu.memory_space<vmem>>, %arg6: memref<1x32xf32, #tpu.memory_space<vmem>>, %arg7: memref<32x32xf32, #tpu.memory_space<vmem>>, %arg8: memref<32x32xf32, #tpu.memory_space<vmem>>, %arg9: memref<1x32xf32, #tpu.memory_space<vmem>>, %arg10: memref<32x10xf32, #tpu.memory_space<vmem>>, %arg11: memref<1x10xf32, #tpu.memory_space<vmem>>, %arg12: memref<2x10xf32, #tpu.memory_space<vmem>>, %arg13: memref<2x10xf32, #tpu.memory_space<vmem>>) attributes {dimension_semantics = [], scalar_prefetch = 0 : i64, scratch_operands = 0 : i64, tpu.core_type = #tpu.core_type<tc>} {
    %c0 = arith.constant 0 : index
    %c0_0 = arith.constant 0 : index
    %0 = vector.load %arg1[%c0, %c0_0] : memref<1x32xf32, #tpu.memory_space<vmem>>, vector<1x32xf32>
    %c0_1 = arith.constant 0 : index
    %c0_2 = arith.constant 0 : index
    %1 = vector.load %arg4[%c0_1, %c0_2] : memref<32x32xf32, #tpu.memory_space<vmem>>, vector<32x32xf32>
    %c0_3 = arith.constant 0 : index
    %c0_4 = arith.constant 0 : index
    %2 = vector.load %arg7[%c0_3, %c0_4] : memref<32x32xf32, #tpu.memory_space<vmem>>, vector<32x32xf32>
    %c0_5 = arith.constant 0 : index
    %c0_6 = arith.constant 0 : index
    %3 = vector.load %arg2[%c0_5, %c0_6] : memref<32x32xf32, #tpu.memory_space<vmem>>, vector<32x32xf32>
    %c0_7 = arith.constant 0 : index
    %c0_8 = arith.constant 0 : index
    %4 = vector.load %arg5[%c0_7, %c0_8] : memref<32x32xf32, #tpu.memory_space<vmem>>, vector<32x32xf32>
    %c0_9 = arith.constant 0 : index
    %c0_10 = arith.constant 0 : index
    %5 = vector.load %arg8[%c0_9, %c0_10] : memref<32x32xf32, #tpu.memory_space<vmem>>, vector<32x32xf32>
    %c0_11 = arith.constant 0 : index
    %c0_12 = arith.constant 0 : index
    %6 = vector.load %arg3[%c0_11, %c0_12] : memref<1x32xf32, #tpu.memory_space<vmem>>, vector<1x32xf32>
    %c0_13 = arith.constant 0 : index
    %c0_14 = arith.constant 0 : index
    %7 = vector.load %arg6[%c0_13, %c0_14] : memref<1x32xf32, #tpu.memory_space<vmem>>, vector<1x32xf32>
    %c0_15 = arith.constant 0 : index
    %c0_16 = arith.constant 0 : index
    %8 = vector.load %arg9[%c0_15, %c0_16] : memref<1x32xf32, #tpu.memory_space<vmem>>, vector<1x32xf32>
    %c0_17 = arith.constant 0 : index
    %c0_18 = arith.constant 0 : index
    %9 = vector.load %arg10[%c0_17, %c0_18] : memref<32x10xf32, #tpu.memory_space<vmem>>, vector<32x10xf32>
    %c0_19 = arith.constant 0 : index
    %c0_20 = arith.constant 0 : index
    %10 = vector.load %arg11[%c0_19, %c0_20] : memref<1x10xf32, #tpu.memory_space<vmem>>, vector<1x10xf32>
    %c0_21 = arith.constant 0 : index
    %c0_22 = arith.constant 0 : index
    %c0_23 = arith.constant 0 : index
    %11 = vector.load %arg0[%c0_21, %c0_22, %c0_23] : memref<8x2x1xf32, #tpu.memory_space<vmem>>, vector<8x2x1xf32>
    %12 = vector.shape_cast %0 : vector<1x32xf32> to vector<1x1x32xf32>
    %13 = vector.broadcast %11 : vector<8x2x1xf32> to vector<8x2x32xf32>
    %14 = vector.broadcast %12 : vector<1x1x32xf32> to vector<8x2x32xf32>
    %15 = arith.mulf %13, %14 : vector<8x2x32xf32>
    %16 = vector.shape_cast %6 : vector<1x32xf32> to vector<1x1x32xf32>
    %17 = vector.broadcast %16 : vector<1x1x32xf32> to vector<8x2x32xf32>
    %18 = arith.addf %15, %17 : vector<8x2x32xf32>
    %19 = vector.extract_strided_slice %18 {offsets = [0, 0, 0], sizes = [1, 2, 32], strides = [1, 1, 1]} : vector<8x2x32xf32> to vector<1x2x32xf32>
    %20 = vector.shape_cast %19 : vector<1x2x32xf32> to vector<2x32xf32>
    %21 = vector.extract_strided_slice %18 {offsets = [1, 0, 0], sizes = [1, 2, 32], strides = [1, 1, 1]} : vector<8x2x32xf32> to vector<1x2x32xf32>
    %22 = vector.shape_cast %21 : vector<1x2x32xf32> to vector<2x32xf32>
    %23 = vector.extract_strided_slice %18 {offsets = [2, 0, 0], sizes = [1, 2, 32], strides = [1, 1, 1]} : vector<8x2x32xf32> to vector<1x2x32xf32>
    %24 = vector.shape_cast %23 : vector<1x2x32xf32> to vector<2x32xf32>
    %25 = vector.extract_strided_slice %18 {offsets = [3, 0, 0], sizes = [1, 2, 32], strides = [1, 1, 1]} : vector<8x2x32xf32> to vector<1x2x32xf32>
    %26 = vector.shape_cast %25 : vector<1x2x32xf32> to vector<2x32xf32>
    %27 = vector.extract_strided_slice %18 {offsets = [4, 0, 0], sizes = [1, 2, 32], strides = [1, 1, 1]} : vector<8x2x32xf32> to vector<1x2x32xf32>
    %28 = vector.shape_cast %27 : vector<1x2x32xf32> to vector<2x32xf32>
    %29 = vector.extract_strided_slice %18 {offsets = [5, 0, 0], sizes = [1, 2, 32], strides = [1, 1, 1]} : vector<8x2x32xf32> to vector<1x2x32xf32>
    %30 = vector.shape_cast %29 : vector<1x2x32xf32> to vector<2x32xf32>
    %31 = vector.extract_strided_slice %18 {offsets = [6, 0, 0], sizes = [1, 2, 32], strides = [1, 1, 1]} : vector<8x2x32xf32> to vector<1x2x32xf32>
    %32 = vector.shape_cast %31 : vector<1x2x32xf32> to vector<2x32xf32>
    %33 = vector.extract_strided_slice %18 {offsets = [7, 0, 0], sizes = [1, 2, 32], strides = [1, 1, 1]} : vector<8x2x32xf32> to vector<1x2x32xf32>
    %34 = vector.shape_cast %33 : vector<1x2x32xf32> to vector<2x32xf32>
    %cst = arith.constant 0.000000e+00 : f32
    %35 = vector.broadcast %cst : f32 to vector<2x32xf32>
    %cst_24 = arith.constant 0.000000e+00 : f32
    %36 = vector.broadcast %cst_24 : f32 to vector<2x32xf32>
    %cst_25 = arith.constant 0.000000e+00 : f32
    %37 = vector.broadcast %cst_25 : f32 to vector<2x32xf32>
    %cst_26 = arith.constant dense<0.000000e+00> : vector<2x32xf32>
    %38 = tpu.matmul %35, %3, %cst_26 {dimension_numbers = #tpu.dot_dimension_numbers<[1], [0], [0], [1], [0, 0, 1, 1], [], []>} : vector<2x32xf32>, vector<32x32xf32>, vector<2x32xf32> -> vector<2x32xf32>
    %39 = arith.addf %20, %38 : vector<2x32xf32>
    %40 = math.tanh %39 : vector<2x32xf32>
    %cst_27 = arith.constant dense<0.000000e+00> : vector<2x32xf32>
    %41 = tpu.matmul %40, %1, %cst_27 {dimension_numbers = #tpu.dot_dimension_numbers<[1], [0], [0], [1], [0, 0, 1, 1], [], []>} : vector<2x32xf32>, vector<32x32xf32>, vector<2x32xf32> -> vector<2x32xf32>
    %42 = vector.broadcast %7 : vector<1x32xf32> to vector<2x32xf32>
    %43 = arith.addf %41, %42 : vector<2x32xf32>
    %cst_28 = arith.constant dense<0.000000e+00> : vector<2x32xf32>
    %44 = tpu.matmul %36, %4, %cst_28 {dimension_numbers = #tpu.dot_dimension_numbers<[1], [0], [0], [1], [0, 0, 1, 1], [], []>} : vector<2x32xf32>, vector<32x32xf32>, vector<2x32xf32> -> vector<2x32xf32>
    %45 = arith.addf %43, %44 : vector<2x32xf32>
    %46 = math.tanh %45 : vector<2x32xf32>
    %cst_29 = arith.constant dense<0.000000e+00> : vector<2x32xf32>
    %47 = tpu.matmul %40, %3, %cst_29 {dimension_numbers = #tpu.dot_dimension_numbers<[1], [0], [0], [1], [0, 0, 1, 1], [], []>} : vector<2x32xf32>, vector<32x32xf32>, vector<2x32xf32> -> vector<2x32xf32>
    %48 = arith.addf %22, %47 : vector<2x32xf32>
    %49 = math.tanh %48 : vector<2x32xf32>
    %cst_30 = arith.constant dense<0.000000e+00> : vector<2x32xf32>
    %50 = tpu.matmul %46, %2, %cst_30 {dimension_numbers = #tpu.dot_dimension_numbers<[1], [0], [0], [1], [0, 0, 1, 1], [], []>} : vector<2x32xf32>, vector<32x32xf32>, vector<2x32xf32> -> vector<2x32xf32>
    %51 = vector.broadcast %8 : vector<1x32xf32> to vector<2x32xf32>
    %52 = arith.addf %50, %51 : vector<2x32xf32>
    %cst_31 = arith.constant dense<0.000000e+00> : vector<2x32xf32>
    %53 = tpu.matmul %37, %5, %cst_31 {dimension_numbers = #tpu.dot_dimension_numbers<[1], [0], [0], [1], [0, 0, 1, 1], [], []>} : vector<2x32xf32>, vector<32x32xf32>, vector<2x32xf32> -> vector<2x32xf32>
    %54 = arith.addf %52, %53 : vector<2x32xf32>
    %55 = math.tanh %54 : vector<2x32xf32>
    %cst_32 = arith.constant dense<0.000000e+00> : vector<2x32xf32>
    %56 = tpu.matmul %49, %1, %cst_32 {dimension_numbers = #tpu.dot_dimension_numbers<[1], [0], [0], [1], [0, 0, 1, 1], [], []>} : vector<2x32xf32>, vector<32x32xf32>, vector<2x32xf32> -> vector<2x32xf32>
    %57 = vector.broadcast %7 : vector<1x32xf32> to vector<2x32xf32>
    %58 = arith.addf %56, %57 : vector<2x32xf32>
    %cst_33 = arith.constant dense<0.000000e+00> : vector<2x32xf32>
    %59 = tpu.matmul %46, %4, %cst_33 {dimension_numbers = #tpu.dot_dimension_numbers<[1], [0], [0], [1], [0, 0, 1, 1], [], []>} : vector<2x32xf32>, vector<32x32xf32>, vector<2x32xf32> -> vector<2x32xf32>
    %60 = arith.addf %58, %59 : vector<2x32xf32>
    %61 = math.tanh %60 : vector<2x32xf32>
    %cst_34 = arith.constant dense<0.000000e+00> : vector<2x32xf32>
    %62 = tpu.matmul %49, %3, %cst_34 {dimension_numbers = #tpu.dot_dimension_numbers<[1], [0], [0], [1], [0, 0, 1, 1], [], []>} : vector<2x32xf32>, vector<32x32xf32>, vector<2x32xf32> -> vector<2x32xf32>
    %63 = arith.addf %24, %62 : vector<2x32xf32>
    %64 = math.tanh %63 : vector<2x32xf32>
    %cst_35 = arith.constant dense<0.000000e+00> : vector<2x32xf32>
    %65 = tpu.matmul %61, %2, %cst_35 {dimension_numbers = #tpu.dot_dimension_numbers<[1], [0], [0], [1], [0, 0, 1, 1], [], []>} : vector<2x32xf32>, vector<32x32xf32>, vector<2x32xf32> -> vector<2x32xf32>
    %66 = vector.broadcast %8 : vector<1x32xf32> to vector<2x32xf32>
    %67 = arith.addf %65, %66 : vector<2x32xf32>
    %cst_36 = arith.constant dense<0.000000e+00> : vector<2x32xf32>
    %68 = tpu.matmul %55, %5, %cst_36 {dimension_numbers = #tpu.dot_dimension_numbers<[1], [0], [0], [1], [0, 0, 1, 1], [], []>} : vector<2x32xf32>, vector<32x32xf32>, vector<2x32xf32> -> vector<2x32xf32>
    %69 = arith.addf %67, %68 : vector<2x32xf32>
    %70 = math.tanh %69 : vector<2x32xf32>
    %cst_37 = arith.constant dense<0.000000e+00> : vector<2x32xf32>
    %71 = tpu.matmul %64, %1, %cst_37 {dimension_numbers = #tpu.dot_dimension_numbers<[1], [0], [0], [1], [0, 0, 1, 1], [], []>} : vector<2x32xf32>, vector<32x32xf32>, vector<2x32xf32> -> vector<2x32xf32>
    %72 = vector.broadcast %7 : vector<1x32xf32> to vector<2x32xf32>
    %73 = arith.addf %71, %72 : vector<2x32xf32>
    %cst_38 = arith.constant dense<0.000000e+00> : vector<2x32xf32>
    %74 = tpu.matmul %61, %4, %cst_38 {dimension_numbers = #tpu.dot_dimension_numbers<[1], [0], [0], [1], [0, 0, 1, 1], [], []>} : vector<2x32xf32>, vector<32x32xf32>, vector<2x32xf32> -> vector<2x32xf32>
    %75 = arith.addf %73, %74 : vector<2x32xf32>
    %76 = math.tanh %75 : vector<2x32xf32>
    %cst_39 = arith.constant dense<0.000000e+00> : vector<2x32xf32>
    %77 = tpu.matmul %64, %3, %cst_39 {dimension_numbers = #tpu.dot_dimension_numbers<[1], [0], [0], [1], [0, 0, 1, 1], [], []>} : vector<2x32xf32>, vector<32x32xf32>, vector<2x32xf32> -> vector<2x32xf32>
    %78 = arith.addf %26, %77 : vector<2x32xf32>
    %79 = math.tanh %78 : vector<2x32xf32>
    %cst_40 = arith.constant dense<0.000000e+00> : vector<2x32xf32>
    %80 = tpu.matmul %76, %2, %cst_40 {dimension_numbers = #tpu.dot_dimension_numbers<[1], [0], [0], [1], [0, 0, 1, 1], [], []>} : vector<2x32xf32>, vector<32x32xf32>, vector<2x32xf32> -> vector<2x32xf32>
    %81 = vector.broadcast %8 : vector<1x32xf32> to vector<2x32xf32>
    %82 = arith.addf %80, %81 : vector<2x32xf32>
    %cst_41 = arith.constant dense<0.000000e+00> : vector<2x32xf32>
    %83 = tpu.matmul %70, %5, %cst_41 {dimension_numbers = #tpu.dot_dimension_numbers<[1], [0], [0], [1], [0, 0, 1, 1], [], []>} : vector<2x32xf32>, vector<32x32xf32>, vector<2x32xf32> -> vector<2x32xf32>
    %84 = arith.addf %82, %83 : vector<2x32xf32>
    %85 = math.tanh %84 : vector<2x32xf32>
    %cst_42 = arith.constant dense<0.000000e+00> : vector<2x32xf32>
    %86 = tpu.matmul %79, %1, %cst_42 {dimension_numbers = #tpu.dot_dimension_numbers<[1], [0], [0], [1], [0, 0, 1, 1], [], []>} : vector<2x32xf32>, vector<32x32xf32>, vector<2x32xf32> -> vector<2x32xf32>
    %87 = vector.broadcast %7 : vector<1x32xf32> to vector<2x32xf32>
    %88 = arith.addf %86, %87 : vector<2x32xf32>
    %cst_43 = arith.constant dense<0.000000e+00> : vector<2x32xf32>
    %89 = tpu.matmul %76, %4, %cst_43 {dimension_numbers = #tpu.dot_dimension_numbers<[1], [0], [0], [1], [0, 0, 1, 1], [], []>} : vector<2x32xf32>, vector<32x32xf32>, vector<2x32xf32> -> vector<2x32xf32>
    %90 = arith.addf %88, %89 : vector<2x32xf32>
    %91 = math.tanh %90 : vector<2x32xf32>
    %cst_44 = arith.constant dense<0.000000e+00> : vector<2x32xf32>
    %92 = tpu.matmul %79, %3, %cst_44 {dimension_numbers = #tpu.dot_dimension_numbers<[1], [0], [0], [1], [0, 0, 1, 1], [], []>} : vector<2x32xf32>, vector<32x32xf32>, vector<2x32xf32> -> vector<2x32xf32>
    %93 = arith.addf %28, %92 : vector<2x32xf32>
    %94 = math.tanh %93 : vector<2x32xf32>
    %cst_45 = arith.constant dense<0.000000e+00> : vector<2x32xf32>
    %95 = tpu.matmul %91, %2, %cst_45 {dimension_numbers = #tpu.dot_dimension_numbers<[1], [0], [0], [1], [0, 0, 1, 1], [], []>} : vector<2x32xf32>, vector<32x32xf32>, vector<2x32xf32> -> vector<2x32xf32>
    %96 = vector.broadcast %8 : vector<1x32xf32> to vector<2x32xf32>
    %97 = arith.addf %95, %96 : vector<2x32xf32>
    %cst_46 = arith.constant dense<0.000000e+00> : vector<2x32xf32>
    %98 = tpu.matmul %85, %5, %cst_46 {dimension_numbers = #tpu.dot_dimension_numbers<[1], [0], [0], [1], [0, 0, 1, 1], [], []>} : vector<2x32xf32>, vector<32x32xf32>, vector<2x32xf32> -> vector<2x32xf32>
    %99 = arith.addf %97, %98 : vector<2x32xf32>
    %100 = math.tanh %99 : vector<2x32xf32>
    %cst_47 = arith.constant dense<0.000000e+00> : vector<2x32xf32>
    %101 = tpu.matmul %94, %1, %cst_47 {dimension_numbers = #tpu.dot_dimension_numbers<[1], [0], [0], [1], [0, 0, 1, 1], [], []>} : vector<2x32xf32>, vector<32x32xf32>, vector<2x32xf32> -> vector<2x32xf32>
    %102 = vector.broadcast %7 : vector<1x32xf32> to vector<2x32xf32>
    %103 = arith.addf %101, %102 : vector<2x32xf32>
    %cst_48 = arith.constant dense<0.000000e+00> : vector<2x32xf32>
    %104 = tpu.matmul %91, %4, %cst_48 {dimension_numbers = #tpu.dot_dimension_numbers<[1], [0], [0], [1], [0, 0, 1, 1], [], []>} : vector<2x32xf32>, vector<32x32xf32>, vector<2x32xf32> -> vector<2x32xf32>
    %105 = arith.addf %103, %104 : vector<2x32xf32>
    %106 = math.tanh %105 : vector<2x32xf32>
    %cst_49 = arith.constant dense<0.000000e+00> : vector<2x32xf32>
    %107 = tpu.matmul %94, %3, %cst_49 {dimension_numbers = #tpu.dot_dimension_numbers<[1], [0], [0], [1], [0, 0, 1, 1], [], []>} : vector<2x32xf32>, vector<32x32xf32>, vector<2x32xf32> -> vector<2x32xf32>
    %108 = arith.addf %30, %107 : vector<2x32xf32>
    %109 = math.tanh %108 : vector<2x32xf32>
    %cst_50 = arith.constant dense<0.000000e+00> : vector<2x32xf32>
    %110 = tpu.matmul %106, %2, %cst_50 {dimension_numbers = #tpu.dot_dimension_numbers<[1], [0], [0], [1], [0, 0, 1, 1], [], []>} : vector<2x32xf32>, vector<32x32xf32>, vector<2x32xf32> -> vector<2x32xf32>
    %111 = vector.broadcast %8 : vector<1x32xf32> to vector<2x32xf32>
    %112 = arith.addf %110, %111 : vector<2x32xf32>
    %cst_51 = arith.constant dense<0.000000e+00> : vector<2x32xf32>
    %113 = tpu.matmul %100, %5, %cst_51 {dimension_numbers = #tpu.dot_dimension_numbers<[1], [0], [0], [1], [0, 0, 1, 1], [], []>} : vector<2x32xf32>, vector<32x32xf32>, vector<2x32xf32> -> vector<2x32xf32>
    %114 = arith.addf %112, %113 : vector<2x32xf32>
    %115 = math.tanh %114 : vector<2x32xf32>
    %cst_52 = arith.constant dense<0.000000e+00> : vector<2x32xf32>
    %116 = tpu.matmul %109, %1, %cst_52 {dimension_numbers = #tpu.dot_dimension_numbers<[1], [0], [0], [1], [0, 0, 1, 1], [], []>} : vector<2x32xf32>, vector<32x32xf32>, vector<2x32xf32> -> vector<2x32xf32>
    %117 = vector.broadcast %7 : vector<1x32xf32> to vector<2x32xf32>
    %118 = arith.addf %116, %117 : vector<2x32xf32>
    %cst_53 = arith.constant dense<0.000000e+00> : vector<2x32xf32>
    %119 = tpu.matmul %106, %4, %cst_53 {dimension_numbers = #tpu.dot_dimension_numbers<[1], [0], [0], [1], [0, 0, 1, 1], [], []>} : vector<2x32xf32>, vector<32x32xf32>, vector<2x32xf32> -> vector<2x32xf32>
    %120 = arith.addf %118, %119 : vector<2x32xf32>
    %121 = math.tanh %120 : vector<2x32xf32>
    %cst_54 = arith.constant dense<0.000000e+00> : vector<2x32xf32>
    %122 = tpu.matmul %109, %3, %cst_54 {dimension_numbers = #tpu.dot_dimension_numbers<[1], [0], [0], [1], [0, 0, 1, 1], [], []>} : vector<2x32xf32>, vector<32x32xf32>, vector<2x32xf32> -> vector<2x32xf32>
    %123 = arith.addf %32, %122 : vector<2x32xf32>
    %124 = math.tanh %123 : vector<2x32xf32>
    %cst_55 = arith.constant dense<0.000000e+00> : vector<2x32xf32>
    %125 = tpu.matmul %121, %2, %cst_55 {dimension_numbers = #tpu.dot_dimension_numbers<[1], [0], [0], [1], [0, 0, 1, 1], [], []>} : vector<2x32xf32>, vector<32x32xf32>, vector<2x32xf32> -> vector<2x32xf32>
    %126 = vector.broadcast %8 : vector<1x32xf32> to vector<2x32xf32>
    %127 = arith.addf %125, %126 : vector<2x32xf32>
    %cst_56 = arith.constant dense<0.000000e+00> : vector<2x32xf32>
    %128 = tpu.matmul %115, %5, %cst_56 {dimension_numbers = #tpu.dot_dimension_numbers<[1], [0], [0], [1], [0, 0, 1, 1], [], []>} : vector<2x32xf32>, vector<32x32xf32>, vector<2x32xf32> -> vector<2x32xf32>
    %129 = arith.addf %127, %128 : vector<2x32xf32>
    %130 = math.tanh %129 : vector<2x32xf32>
    %cst_57 = arith.constant dense<0.000000e+00> : vector<2x32xf32>
    %131 = tpu.matmul %124, %1, %cst_57 {dimension_numbers = #tpu.dot_dimension_numbers<[1], [0], [0], [1], [0, 0, 1, 1], [], []>} : vector<2x32xf32>, vector<32x32xf32>, vector<2x32xf32> -> vector<2x32xf32>
    %132 = vector.broadcast %7 : vector<1x32xf32> to vector<2x32xf32>
    %133 = arith.addf %131, %132 : vector<2x32xf32>
    %cst_58 = arith.constant dense<0.000000e+00> : vector<2x32xf32>
    %134 = tpu.matmul %121, %4, %cst_58 {dimension_numbers = #tpu.dot_dimension_numbers<[1], [0], [0], [1], [0, 0, 1, 1], [], []>} : vector<2x32xf32>, vector<32x32xf32>, vector<2x32xf32> -> vector<2x32xf32>
    %135 = arith.addf %133, %134 : vector<2x32xf32>
    %136 = math.tanh %135 : vector<2x32xf32>
    %cst_59 = arith.constant dense<0.000000e+00> : vector<2x32xf32>
    %137 = tpu.matmul %124, %3, %cst_59 {dimension_numbers = #tpu.dot_dimension_numbers<[1], [0], [0], [1], [0, 0, 1, 1], [], []>} : vector<2x32xf32>, vector<32x32xf32>, vector<2x32xf32> -> vector<2x32xf32>
    %138 = arith.addf %34, %137 : vector<2x32xf32>
    %139 = math.tanh %138 : vector<2x32xf32>
    %cst_60 = arith.constant dense<0.000000e+00> : vector<2x32xf32>
    %140 = tpu.matmul %136, %2, %cst_60 {dimension_numbers = #tpu.dot_dimension_numbers<[1], [0], [0], [1], [0, 0, 1, 1], [], []>} : vector<2x32xf32>, vector<32x32xf32>, vector<2x32xf32> -> vector<2x32xf32>
    %141 = vector.broadcast %8 : vector<1x32xf32> to vector<2x32xf32>
    %142 = arith.addf %140, %141 : vector<2x32xf32>
    %cst_61 = arith.constant dense<0.000000e+00> : vector<2x32xf32>
    %143 = tpu.matmul %130, %5, %cst_61 {dimension_numbers = #tpu.dot_dimension_numbers<[1], [0], [0], [1], [0, 0, 1, 1], [], []>} : vector<2x32xf32>, vector<32x32xf32>, vector<2x32xf32> -> vector<2x32xf32>
    %144 = arith.addf %142, %143 : vector<2x32xf32>
    %145 = math.tanh %144 : vector<2x32xf32>
    %cst_62 = arith.constant dense<0.000000e+00> : vector<2x32xf32>
    %146 = tpu.matmul %139, %1, %cst_62 {dimension_numbers = #tpu.dot_dimension_numbers<[1], [0], [0], [1], [0, 0, 1, 1], [], []>} : vector<2x32xf32>, vector<32x32xf32>, vector<2x32xf32> -> vector<2x32xf32>
    %147 = vector.broadcast %7 : vector<1x32xf32> to vector<2x32xf32>
    %148 = arith.addf %146, %147 : vector<2x32xf32>
    %cst_63 = arith.constant dense<0.000000e+00> : vector<2x32xf32>
    %149 = tpu.matmul %136, %4, %cst_63 {dimension_numbers = #tpu.dot_dimension_numbers<[1], [0], [0], [1], [0, 0, 1, 1], [], []>} : vector<2x32xf32>, vector<32x32xf32>, vector<2x32xf32> -> vector<2x32xf32>
    %150 = arith.addf %148, %149 : vector<2x32xf32>
    %151 = math.tanh %150 : vector<2x32xf32>
    %cst_64 = arith.constant dense<0.000000e+00> : vector<2x32xf32>
    %152 = tpu.matmul %151, %2, %cst_64 {dimension_numbers = #tpu.dot_dimension_numbers<[1], [0], [0], [1], [0, 0, 1, 1], [], []>} : vector<2x32xf32>, vector<32x32xf32>, vector<2x32xf32> -> vector<2x32xf32>
    %153 = vector.broadcast %8 : vector<1x32xf32> to vector<2x32xf32>
    %154 = arith.addf %152, %153 : vector<2x32xf32>
    %cst_65 = arith.constant dense<0.000000e+00> : vector<2x32xf32>
    %155 = tpu.matmul %145, %5, %cst_65 {dimension_numbers = #tpu.dot_dimension_numbers<[1], [0], [0], [1], [0, 0, 1, 1], [], []>} : vector<2x32xf32>, vector<32x32xf32>, vector<2x32xf32> -> vector<2x32xf32>
    %156 = arith.addf %154, %155 : vector<2x32xf32>
    %157 = math.tanh %156 : vector<2x32xf32>
    %cst_66 = arith.constant dense<0.000000e+00> : vector<2x10xf32>
    %158 = tpu.matmul %157, %9, %cst_66 {dimension_numbers = #tpu.dot_dimension_numbers<[1], [0], [0], [1], [0, 0, 1, 1], [], []>} : vector<2x32xf32>, vector<32x10xf32>, vector<2x10xf32> -> vector<2x10xf32>
    %159 = vector.broadcast %10 : vector<1x10xf32> to vector<2x10xf32>
    %160 = arith.addf %158, %159 : vector<2x10xf32>
    %cst_67 = arith.constant 5.000000e-01 : f32
    %161 = vector.broadcast %cst_67 : f32 to vector<2x10xf32>
    %162 = arith.mulf %161, %160 : vector<2x10xf32>
    %163 = math.tanh %162 : vector<2x10xf32>
    %cst_68 = arith.constant 1.000000e+00 : f32
    %164 = vector.broadcast %cst_68 : f32 to vector<2x10xf32>
    %165 = arith.addf %163, %164 : vector<2x10xf32>
    %cst_69 = arith.constant 5.000000e-01 : f32
    %166 = vector.broadcast %cst_69 : f32 to vector<2x10xf32>
    %167 = arith.mulf %166, %165 : vector<2x10xf32>
    %cst_70 = arith.constant dense<0xFF800000> : vector<10xf32>
    %168 = vector.multi_reduction <maximumf>, %160, %cst_70 [0] : vector<2x10xf32> to vector<10xf32>
    %169 = vector.shape_cast %168 : vector<10xf32> to vector<1x10xf32>
    %170 = vector.broadcast %169 : vector<1x10xf32> to vector<2x10xf32>
    %171 = arith.subf %160, %170 : vector<2x10xf32>
    %172 = math.exp %171 : vector<2x10xf32>
    %cst_71 = arith.constant dense<0.000000e+00> : vector<10xf32>
    %173 = vector.multi_reduction <add>, %172, %cst_71 [0] : vector<2x10xf32> to vector<10xf32>
    %174 = vector.shape_cast %173 : vector<10xf32> to vector<1x10xf32>
    %175 = vector.broadcast %174 : vector<1x10xf32> to vector<2x10xf32>
    %176 = arith.divf %172, %175 : vector<2x10xf32>
    %c0_72 = arith.constant 0 : index
    %c0_73 = arith.constant 0 : index
    %177 = vector.load %arg12[%c0_72, %c0_73] : memref<2x10xf32, #tpu.memory_space<vmem>>, vector<2x10xf32>
    tpu.vector_store %arg12[%c0_72, %c0_73], %167 {strides = array<i32>} : memref<2x10xf32, #tpu.memory_space<vmem>>, vector<2x10xf32>,
    %c0_74 = arith.constant 0 : index
    %c0_75 = arith.constant 0 : index
    %178 = vector.load %arg13[%c0_74, %c0_75] : memref<2x10xf32, #tpu.memory_space<vmem>>, vector<2x10xf32>
    tpu.vector_store %arg13[%c0_74, %c0_75], %176 {strides = array<i32>} : memref<2x10xf32, #tpu.memory_space<vmem>>, vector<2x10xf32>,
    return
  }
}

</mosaic_0001>

<llo_original>
// kernel: transit_model_pallas.1
$region0: #{transit_model_pallas.1}
  #allocation0 [shape = 'u32[]', space=smem, size = 0x4, offset = 0x4, fixed_abs, tag = 'smem constant byte address 0x4 - core index']
  #allocation1 [shape = 'u32[144,128]{1,0:T(1,128)}', space=vmem, size = 0x12000, scoped, tag = 'internal scratch']
  %s0 = inlined_call_operand.vmem [shape: f32[8,2,1], index: 0, kind: input, shape index: {}]
  %s1 = inlined_call_operand.hbm [shape: f32[1,32], index: 1, kind: input, shape index: {}]
  %s2 = inlined_call_operand.vmem [shape: f32[32,32], index: 2, kind: input, shape index: {}]
  %s3 = inlined_call_operand.hbm [shape: f32[1,32], index: 3, kind: input, shape index: {}]
  %s4 = inlined_call_operand.vmem [shape: f32[32,32], index: 4, kind: input, shape index: {}]
  %s5 = inlined_call_operand.hbm [shape: f32[32,32], index: 5, kind: input, shape index: {}]
  %s6 = inlined_call_operand.hbm [shape: f32[1,32], index: 6, kind: input, shape index: {}]
  %s7 = inlined_call_operand.vmem [shape: f32[32,32], index: 7, kind: input, shape index: {}]
  %s8 = inlined_call_operand.hbm [shape: f32[32,32], index: 8, kind: input, shape index: {}]
  %s9 = inlined_call_operand.vmem [shape: f32[1,32], index: 9, kind: input, shape index: {}]
  %s10 = inlined_call_operand.vmem [shape: f32[32,10], index: 10, kind: input, shape index: {}]
  %s11 = inlined_call_operand.vmem [shape: f32[1,10], index: 11, kind: input, shape index: {}]
  %s12 = inlined_call_operand.hbm [shape: f32[2,10], index: 12, kind: output, shape index: {0}]
  %s13 = inlined_call_operand.hbm [shape: f32[2,10], index: 13, kind: output, shape index: {1}]
  %14 = xla_tuple %s12, %s13
  %s15 = sld [smem:[#allocation0]]
  $region86: #{transit_model_pallas.1} parent=0
    _
  %s17 = ssub.s32 1, %s15
  %s18 = scalar_select 0, %s17, %s15
  $region1: #{transit_model_pallas.1} parent=0
    #allocation2 [shape = 'u8[512]{0}', space=vmem, size = 0x400, scoped, tag = 'input window, operand 1, single buffered']
    #allocation3 [shape = 's32[1]{0}', space=sflag, size = 0x4, scoped, tag = 'scoped memory for transit_model_pallas.1']
    #allocation4 [shape = 's32[1]{0}', space=sflag, size = 0x4, scoped, tag = 'scoped memory for transit_model_pallas.1']
    #allocation5 [shape = 'u8[512]{0}', space=vmem, size = 0x400, scoped, tag = 'input window, operand 3, single buffered']
    #allocation6 [shape = 's32[1]{0}', space=sflag, size = 0x4, scoped, tag = 'scoped memory for transit_model_pallas.1']
    #allocation7 [shape = 'u8[16384]{0}', space=vmem, size = 0x4000, scoped, tag = 'input window, operand 5, single buffered']
    #allocation8 [shape = 'u8[512]{0}', space=vmem, size = 0x400, scoped, tag = 'input window, operand 6, single buffered']
    #allocation9 [shape = 's32[1]{0}', space=sflag, size = 0x4, scoped, tag = 'scoped memory for transit_model_pallas.1']
    #allocation10 [shape = 'u8[16384]{0}', space=vmem, size = 0x4000, scoped, tag = 'input window, operand 8, single buffered']
    #allocation11 [shape = 'u8[1024]{0}', space=vmem, size = 0x400, scoped, tag = 'output window, operand 0, single buffered']
    #allocation12 [shape = 'u8[1024]{0}', space=vmem, size = 0x400, scoped, tag = 'output window, operand 1, single buffered']
    #allocation13 [shape = 's32[1]{0}', space=sflag, size = 0x4, scoped, tag = 'scoped memory for transit_model_pallas.1']
    %19 = vsyncpa [#allocation3], 0
    %20 = vsyncpa [#allocation6], 0
    %21 = vsyncpa [#allocation9], 0
    %22 = vsyncpa [#allocation4], 0
    %23 = vsyncpa [#allocation13], 0
    // Predicated region
    $region2: #{transit_model_pallas.1} parent=1 // pred_check
      _
    $region3: #{transit_model_pallas.1} parent=1 // pred_check_branch
      %25 = sbr.rel (0) target = $region5
    $region4: #{transit_model_pallas.1} parent=1 // pred_region
      _
    $region5: #{transit_model_pallas.1} parent=1 // pred_fallthru
      _
    // Predicated region
    $region6: #{transit_model_pallas.1} parent=1 // pred_check
      _
    $region7: #{transit_model_pallas.1} parent=1 // pred_check_branch
      %27 = sbr.rel (0) target = $region9
    $region8: #{transit_model_pallas.1} parent=1 // pred_region
      %s29 = ssub.s32 16, 16
      %30 = vsyncadd [#allocation3], %s29
      %s32 = sshll.u32 [#allocation2], 4
      %s33 = int_to_ptr.vmem [resolvable:$true] %s32
      %35 = dma.hbm_to_vmem [thread:$0]  %s1, 16, %s33, [#allocation3]
    $region9: #{transit_model_pallas.1} parent=1 // pred_fallthru
      _
    // Predicated region
    $region10: #{transit_model_pallas.1} parent=1 // pred_check
      _
    $region11: #{transit_model_pallas.1} parent=1 // pred_check_branch
      %37 = sbr.rel (0) target = $region13
    $region12: #{transit_model_pallas.1} parent=1 // pred_region
      _
    $region13: #{transit_model_pallas.1} parent=1 // pred_fallthru
      _
    // Predicated region
    $region14: #{transit_model_pallas.1} parent=1 // pred_check
      _
    $region15: #{transit_model_pallas.1} parent=1 // pred_check_branch
      %39 = sbr.rel (0) target = $region17
    $region16: #{transit_model_pallas.1} parent=1 // pred_region
      %s41 = ssub.s32 16, 16
      %42 = vsyncadd [#allocation6], %s41
      %s44 = sshll.u32 [#allocation5], 4
      %s45 = int_to_ptr.vmem [resolvable:$true] %s44
      %47 = dma.hbm_to_vmem [thread:$0]  %s3, 16, %s45, [#allocation6]
    $region17: #{transit_model_pallas.1} parent=1 // pred_fallthru
      _
    // Predicated region
    $region18: #{transit_model_pallas.1} parent=1 // pred_check
      _
    $region19: #{transit_model_pallas.1} parent=1 // pred_check_branch
      %49 = sbr.rel (0) target = $region21
    $region20: #{transit_model_pallas.1} parent=1 // pred_region
      _
    $region21: #{transit_model_pallas.1} parent=1 // pred_fallthru
      _
    // Predicated region
    $region22: #{transit_model_pallas.1} parent=1 // pred_check
      _
    $region23: #{transit_model_pallas.1} parent=1 // pred_check_branch
      %51 = sbr.rel (0) target = $region25
    $region24: #{transit_model_pallas.1} parent=1 // pred_region
      %s53 = ssub.s32 512, 512
      %54 = vsyncadd [#allocation6], %s53
      %s55 = sshll.u32 [#allocation7], 4
      %s56 = int_to_ptr.vmem [resolvable:$true] %s55
      %61 = dma.hbm_to_vmem [thread:$0]  %s5, 512, %s56, [#allocation6], 128, 128, 8
    $region25: #{transit_model_pallas.1} parent=1 // pred_fallthru
      _
    // Predicated region
    $region26: #{transit_model_pallas.1} parent=1 // pred_check
      _
    $region27: #{transit_model_pallas.1} parent=1 // pred_check_branch
      %63 = sbr.rel (0) target = $region29
    $region28: #{transit_model_pallas.1} parent=1 // pred_region
      %s65 = ssub.s32 16, 16
      %66 = vsyncadd [#allocation9], %s65
      %s68 = sshll.u32 [#allocation8], 4
      %s69 = int_to_ptr.vmem [resolvable:$true] %s68
      %71 = dma.hbm_to_vmem [thread:$0]  %s6, 16, %s69, [#allocation9]
    $region29: #{transit_model_pallas.1} parent=1 // pred_fallthru
      _
    // Predicated region
    $region30: #{transit_model_pallas.1} parent=1 // pred_check
      _
    $region31: #{transit_model_pallas.1} parent=1 // pred_check_branch
      %73 = sbr.rel (0) target = $region33
    $region32: #{transit_model_pallas.1} parent=1 // pred_region
      _
    $region33: #{transit_model_pallas.1} parent=1 // pred_fallthru
      _
    // Predicated region
    $region34: #{transit_model_pallas.1} parent=1 // pred_check
      _
    $region35: #{transit_model_pallas.1} parent=1 // pred_check_branch
      %75 = sbr.rel (0) target = $region37
    $region36: #{transit_model_pallas.1} parent=1 // pred_region
      %s77 = ssub.s32 512, 512
      %78 = vsyncadd [#allocation9], %s77
      %s79 = sshll.u32 [#allocation10], 4
      %s80 = int_to_ptr.vmem [resolvable:$true] %s79
      %85 = dma.hbm_to_vmem [thread:$0]  %s8, 512, %s80, [#allocation9], 128, 128, 8
    $region37: #{transit_model_pallas.1} parent=1 // pred_fallthru
      _
    // Predicated region
    $region38: #{transit_model_pallas.1} parent=1 // pred_check
      _
    $region39: #{transit_model_pallas.1} parent=1 // pred_check_branch
      %87 = sbr.rel (0) target = $region41
    $region40: #{transit_model_pallas.1} parent=1 // pred_region
      _
    $region41: #{transit_model_pallas.1} parent=1 // pred_fallthru
      _
    // Predicated region
    $region42: #{transit_model_pallas.1} parent=1 // pred_check
      _
    $region43: #{transit_model_pallas.1} parent=1 // pred_check_branch
      %89 = sbr.rel (0) target = $region45
    $region44: #{transit_model_pallas.1} parent=1 // pred_region
      _
    $region45: #{transit_model_pallas.1} parent=1 // pred_fallthru
      _
    // Predicated region
    $region46: #{transit_model_pallas.1} parent=1 // pred_check
      _
    $region47: #{transit_model_pallas.1} parent=1 // pred_check_branch
      %91 = sbr.rel (0) target = $region49
    $region48: #{transit_model_pallas.1} parent=1 // pred_region
      _
    $region49: #{transit_model_pallas.1} parent=1 // pred_fallthru
      _
    // Predicated region
    $region50: #{transit_model_pallas.1} parent=1 // pred_check
      _
    $region51: #{transit_model_pallas.1} parent=1 // pred_check_branch
      %93 = sbr.rel (0) target = $region53
    $region52: #{transit_model_pallas.1} parent=1 // pred_region
      %94 = dma.done [#allocation3], 16
    $region53: #{transit_model_pallas.1} parent=1 // pred_fallthru
      _
    // Predicated region
    $region54: #{transit_model_pallas.1} parent=1 // pred_check
      _
    $region55: #{transit_model_pallas.1} parent=1 // pred_check_branch
      %96 = sbr.rel (0) target = $region57
    $region56: #{transit_model_pallas.1} parent=1 // pred_region
      %97 = dma.done [#allocation6], 16
    $region57: #{transit_model_pallas.1} parent=1 // pred_fallthru
      _
    // Predicated region
    $region58: #{transit_model_pallas.1} parent=1 // pred_check
      _
    $region59: #{transit_model_pallas.1} parent=1 // pred_check_branch
      %99 = sbr.rel (0) target = $region61
    $region60: #{transit_model_pallas.1} parent=1 // pred_region
      %100 = dma.done [#allocation6], 512
    $region61: #{transit_model_pallas.1} parent=1 // pred_fallthru
      _
    // Predicated region
    $region62: #{transit_model_pallas.1} parent=1 // pred_check
      _
    $region63: #{transit_model_pallas.1} parent=1 // pred_check_branch
      %102 = sbr.rel (0) target = $region65
    $region64: #{transit_model_pallas.1} parent=1 // pred_region
      %103 = dma.done [#allocation9], 16
    $region65: #{transit_model_pallas.1} parent=1 // pred_fallthru
      _
    // Predicated region
    $region66: #{transit_model_pallas.1} parent=1 // pred_check
      _
    $region67: #{transit_model_pallas.1} parent=1 // pred_check_branch
      %105 = sbr.rel (0) target = $region69
    $region68: #{transit_model_pallas.1} parent=1 // pred_region
      %106 = dma.done [#allocation9], 512
    $region69: #{transit_model_pallas.1} parent=1 // pred_fallthru
      _
    %v107 = vld [vmem:[#allocation2] sm:$0x1]
    %v108 = vld [vmem:[%s4] sm:$0xff]
    %v109 = vld [vmem:[%s4 + $0x8] sm:$0xff]
    %v110 = vld [vmem:[%s4 + $0x10] sm:$0xff]
    %v111 = vld [vmem:[%s4 + $0x18] sm:$0xff]
    %v112 = vld [vmem:[%s7] sm:$0xff]
    %v113 = vld [vmem:[%s7 + $0x8] sm:$0xff]
    %v114 = vld [vmem:[%s7 + $0x10] sm:$0xff]
    %v115 = vld [vmem:[%s7 + $0x18] sm:$0xff]
    %v116 = vld [vmem:[%s2] sm:$0xff]
    %v117 = vld [vmem:[%s2 + $0x8] sm:$0xff]
    %v118 = vld [vmem:[%s2 + $0x10] sm:$0xff]
    %v119 = vld [vmem:[%s2 + $0x18] sm:$0xff]
    %v120 = vld [vmem:[#allocation7] sm:$0xff]
    %v121 = vld [vmem:[#allocation7 + $0x8] sm:$0xff]
    %v122 = vld [vmem:[#allocation7 + $0x10] sm:$0xff]
    %v123 = vld [vmem:[#allocation7 + $0x18] sm:$0xff]
    %v124 = vld [vmem:[#allocation10] sm:$0xff]
    %v125 = vld [vmem:[#allocation10 + $0x8] sm:$0xff]
    %v126 = vld [vmem:[#allocation10 + $0x10] sm:$0xff]
    %v127 = vld [vmem:[#allocation10 + $0x18] sm:$0xff]
    %v128 = vld [vmem:[#allocation5] sm:$0x1]
    %v129 = vld [vmem:[#allocation8] sm:$0x1]
    %v130 = vld [vmem:[%s9] sm:$0x1]
    %v131 = vld [vmem:[%s10] sm:$0xff]
    %v132 = vld [vmem:[%s10 + $0x8] sm:$0xff]
    %v133 = vld [vmem:[%s10 + $0x10] sm:$0xff]
    %v134 = vld [vmem:[%s10 + $0x18] sm:$0xff]
    %v135 = vld [vmem:[%s11] sm:$0x1]
    %v136 = vld [vmem:[%s0] sm:$0x3]
    %v137 = vld [vmem:[%s0 + $0x2] sm:$0x3]
    %v138 = vld [vmem:[%s0 + $0x4] sm:$0x3]
    %v139 = vld [vmem:[%s0 + $0x6] sm:$0x3]
    %v140 = vld [vmem:[%s0 + $0x8] sm:$0x3]
    %v141 = vld [vmem:[%s0 + $0xa] sm:$0x3]
    %v142 = vld [vmem:[%s0 + $0xc] sm:$0x3]
    %v143 = vld [vmem:[%s0 + $0xe] sm:$0x3]
    %145 = vset.pattern.permute.xlu0 0
    %146 = vperm.xlu0 %145, %v136
    %v147 = vpop.permute.xlu0 %146
    %150 = vset.pattern.permute.xlu0 0
    %151 = vperm.xlu0 %150, %v137
    %v152 = vpop.permute.xlu0 %151
    %155 = vset.pattern.permute.xlu0 0
    %156 = vperm.xlu0 %155, %v138
    %v157 = vpop.permute.xlu0 %156
    %160 = vset.pattern.permute.xlu0 0
    %161 = vperm.xlu0 %160, %v139
    %v162 = vpop.permute.xlu0 %161
    %165 = vset.pattern.permute.xlu0 0
    %166 = vperm.xlu0 %165, %v140
    %v167 = vpop.permute.xlu0 %166
    %170 = vset.pattern.permute.xlu0 0
    %171 = vperm.xlu0 %170, %v141
    %v172 = vpop.permute.xlu0 %171
    %175 = vset.pattern.permute.xlu0 0
    %176 = vperm.xlu0 %175, %v142
    %v177 = vpop.permute.xlu0 %176
    %180 = vset.pattern.permute.xlu0 0
    %181 = vperm.xlu0 %180, %v143
    %v182 = vpop.permute.xlu0 %181
    %v185 = vlaneseq
    %v186 = vshrl.u32 %v185, 7
    %v187 = vsub.s32 0, %v186
    %v188 = vrot.slane %v107, %v187
    %v190 = vmul.f32 %v147, %v188
    %v191 = vmul.f32 %v152, %v188
    %v192 = vmul.f32 %v157, %v188
    %v193 = vmul.f32 %v162, %v188
    %v194 = vmul.f32 %v167, %v188
    %v195 = vmul.f32 %v172, %v188
    %v196 = vmul.f32 %v177, %v188
    %v197 = vmul.f32 %v182, %v188
    %v199 = vlaneseq
    %v200 = vshrl.u32 %v199, 7
    %v201 = vsub.s32 0, %v200
    %v202 = vrot.slane %v128, %v201
    %v204 = vadd.f32 %v190, %v202
    %v205 = vadd.f32 %v191, %v202
    %v206 = vadd.f32 %v192, %v202
    %v207 = vadd.f32 %v193, %v202
    %v208 = vadd.f32 %v194, %v202
    %v209 = vadd.f32 %v195, %v202
    %v210 = vadd.f32 %v196, %v202
    %v211 = vadd.f32 %v197, %v202
    %vm212 = vcmask 261120
    %v214 = vsel %vm212, 0.0, 0
    %216 = vmatprep.subr.mxu0 0.0
    %217 = vmatpush1.msra.mxu0 %v116
    %218 = vmatprep.subr.mxu0 0.0
    %219 = vmatpush1.msra.mxu0 %v117
    %220 = vmatprep.subr.mxu0 0.0
    %221 = vmatpush1.msra.mxu0 %v118
    %222 = vmatprep.subr.mxu0 0.0
    %223 = vmatpush1.msra.mxu0 %v119
    %224 = vmatprep.subr.mxu0 0.0
    %225 = vmatpush1.msra.mxu0 0.0
    %226 = vmatprep.subr.mxu0 0.0
    %227 = vmatpush1.msra.mxu0 0.0
    %228 = vmatprep.subr.mxu0 0.0
    %229 = vmatpush1.msra.mxu0 0.0
    %230 = vmatprep.subr.mxu0 0.0
    %231 = vmatpush1.msra.mxu0 0.0
    %232 = vmatprep.subr.mxu0 0.0
    %233 = vmatpush1.msra.mxu0 0.0
    %234 = vmatprep.subr.mxu0 0.0
    %235 = vmatpush1.msra.mxu0 0.0
    %236 = vmatprep.subr.mxu0 0.0
    %237 = vmatpush1.msra.mxu0 0.0
    %238 = vmatprep.subr.mxu0 0.0
    %239 = vmatpush1.msra.mxu0 0.0
    %240 = vmatprep.subr.mxu0 0.0
    %241 = vmatpush1.msra.mxu0 0.0
    %242 = vmatprep.subr.mxu0 0.0
    %243 = vmatpush1.msra.mxu0 0.0
    %244 = vmatprep.subr.mxu0 0.0
    %245 = vmatpush1.msra.mxu0 0.0
    %246 = vmatprep.subr.mxu0 0.0
    %247 = vmatpush1.msra.mxu0 0.0
    %248 = vmatprep.subr.mxu0 0.0
    %249 = vmatpush1.msra.mxu0 0.0
    %250 = vmatprep.subr.mxu0 0.0
    %251 = vmatpush1.msra.mxu0 0.0
    %252 = vmatprep.subr.mxu0 0.0
    %253 = vmatpush1.msra.mxu0 0.0
    %254 = vmatprep.subr.mxu0 0.0
    %255 = vmatpush1.msra.mxu0 0.0
    %256 = vmatprep.subr.mxu0 0.0
    %257 = vmatpush1.msra.mxu0 0.0
    %258 = vmatprep.subr.mxu0 0.0
    %259 = vmatpush1.msra.mxu0 0.0
    %260 = vmatprep.subr.mxu0 0.0
    %261 = vmatpush1.msra.mxu0 0.0
    %262 = vmatprep.subr.mxu0 0.0
    %263 = vmatpush1.msra.mxu0 0.0
    %264 = vmatprep.subr.mxu0 0.0
    %265 = vmatpush1.msra.mxu0 0.0
    %266 = vmatprep.subr.mxu0 0.0
    %267 = vmatpush1.msra.mxu0 0.0
    %268 = vmatprep.subr.mxu0 0.0
    %269 = vmatpush1.msra.mxu0 0.0
    %270 = vmatprep.subr.mxu0 0.0
    %271 = vmatpush1.msra.mxu0 0.0
    %272 = vmatprep.subr.mxu0 0.0
    %273 = vmatpush1.msra.mxu0 0.0
    %274 = vmatprep.subr.mxu0 0.0
    %275 = vmatpush1.msra.mxu0 0.0
    %276 = vmatprep.subr.mxu0 0.0
    %277 = vmatpush1.msra.mxu0 0.0
    %278 = vmatprep.subr.mxu0 0.0
    %279 = vmatpush1.msra.mxu0 0.0
    %280 = vmatprep.mubr.f32.mxu0 0.0
    %281 = vmatmul.mubr.f32.gmra.mrb[0].mxu0 %v214
    %v282 = vpop.f32.mrb[0].mxu0
    %v283 = vadd.f32 0.0, %v282
    %v284 = vpop.f32.mrb[0].mxu0
    %285 = vdwg.mxu0
    %v286 = vadd.f32 %v204, %v283
    %v287 = vtanh.pop %v286
    %v289 = vlaneseq
    %v290 = vshrl.u32 %v289, 7
    %v291 = vsub.s32 0, %v290
    %v292 = vrot.slane %v129, %v291
    %v295 = vsel %vm212, %v287, 0
    %297 = vmatprep.subr.mxu0 0.0
    %298 = vmatpush1.msra.mxu0 %v108
    %299 = vmatprep.subr.mxu0 0.0
    %300 = vmatpush1.msra.mxu0 %v109
    %301 = vmatprep.subr.mxu0 0.0
    %302 = vmatpush1.msra.mxu0 %v110
    %303 = vmatprep.subr.mxu0 0.0
    %304 = vmatpush1.msra.mxu0 %v111
    %305 = vmatprep.subr.mxu0 0.0
    %306 = vmatpush1.msra.mxu0 0.0
    %307 = vmatprep.subr.mxu0 0.0
    %308 = vmatpush1.msra.mxu0 0.0
    %309 = vmatprep.subr.mxu0 0.0
    %310 = vmatpush1.msra.mxu0 0.0
    %311 = vmatprep.subr.mxu0 0.0
    %312 = vmatpush1.msra.mxu0 0.0
    %313 = vmatprep.subr.mxu0 0.0
    %314 = vmatpush1.msra.mxu0 0.0
    %315 = vmatprep.subr.mxu0 0.0
    %316 = vmatpush1.msra.mxu0 0.0
    %317 = vmatprep.subr.mxu0 0.0
    %318 = vmatpush1.msra.mxu0 0.0
    %319 = vmatprep.subr.mxu0 0.0
    %320 = vmatpush1.msra.mxu0 0.0
    %321 = vmatprep.subr.mxu0 0.0
    %322 = vmatpush1.msra.mxu0 0.0
    %323 = vmatprep.subr.mxu0 0.0
    %324 = vmatpush1.msra.mxu0 0.0
    %325 = vmatprep.subr.mxu0 0.0
    %326 = vmatpush1.msra.mxu0 0.0
    %327 = vmatprep.subr.mxu0 0.0
    %328 = vmatpush1.msra.mxu0 0.0
    %329 = vmatprep.subr.mxu0 0.0
    %330 = vmatpush1.msra.mxu0 0.0
    %331 = vmatprep.subr.mxu0 0.0
    %332 = vmatpush1.msra.mxu0 0.0
    %333 = vmatprep.subr.mxu0 0.0
    %334 = vmatpush1.msra.mxu0 0.0
    %335 = vmatprep.subr.mxu0 0.0
    %336 = vmatpush1.msra.mxu0 0.0
    %337 = vmatprep.subr.mxu0 0.0
    %338 = vmatpush1.msra.mxu0 0.0
    %339 = vmatprep.subr.mxu0 0.0
    %340 = vmatpush1.msra.mxu0 0.0
    %341 = vmatprep.subr.mxu0 0.0
    %342 = vmatpush1.msra.mxu0 0.0
    %343 = vmatprep.subr.mxu0 0.0
    %344 = vmatpush1.msra.mxu0 0.0
    %345 = vmatprep.subr.mxu0 0.0
    %346 = vmatpush1.msra.mxu0 0.0
    %347 = vmatprep.subr.mxu0 0.0
    %348 = vmatpush1.msra.mxu0 0.0
    %349 = vmatprep.subr.mxu0 0.0
    %350 = vmatpush1.msra.mxu0 0.0
    %351 = vmatprep.subr.mxu0 0.0
    %352 = vmatpush1.msra.mxu0 0.0
    %353 = vmatprep.subr.mxu0 0.0
    %354 = vmatpush1.msra.mxu0 0.0
    %355 = vmatprep.subr.mxu0 0.0
    %356 = vmatpush1.msra.mxu0 0.0
    %357 = vmatprep.subr.mxu0 0.0
    %358 = vmatpush1.msra.mxu0 0.0
    %359 = vmatprep.subr.mxu0 0.0
    %360 = vmatpush1.msra.mxu0 0.0
    %361 = vmatprep.mubr.f32.mxu0 0.0
    %362 = vmatmul.mubr.f32.gmra.mrb[0].mxu0 %v295
    %v363 = vpop.f32.mrb[0].mxu0
    %v364 = vadd.f32 %v292, %v363
    %v365 = vpop.f32.mrb[0].mxu0
    %366 = vdwg.mxu0
    %367 = vmatprep.subr.mxu0 0.0
    %368 = vmatpush1.msra.mxu0 %v120
    %369 = vmatprep.subr.mxu0 0.0
    %370 = vmatpush1.msra.mxu0 %v121
    %371 = vmatprep.subr.mxu0 0.0
    %372 = vmatpush1.msra.mxu0 %v122
    %373 = vmatprep.subr.mxu0 0.0
    %374 = vmatpush1.msra.mxu0 %v123
    %375 = vmatprep.subr.mxu0 0.0
    %376 = vmatpush1.msra.mxu0 0.0
    %377 = vmatprep.subr.mxu0 0.0
    %378 = vmatpush1.msra.mxu0 0.0
    %379 = vmatprep.subr.mxu0 0.0
    %380 = vmatpush1.msra.mxu0 0.0
    %381 = vmatprep.subr.mxu0 0.0
    %382 = vmatpush1.msra.mxu0 0.0
    %383 = vmatprep.subr.mxu0 0.0
    %384 = vmatpush1.msra.mxu0 0.0
    %385 = vmatprep.subr.mxu0 0.0
    %386 = vmatpush1.msra.mxu0 0.0
    %387 = vmatprep.subr.mxu0 0.0
    %388 = vmatpush1.msra.mxu0 0.0
    %389 = vmatprep.subr.mxu0 0.0
    %390 = vmatpush1.msra.mxu0 0.0
    %391 = vmatprep.subr.mxu0 0.0
    %392 = vmatpush1.msra.mxu0 0.0
    %393 = vmatprep.subr.mxu0 0.0
    %394 = vmatpush1.msra.mxu0 0.0
    %395 = vmatprep.subr.mxu0 0.0
    %396 = vmatpush1.msra.mxu0 0.0
    %397 = vmatprep.subr.mxu0 0.0
    %398 = vmatpush1.msra.mxu0 0.0
    %399 = vmatprep.subr.mxu0 0.0
    %400 = vmatpush1.msra.mxu0 0.0
    %401 = vmatprep.subr.mxu0 0.0
    %402 = vmatpush1.msra.mxu0 0.0
    %403 = vmatprep.subr.mxu0 0.0
    %404 = vmatpush1.msra.mxu0 0.0
    %405 = vmatprep.subr.mxu0 0.0
    %406 = vmatpush1.msra.mxu0 0.0
    %407 = vmatprep.subr.mxu0 0.0
    %408 = vmatpush1.msra.mxu0 0.0
    %409 = vmatprep.subr.mxu0 0.0
    %410 = vmatpush1.msra.mxu0 0.0
    %411 = vmatprep.subr.mxu0 0.0
    %412 = vmatpush1.msra.mxu0 0.0
    %413 = vmatprep.subr.mxu0 0.0
    %414 = vmatpush1.msra.mxu0 0.0
    %415 = vmatprep.subr.mxu0 0.0
    %416 = vmatpush1.msra.mxu0 0.0
    %417 = vmatprep.subr.mxu0 0.0
    %418 = vmatpush1.msra.mxu0 0.0
    %419 = vmatprep.subr.mxu0 0.0
    %420 = vmatpush1.msra.mxu0 0.0
    %421 = vmatprep.subr.mxu0 0.0
    %422 = vmatpush1.msra.mxu0 0.0
    %423 = vmatprep.subr.mxu0 0.0
    %424 = vmatpush1.msra.mxu0 0.0
    %425 = vmatprep.subr.mxu0 0.0
    %426 = vmatpush1.msra.mxu0 0.0
    %427 = vmatprep.subr.mxu0 0.0
    %428 = vmatpush1.msra.mxu0 0.0
    %429 = vmatprep.subr.mxu0 0.0
    %430 = vmatpush1.msra.mxu0 0.0
    %431 = vmatprep.mubr.f32.mxu0 0.0
    %432 = vmatmul.mubr.f32.gmra.mrb[0].mxu0 %v214
    %v433 = vpop.f32.mrb[0].mxu0
    %v434 = vadd.f32 0.0, %v433
    %v435 = vpop.f32.mrb[0].mxu0
    %436 = vdwg.mxu0
    %v437 = vadd.f32 %v364, %v434
    %v438 = vtanh.pop %v437
    %439 = vmatprep.subr.mxu0 0.0
    %440 = vmatpush1.msra.mxu0 %v116
    %441 = vmatprep.subr.mxu0 0.0
    %442 = vmatpush1.msra.mxu0 %v117
    %443 = vmatprep.subr.mxu0 0.0
    %444 = vmatpush1.msra.mxu0 %v118
    %445 = vmatprep.subr.mxu0 0.0
    %446 = vmatpush1.msra.mxu0 %v119
    %447 = vmatprep.subr.mxu0 0.0
    %448 = vmatpush1.msra.mxu0 0.0
    %449 = vmatprep.subr.mxu0 0.0
    %450 = vmatpush1.msra.mxu0 0.0
    %451 = vmatprep.subr.mxu0 0.0
    %452 = vmatpush1.msra.mxu0 0.0
    %453 = vmatprep.subr.mxu0 0.0
    %454 = vmatpush1.msra.mxu0 0.0
    %455 = vmatprep.subr.mxu0 0.0
    %456 = vmatpush1.msra.mxu0 0.0
    %457 = vmatprep.subr.mxu0 0.0
    %458 = vmatpush1.msra.mxu0 0.0
    %459 = vmatprep.subr.mxu0 0.0
    %460 = vmatpush1.msra.mxu0 0.0
    %461 = vmatprep.subr.mxu0 0.0
    %462 = vmatpush1.msra.mxu0 0.0
    %463 = vmatprep.subr.mxu0 0.0
    %464 = vmatpush1.msra.mxu0 0.0
    %465 = vmatprep.subr.mxu0 0.0
    %466 = vmatpush1.msra.mxu0 0.0
    %467 = vmatprep.subr.mxu0 0.0
    %468 = vmatpush1.msra.mxu0 0.0
    %469 = vmatprep.subr.mxu0 0.0
    %470 = vmatpush1.msra.mxu0 0.0
    %471 = vmatprep.subr.mxu0 0.0
    %472 = vmatpush1.msra.mxu0 0.0
    %473 = vmatprep.subr.mxu0 0.0
    %474 = vmatpush1.msra.mxu0 0.0
    %475 = vmatprep.subr.mxu0 0.0
    %476 = vmatpush1.msra.mxu0 0.0
    %477 = vmatprep.subr.mxu0 0.0
    %478 = vmatpush1.msra.mxu0 0.0
    %479 = vmatprep.subr.mxu0 0.0
    %480 = vmatpush1.msra.mxu0 0.0
    %481 = vmatprep.subr.mxu0 0.0
    %482 = vmatpush1.msra.mxu0 0.0
    %483 = vmatprep.subr.mxu0 0.0
    %484 = vmatpush1.msra.mxu0 0.0
    %485 = vmatprep.subr.mxu0 0.0
    %486 = vmatpush1.msra.mxu0 0.0
    %487 = vmatprep.subr.mxu0 0.0
    %488 = vmatpush1.msra.mxu0 0.0
    %489 = vmatprep.subr.mxu0 0.0
    %490 = vmatpush1.msra.mxu0 0.0
    %491 = vmatprep.subr.mxu0 0.0
    %492 = vmatpush1.msra.mxu0 0.0
    %493 = vmatprep.subr.mxu0 0.0
    %494 = vmatpush1.msra.mxu0 0.0
    %495 = vmatprep.subr.mxu0 0.0
    %496 = vmatpush1.msra.mxu0 0.0
    %497 = vmatprep.subr.mxu0 0.0
    %498 = vmatpush1.msra.mxu0 0.0
    %499 = vmatprep.subr.mxu0 0.0
    %500 = vmatpush1.msra.mxu0 0.0
    %501 = vmatprep.subr.mxu0 0.0
    %502 = vmatpush1.msra.mxu0 0.0
    %503 = vmatprep.mubr.f32.mxu0 0.0
    %504 = vmatmul.mubr.f32.gmra.mrb[0].mxu0 %v295
    %v505 = vpop.f32.mrb[0].mxu0
    %v506 = vadd.f32 0.0, %v505
    %v507 = vpop.f32.mrb[0].mxu0
    %508 = vdwg.mxu0
    %v509 = vadd.f32 %v205, %v506
    %v510 = vtanh.pop %v509
    %v512 = vlaneseq
    %v513 = vshrl.u32 %v512, 7
    %v514 = vsub.s32 0, %v513
    %v515 = vrot.slane %v130, %v514
    %v518 = vsel %vm212, %v438, 0
    %520 = vmatprep.subr.mxu0 0.0
    %521 = vmatpush1.msra.mxu0 %v112
    %522 = vmatprep.subr.mxu0 0.0
    %523 = vmatpush1.msra.mxu0 %v113
    %524 = vmatprep.subr.mxu0 0.0
    %525 = vmatpush1.msra.mxu0 %v114
    %526 = vmatprep.subr.mxu0 0.0
    %527 = vmatpush1.msra.mxu0 %v115
    %528 = vmatprep.subr.mxu0 0.0
    %529 = vmatpush1.msra.mxu0 0.0
    %530 = vmatprep.subr.mxu0 0.0
    %531 = vmatpush1.msra.mxu0 0.0
    %532 = vmatprep.subr.mxu0 0.0
    %533 = vmatpush1.msra.mxu0 0.0
    %534 = vmatprep.subr.mxu0 0.0
    %535 = vmatpush1.msra.mxu0 0.0
    %536 = vmatprep.subr.mxu0 0.0
    %537 = vmatpush1.msra.mxu0 0.0
    %538 = vmatprep.subr.mxu0 0.0
    %539 = vmatpush1.msra.mxu0 0.0
    %540 = vmatprep.subr.mxu0 0.0
    %541 = vmatpush1.msra.mxu0 0.0
    %542 = vmatprep.subr.mxu0 0.0
    %543 = vmatpush1.msra.mxu0 0.0
    %544 = vmatprep.subr.mxu0 0.0
    %545 = vmatpush1.msra.mxu0 0.0
    %546 = vmatprep.subr.mxu0 0.0
    %547 = vmatpush1.msra.mxu0 0.0
    %548 = vmatprep.subr.mxu0 0.0
    %549 = vmatpush1.msra.mxu0 0.0
    %550 = vmatprep.subr.mxu0 0.0
    %551 = vmatpush1.msra.mxu0 0.0
    %552 = vmatprep.subr.mxu0 0.0
    %553 = vmatpush1.msra.mxu0 0.0
    %554 = vmatprep.subr.mxu0 0.0
    %555 = vmatpush1.msra.mxu0 0.0
    %556 = vmatprep.subr.mxu0 0.0
    %557 = vmatpush1.msra.mxu0 0.0
    %558 = vmatprep.subr.mxu0 0.0
    %559 = vmatpush1.msra.mxu0 0.0
    %560 = vmatprep.subr.mxu0 0.0
    %561 = vmatpush1.msra.mxu0 0.0
    %562 = vmatprep.subr.mxu0 0.0
    %563 = vmatpush1.msra.mxu0 0.0
    %564 = vmatprep.subr.mxu0 0.0
    %565 = vmatpush1.msra.mxu0 0.0
    %566 = vmatprep.subr.mxu0 0.0
    %567 = vmatpush1.msra.mxu0 0.0
    %568 = vmatprep.subr.mxu0 0.0
    %569 = vmatpush1.msra.mxu0 0.0
    %570 = vmatprep.subr.mxu0 0.0
    %571 = vmatpush1.msra.mxu0 0.0
    %572 = vmatprep.subr.mxu0 0.0
    %573 = vmatpush1.msra.mxu0 0.0
    %574 = vmatprep.subr.mxu0 0.0
    %575 = vmatpush1.msra.mxu0 0.0
    %576 = vmatprep.subr.mxu0 0.0
    %577 = vmatpush1.msra.mxu0 0.0
    %578 = vmatprep.subr.mxu0 0.0
    %579 = vmatpush1.msra.mxu0 0.0
    %580 = vmatprep.subr.mxu0 0.0
    %581 = vmatpush1.msra.mxu0 0.0
    %582 = vmatprep.subr.mxu0 0.0
    %583 = vmatpush1.msra.mxu0 0.0
    %584 = vmatprep.mubr.f32.mxu0 0.0
    %585 = vmatmul.mubr.f32.gmra.mrb[0].mxu0 %v518
    %v586 = vpop.f32.mrb[0].mxu0
    %v587 = vadd.f32 %v515, %v586
    %v588 = vpop.f32.mrb[0].mxu0
    %589 = vdwg.mxu0
    %590 = vmatprep.subr.mxu0 0.0
    %591 = vmatpush1.msra.mxu0 %v124
    %592 = vmatprep.subr.mxu0 0.0
    %593 = vmatpush1.msra.mxu0 %v125
    %594 = vmatprep.subr.mxu0 0.0
    %595 = vmatpush1.msra.mxu0 %v126
    %596 = vmatprep.subr.mxu0 0.0
    %597 = vmatpush1.msra.mxu0 %v127
    %598 = vmatprep.subr.mxu0 0.0
    %599 = vmatpush1.msra.mxu0 0.0
    %600 = vmatprep.subr.mxu0 0.0
    %601 = vmatpush1.msra.mxu0 0.0
    %602 = vmatprep.subr.mxu0 0.0
    %603 = vmatpush1.msra.mxu0 0.0
    %604 = vmatprep.subr.mxu0 0.0
    %605 = vmatpush1.msra.mxu0 0.0
    %606 = vmatprep.subr.mxu0 0.0
    %607 = vmatpush1.msra.mxu0 0.0
    %608 = vmatprep.subr.mxu0 0.0
    %609 = vmatpush1.msra.mxu0 0.0
    %610 = vmatprep.subr.mxu0 0.0
    %611 = vmatpush1.msra.mxu0 0.0
    %612 = vmatprep.subr.mxu0 0.0
    %613 = vmatpush1.msra.mxu0 0.0
    %614 = vmatprep.subr.mxu0 0.0
    %615 = vmatpush1.msra.mxu0 0.0
    %616 = vmatprep.subr.mxu0 0.0
    %617 = vmatpush1.msra.mxu0 0.0
    %618 = vmatprep.subr.mxu0 0.0
    %619 = vmatpush1.msra.mxu0 0.0
    %620 = vmatprep.subr.mxu0 0.0
    %621 = vmatpush1.msra.mxu0 0.0
    %622 = vmatprep.subr.mxu0 0.0
    %623 = vmatpush1.msra.mxu0 0.0
    %624 = vmatprep.subr.mxu0 0.0
    %625 = vmatpush1.msra.mxu0 0.0
    %626 = vmatprep.subr.mxu0 0.0
    %627 = vmatpush1.msra.mxu0 0.0
    %628 = vmatprep.subr.mxu0 0.0
    %629 = vmatpush1.msra.mxu0 0.0
    %630 = vmatprep.subr.mxu0 0.0
    %631 = vmatpush1.msra.mxu0 0.0
    %632 = vmatprep.subr.mxu0 0.0
    %633 = vmatpush1.msra.mxu0 0.0
    %634 = vmatprep.subr.mxu0 0.0
    %635 = vmatpush1.msra.mxu0 0.0
    %636 = vmatprep.subr.mxu0 0.0
    %637 = vmatpush1.msra.mxu0 0.0
    %638 = vmatprep.subr.mxu0 0.0
    %639 = vmatpush1.msra.mxu0 0.0
    %640 = vmatprep.subr.mxu0 0.0
    %641 = vmatpush1.msra.mxu0 0.0
    %642 = vmatprep.subr.mxu0 0.0
    %643 = vmatpush1.msra.mxu0 0.0
    %644 = vmatprep.subr.mxu0 0.0
    %645 = vmatpush1.msra.mxu0 0.0
    %646 = vmatprep.subr.mxu0 0.0
    %647 = vmatpush1.msra.mxu0 0.0
    %648 = vmatprep.subr.mxu0 0.0
    %649 = vmatpush1.msra.mxu0 0.0
    %650 = vmatprep.subr.mxu0 0.0
    %651 = vmatpush1.msra.mxu0 0.0
    %652 = vmatprep.subr.mxu0 0.0
    %653 = vmatpush1.msra.mxu0 0.0
    %654 = vmatprep.mubr.f32.mxu0 0.0
    %655 = vmatmul.mubr.f32.gmra.mrb[0].mxu0 %v214
    %v656 = vpop.f32.mrb[0].mxu0
    %v657 = vadd.f32 0.0, %v656
    %v658 = vpop.f32.mrb[0].mxu0
    %659 = vdwg.mxu0
    %v660 = vadd.f32 %v587, %v657
    %v661 = vtanh.pop %v660
    %v663 = vsel %vm212, %v510, 0
    %665 = vmatprep.subr.mxu0 0.0
    %666 = vmatpush1.msra.mxu0 %v108
    %667 = vmatprep.subr.mxu0 0.0
    %668 = vmatpush1.msra.mxu0 %v109
    %669 = vmatprep.subr.mxu0 0.0
    %670 = vmatpush1.msra.mxu0 %v110
    %671 = vmatprep.subr.mxu0 0.0
    %672 = vmatpush1.msra.mxu0 %v111
    %673 = vmatprep.subr.mxu0 0.0
    %674 = vmatpush1.msra.mxu0 0.0
    %675 = vmatprep.subr.mxu0 0.0
    %676 = vmatpush1.msra.mxu0 0.0
    %677 = vmatprep.subr.mxu0 0.0
    %678 = vmatpush1.msra.mxu0 0.0
    %679 = vmatprep.subr.mxu0 0.0
    %680 = vmatpush1.msra.mxu0 0.0
    %681 = vmatprep.subr.mxu0 0.0
    %682 = vmatpush1.msra.mxu0 0.0
    %683 = vmatprep.subr.mxu0 0.0
    %684 = vmatpush1.msra.mxu0 0.0
    %685 = vmatprep.subr.mxu0 0.0
    %686 = vmatpush1.msra.mxu0 0.0
    %687 = vmatprep.subr.mxu0 0.0
    %688 = vmatpush1.msra.mxu0 0.0
    %689 = vmatprep.subr.mxu0 0.0
    %690 = vmatpush1.msra.mxu0 0.0
    %691 = vmatprep.subr.mxu0 0.0
    %692 = vmatpush1.msra.mxu0 0.0
    %693 = vmatprep.subr.mxu0 0.0
    %694 = vmatpush1.msra.mxu0 0.0
    %695 = vmatprep.subr.mxu0 0.0
    %696 = vmatpush1.msra.mxu0 0.0
    %697 = vmatprep.subr.mxu0 0.0
    %698 = vmatpush1.msra.mxu0 0.0
    %699 = vmatprep.subr.mxu0 0.0
    %700 = vmatpush1.msra.mxu0 0.0
    %701 = vmatprep.subr.mxu0 0.0
    %702 = vmatpush1.msra.mxu0 0.0
    %703 = vmatprep.subr.mxu0 0.0
    %704 = vmatpush1.msra.mxu0 0.0
    %705 = vmatprep.subr.mxu0 0.0
    %706 = vmatpush1.msra.mxu0 0.0
    %707 = vmatprep.subr.mxu0 0.0
    %708 = vmatpush1.msra.mxu0 0.0
    %709 = vmatprep.subr.mxu0 0.0
    %710 = vmatpush1.msra.mxu0 0.0
    %711 = vmatprep.subr.mxu0 0.0
    %712 = vmatpush1.msra.mxu0 0.0
    %713 = vmatprep.subr.mxu0 0.0
    %714 = vmatpush1.msra.mxu0 0.0
    %715 = vmatprep.subr.mxu0 0.0
    %716 = vmatpush1.msra.mxu0 0.0
    %717 = vmatprep.subr.mxu0 0.0
    %718 = vmatpush1.msra.mxu0 0.0
    %719 = vmatprep.subr.mxu0 0.0
    %720 = vmatpush1.msra.mxu0 0.0
    %721 = vmatprep.subr.mxu0 0.0
    %722 = vmatpush1.msra.mxu0 0.0
    %723 = vmatprep.subr.mxu0 0.0
    %724 = vmatpush1.msra.mxu0 0.0
    %725 = vmatprep.subr.mxu0 0.0
    %726 = vmatpush1.msra.mxu0 0.0
    %727 = vmatprep.subr.mxu0 0.0
    %728 = vmatpush1.msra.mxu0 0.0
    %729 = vmatprep.mubr.f32.mxu0 0.0
    %730 = vmatmul.mubr.f32.gmra.mrb[0].mxu0 %v663
    %v731 = vpop.f32.mrb[0].mxu0
    %v732 = vadd.f32 %v292, %v731
    %v733 = vpop.f32.mrb[0].mxu0
    %734 = vdwg.mxu0
    %735 = vmatprep.subr.mxu0 0.0
    %736 = vmatpush1.msra.mxu0 %v120
    %737 = vmatprep.subr.mxu0 0.0
    %738 = vmatpush1.msra.mxu0 %v121
    %739 = vmatprep.subr.mxu0 0.0
    %740 = vmatpush1.msra.mxu0 %v122
    %741 = vmatprep.subr.mxu0 0.0
    %742 = vmatpush1.msra.mxu0 %v123
    %743 = vmatprep.subr.mxu0 0.0
    %744 = vmatpush1.msra.mxu0 0.0
    %745 = vmatprep.subr.mxu0 0.0
    %746 = vmatpush1.msra.mxu0 0.0
    %747 = vmatprep.subr.mxu0 0.0
    %748 = vmatpush1.msra.mxu0 0.0
    %749 = vmatprep.subr.mxu0 0.0
    %750 = vmatpush1.msra.mxu0 0.0
    %751 = vmatprep.subr.mxu0 0.0
    %752 = vmatpush1.msra.mxu0 0.0
    %753 = vmatprep.subr.mxu0 0.0
    %754 = vmatpush1.msra.mxu0 0.0
    %755 = vmatprep.subr.mxu0 0.0
    %756 = vmatpush1.msra.mxu0 0.0
    %757 = vmatprep.subr.mxu0 0.0
    %758 = vmatpush1.msra.mxu0 0.0
    %759 = vmatprep.subr.mxu0 0.0
    %760 = vmatpush1.msra.mxu0 0.0
    %761 = vmatprep.subr.mxu0 0.0
    %762 = vmatpush1.msra.mxu0 0.0
    %763 = vmatprep.subr.mxu0 0.0
    %764 = vmatpush1.msra.mxu0 0.0
    %765 = vmatprep.subr.mxu0 0.0
    %766 = vmatpush1.msra.mxu0 0.0
    %767 = vmatprep.subr.mxu0 0.0
    %768 = vmatpush1.msra.mxu0 0.0
    %769 = vmatprep.subr.mxu0 0.0
    %770 = vmatpush1.msra.mxu0 0.0
    %771 = vmatprep.subr.mxu0 0.0
    %772 = vmatpush1.msra.mxu0 0.0
    %773 = vmatprep.subr.mxu0 0.0
    %774 = vmatpush1.msra.mxu0 0.0
    %775 = vmatprep.subr.mxu0 0.0
    %776 = vmatpush1.msra.mxu0 0.0
    %777 = vmatprep.subr.mxu0 0.0
    %778 = vmatpush1.msra.mxu0 0.0
    %779 = vmatprep.subr.mxu0 0.0
    %780 = vmatpush1.msra.mxu0 0.0
    %781 = vmatprep.subr.mxu0 0.0
    %782 = vmatpush1.msra.mxu0 0.0
    %783 = vmatprep.subr.mxu0 0.0
    %784 = vmatpush1.msra.mxu0 0.0
    %785 = vmatprep.subr.mxu0 0.0
    %786 = vmatpush1.msra.mxu0 0.0
    %787 = vmatprep.subr.mxu0 0.0
    %788 = vmatpush1.msra.mxu0 0.0
    %789 = vmatprep.subr.mxu0 0.0
    %790 = vmatpush1.msra.mxu0 0.0
    %791 = vmatprep.subr.mxu0 0.0
    %792 = vmatpush1.msra.mxu0 0.0
    %793 = vmatprep.subr.mxu0 0.0
    %794 = vmatpush1.msra.mxu0 0.0
    %795 = vmatprep.subr.mxu0 0.0
    %796 = vmatpush1.msra.mxu0 0.0
    %797 = vmatprep.subr.mxu0 0.0
    %798 = vmatpush1.msra.mxu0 0.0
    %799 = vmatprep.mubr.f32.mxu0 0.0
    %800 = vmatmul.mubr.f32.gmra.mrb[0].mxu0 %v518
    %v801 = vpop.f32.mrb[0].mxu0
    %v802 = vadd.f32 0.0, %v801
    %v803 = vpop.f32.mrb[0].mxu0
    %804 = vdwg.mxu0
    %v805 = vadd.f32 %v732, %v802
    %v806 = vtanh.pop %v805
    %807 = vmatprep.subr.mxu0 0.0
    %808 = vmatpush1.msra.mxu0 %v116
    %809 = vmatprep.subr.mxu0 0.0
    %810 = vmatpush1.msra.mxu0 %v117
    %811 = vmatprep.subr.mxu0 0.0
    %812 = vmatpush1.msra.mxu0 %v118
    %813 = vmatprep.subr.mxu0 0.0
    %814 = vmatpush1.msra.mxu0 %v119
    %815 = vmatprep.subr.mxu0 0.0
    %816 = vmatpush1.msra.mxu0 0.0
    %817 = vmatprep.subr.mxu0 0.0
    %818 = vmatpush1.msra.mxu0 0.0
    %819 = vmatprep.subr.mxu0 0.0
    %820 = vmatpush1.msra.mxu0 0.0
    %821 = vmatprep.subr.mxu0 0.0
    %822 = vmatpush1.msra.mxu0 0.0
    %823 = vmatprep.subr.mxu0 0.0
    %824 = vmatpush1.msra.mxu0 0.0
    %825 = vmatprep.subr.mxu0 0.0
    %826 = vmatpush1.msra.mxu0 0.0
    %827 = vmatprep.subr.mxu0 0.0
    %828 = vmatpush1.msra.mxu0 0.0
    %829 = vmatprep.subr.mxu0 0.0
    %830 = vmatpush1.msra.mxu0 0.0
    %831 = vmatprep.subr.mxu0 0.0
    %832 = vmatpush1.msra.mxu0 0.0
    %833 = vmatprep.subr.mxu0 0.0
    %834 = vmatpush1.msra.mxu0 0.0
    %835 = vmatprep.subr.mxu0 0.0
    %836 = vmatpush1.msra.mxu0 0.0
    %837 = vmatprep.subr.mxu0 0.0
    %838 = vmatpush1.msra.mxu0 0.0
    %839 = vmatprep.subr.mxu0 0.0
    %840 = vmatpush1.msra.mxu0 0.0
    %841 = vmatprep.subr.mxu0 0.0
    %842 = vmatpush1.msra.mxu0 0.0
    %843 = vmatprep.subr.mxu0 0.0
    %844 = vmatpush1.msra.mxu0 0.0
    %845 = vmatprep.subr.mxu0 0.0
    %846 = vmatpush1.msra.mxu0 0.0
    %847 = vmatprep.subr.mxu0 0.0
    %848 = vmatpush1.msra.mxu0 0.0
    %849 = vmatprep.subr.mxu0 0.0
    %850 = vmatpush1.msra.mxu0 0.0
    %851 = vmatprep.subr.mxu0 0.0
    %852 = vmatpush1.msra.mxu0 0.0
    %853 = vmatprep.subr.mxu0 0.0
    %854 = vmatpush1.msra.mxu0 0.0
    %855 = vmatprep.subr.mxu0 0.0
    %856 = vmatpush1.msra.mxu0 0.0
    %857 = vmatprep.subr.mxu0 0.0
    %858 = vmatpush1.msra.mxu0 0.0
    %859 = vmatprep.subr.mxu0 0.0
    %860 = vmatpush1.msra.mxu0 0.0
    %861 = vmatprep.subr.mxu0 0.0
    %862 = vmatpush1.msra.mxu0 0.0
    %863 = vmatprep.subr.mxu0 0.0
    %864 = vmatpush1.msra.mxu0 0.0
    %865 = vmatprep.subr.mxu0 0.0
    %866 = vmatpush1.msra.mxu0 0.0
    %867 = vmatprep.subr.mxu0 0.0
    %868 = vmatpush1.msra.mxu0 0.0
    %869 = vmatprep.subr.mxu0 0.0
    %870 = vmatpush1.msra.mxu0 0.0
    %871 = vmatprep.mubr.f32.mxu0 0.0
    %872 = vmatmul.mubr.f32.gmra.mrb[0].mxu0 %v663
    %v873 = vpop.f32.mrb[0].mxu0
    %v874 = vadd.f32 0.0, %v873
    %v875 = vpop.f32.mrb[0].mxu0
    %876 = vdwg.mxu0
    %v877 = vadd.f32 %v206, %v874
    %v878 = vtanh.pop %v877
    %v880 = vsel %vm212, %v806, 0
    %882 = vmatprep.subr.mxu0 0.0
    %883 = vmatpush1.msra.mxu0 %v112
    %884 = vmatprep.subr.mxu0 0.0
    %885 = vmatpush1.msra.mxu0 %v113
    %886 = vmatprep.subr.mxu0 0.0
    %887 = vmatpush1.msra.mxu0 %v114
    %888 = vmatprep.subr.mxu0 0.0
    %889 = vmatpush1.msra.mxu0 %v115
    %890 = vmatprep.subr.mxu0 0.0
    %891 = vmatpush1.msra.mxu0 0.0
    %892 = vmatprep.subr.mxu0 0.0
    %893 = vmatpush1.msra.mxu0 0.0
    %894 = vmatprep.subr.mxu0 0.0
    %895 = vmatpush1.msra.mxu0 0.0
    %896 = vmatprep.subr.mxu0 0.0
    %897 = vmatpush1.msra.mxu0 0.0
    %898 = vmatprep.subr.mxu0 0.0
    %899 = vmatpush1.msra.mxu0 0.0
    %900 = vmatprep.subr.mxu0 0.0
    %901 = vmatpush1.msra.mxu0 0.0
    %902 = vmatprep.subr.mxu0 0.0
    %903 = vmatpush1.msra.mxu0 0.0
    %904 = vmatprep.subr.mxu0 0.0
    %905 = vmatpush1.msra.mxu0 0.0
    %906 = vmatprep.subr.mxu0 0.0
    %907 = vmatpush1.msra.mxu0 0.0
    %908 = vmatprep.subr.mxu0 0.0
    %909 = vmatpush1.msra.mxu0 0.0
    %910 = vmatprep.subr.mxu0 0.0
    %911 = vmatpush1.msra.mxu0 0.0
    %912 = vmatprep.subr.mxu0 0.0
    %913 = vmatpush1.msra.mxu0 0.0
    %914 = vmatprep.subr.mxu0 0.0
    %915 = vmatpush1.msra.mxu0 0.0
    %916 = vmatprep.subr.mxu0 0.0
    %917 = vmatpush1.msra.mxu0 0.0
    %918 = vmatprep.subr.mxu0 0.0
    %919 = vmatpush1.msra.mxu0 0.0
    %920 = vmatprep.subr.mxu0 0.0
    %921 = vmatpush1.msra.mxu0 0.0
    %922 = vmatprep.subr.mxu0 0.0
    %923 = vmatpush1.msra.mxu0 0.0
    %924 = vmatprep.subr.mxu0 0.0
    %925 = vmatpush1.msra.mxu0 0.0
    %926 = vmatprep.subr.mxu0 0.0
    %927 = vmatpush1.msra.mxu0 0.0
    %928 = vmatprep.subr.mxu0 0.0
    %929 = vmatpush1.msra.mxu0 0.0
    %930 = vmatprep.subr.mxu0 0.0
    %931 = vmatpush1.msra.mxu0 0.0
    %932 = vmatprep.subr.mxu0 0.0
    %933 = vmatpush1.msra.mxu0 0.0
    %934 = vmatprep.subr.mxu0 0.0
    %935 = vmatpush1.msra.mxu0 0.0
    %936 = vmatprep.subr.mxu0 0.0
    %937 = vmatpush1.msra.mxu0 0.0
    %938 = vmatprep.subr.mxu0 0.0
    %939 = vmatpush1.msra.mxu0 0.0
    %940 = vmatprep.subr.mxu0 0.0
    %941 = vmatpush1.msra.mxu0 0.0
    %942 = vmatprep.subr.mxu0 0.0
    %943 = vmatpush1.msra.mxu0 0.0
    %944 = vmatprep.subr.mxu0 0.0
    %945 = vmatpush1.msra.mxu0 0.0
    %946 = vmatprep.mubr.f32.mxu0 0.0
    %947 = vmatmul.mubr.f32.gmra.mrb[0].mxu0 %v880
    %v948 = vpop.f32.mrb[0].mxu0
    %v949 = vadd.f32 %v515, %v948
    %v950 = vpop.f32.mrb[0].mxu0
    %951 = vdwg.mxu0
    %v953 = vsel %vm212, %v661, 0
    %955 = vmatprep.subr.mxu0 0.0
    %956 = vmatpush1.msra.mxu0 %v124
    %957 = vmatprep.subr.mxu0 0.0
    %958 = vmatpush1.msra.mxu0 %v125
    %959 = vmatprep.subr.mxu0 0.0
    %960 = vmatpush1.msra.mxu0 %v126
    %961 = vmatprep.subr.mxu0 0.0
    %962 = vmatpush1.msra.mxu0 %v127
    %963 = vmatprep.subr.mxu0 0.0
    %964 = vmatpush1.msra.mxu0 0.0
    %965 = vmatprep.subr.mxu0 0.0
    %966 = vmatpush1.msra.mxu0 0.0
    %967 = vmatprep.subr.mxu0 0.0
    %968 = vmatpush1.msra.mxu0 0.0
    %969 = vmatprep.subr.mxu0 0.0
    %970 = vmatpush1.msra.mxu0 0.0
    %971 = vmatprep.subr.mxu0 0.0
    %972 = vmatpush1.msra.mxu0 0.0
    %973 = vmatprep.subr.mxu0 0.0
    %974 = vmatpush1.msra.mxu0 0.0
    %975 = vmatprep.subr.mxu0 0.0
    %976 = vmatpush1.msra.mxu0 0.0
    %977 = vmatprep.subr.mxu0 0.0
    %978 = vmatpush1.msra.mxu0 0.0
    %979 = vmatprep.subr.mxu0 0.0
    %980 = vmatpush1.msra.mxu0 0.0
    %981 = vmatprep.subr.mxu0 0.0
    %982 = vmatpush1.msra.mxu0 0.0
    %983 = vmatprep.subr.mxu0 0.0
    %984 = vmatpush1.msra.mxu0 0.0
    %985 = vmatprep.subr.mxu0 0.0
    %986 = vmatpush1.msra.mxu0 0.0
    %987 = vmatprep.subr.mxu0 0.0
    %988 = vmatpush1.msra.mxu0 0.0
    %989 = vmatprep.subr.mxu0 0.0
    %990 = vmatpush1.msra.mxu0 0.0
    %991 = vmatprep.subr.mxu0 0.0
    %992 = vmatpush1.msra.mxu0 0.0
    %993 = vmatprep.subr.mxu0 0.0
    %994 = vmatpush1.msra.mxu0 0.0
    %995 = vmatprep.subr.mxu0 0.0
    %996 = vmatpush1.msra.mxu0 0.0
    %997 = vmatprep.subr.mxu0 0.0
    %998 = vmatpush1.msra.mxu0 0.0
    %999 = vmatprep.subr.mxu0 0.0
    %1000 = vmatpush1.msra.mxu0 0.0
    %1001 = vmatprep.subr.mxu0 0.0
    %1002 = vmatpush1.msra.mxu0 0.0
    %1003 = vmatprep.subr.mxu0 0.0
    %1004 = vmatpush1.msra.mxu0 0.0
    %1005 = vmatprep.subr.mxu0 0.0
    %1006 = vmatpush1.msra.mxu0 0.0
    %1007 = vmatprep.subr.mxu0 0.0
    %1008 = vmatpush1.msra.mxu0 0.0
    %1009 = vmatprep.subr.mxu0 0.0
    %1010 = vmatpush1.msra.mxu0 0.0
    %1011 = vmatprep.subr.mxu0 0.0
    %1012 = vmatpush1.msra.mxu0 0.0
    %1013 = vmatprep.subr.mxu0 0.0
    %1014 = vmatpush1.msra.mxu0 0.0
    %1015 = vmatprep.subr.mxu0 0.0
    %1016 = vmatpush1.msra.mxu0 0.0
    %1017 = vmatprep.subr.mxu0 0.0
    %1018 = vmatpush1.msra.mxu0 0.0
    %1019 = vmatprep.mubr.f32.mxu0 0.0
    %1020 = vmatmul.mubr.f32.gmra.mrb[0].mxu0 %v953
    %v1021 = vpop.f32.mrb[0].mxu0
    %v1022 = vadd.f32 0.0, %v1021
    %v1023 = vpop.f32.mrb[0].mxu0
    %1024 = vdwg.mxu0
    %v1025 = vadd.f32 %v949, %v1022
    %v1026 = vtanh.pop %v1025
    %v1028 = vsel %vm212, %v878, 0
    %1030 = vmatprep.subr.mxu0 0.0
    %1031 = vmatpush1.msra.mxu0 %v108
    %1032 = vmatprep.subr.mxu0 0.0
    %1033 = vmatpush1.msra.mxu0 %v109
    %1034 = vmatprep.subr.mxu0 0.0
    %1035 = vmatpush1.msra.mxu0 %v110
    %1036 = vmatprep.subr.mxu0 0.0
    %1037 = vmatpush1.msra.mxu0 %v111
    %1038 = vmatprep.subr.mxu0 0.0
    %1039 = vmatpush1.msra.mxu0 0.0
    %1040 = vmatprep.subr.mxu0 0.0
    %1041 = vmatpush1.msra.mxu0 0.0
    %1042 = vmatprep.subr.mxu0 0.0
    %1043 = vmatpush1.msra.mxu0 0.0
    %1044 = vmatprep.subr.mxu0 0.0
    %1045 = vmatpush1.msra.mxu0 0.0
    %1046 = vmatprep.subr.mxu0 0.0
    %1047 = vmatpush1.msra.mxu0 0.0
    %1048 = vmatprep.subr.mxu0 0.0
    %1049 = vmatpush1.msra.mxu0 0.0
    %1050 = vmatprep.subr.mxu0 0.0
    %1051 = vmatpush1.msra.mxu0 0.0
    %1052 = vmatprep.subr.mxu0 0.0
    %1053 = vmatpush1.msra.mxu0 0.0
    %1054 = vmatprep.subr.mxu0 0.0
    %1055 = vmatpush1.msra.mxu0 0.0
    %1056 = vmatprep.subr.mxu0 0.0
    %1057 = vmatpush1.msra.mxu0 0.0
    %1058 = vmatprep.subr.mxu0 0.0
    %1059 = vmatpush1.msra.mxu0 0.0
    %1060 = vmatprep.subr.mxu0 0.0
    %1061 = vmatpush1.msra.mxu0 0.0
    %1062 = vmatprep.subr.mxu0 0.0
    %1063 = vmatpush1.msra.mxu0 0.0
    %1064 = vmatprep.subr.mxu0 0.0
    %1065 = vmatpush1.msra.mxu0 0.0
    %1066 = vmatprep.subr.mxu0 0.0
    %1067 = vmatpush1.msra.mxu0 0.0
    %1068 = vmatprep.subr.mxu0 0.0
    %1069 = vmatpush1.msra.mxu0 0.0
    %1070 = vmatprep.subr.mxu0 0.0
    %1071 = vmatpush1.msra.mxu0 0.0
    %1072 = vmatprep.subr.mxu0 0.0
    %1073 = vmatpush1.msra.mxu0 0.0
    %1074 = vmatprep.subr.mxu0 0.0
    %1075 = vmatpush1.msra.mxu0 0.0
    %1076 = vmatprep.subr.mxu0 0.0
    %1077 = vmatpush1.msra.mxu0 0.0
    %1078 = vmatprep.subr.mxu0 0.0
    %1079 = vmatpush1.msra.mxu0 0.0
    %1080 = vmatprep.subr.mxu0 0.0
    %1081 = vmatpush1.msra.mxu0 0.0
    %1082 = vmatprep.subr.mxu0 0.0
    %1083 = vmatpush1.msra.mxu0 0.0
    %1084 = vmatprep.subr.mxu0 0.0
    %1085 = vmatpush1.msra.mxu0 0.0
    %1086 = vmatprep.subr.mxu0 0.0
    %1087 = vmatpush1.msra.mxu0 0.0
    %1088 = vmatprep.subr.mxu0 0.0
    %1089 = vmatpush1.msra.mxu0 0.0
    %1090 = vmatprep.subr.mxu0 0.0
    %1091 = vmatpush1.msra.mxu0 0.0
    %1092 = vmatprep.subr.mxu0 0.0
    %1093 = vmatpush1.msra.mxu0 0.0
    %1094 = vmatprep.mubr.f32.mxu0 0.0
    %1095 = vmatmul.mubr.f32.gmra.mrb[0].mxu0 %v1028
    %v1096 = vpop.f32.mrb[0].mxu0
    %v1097 = vadd.f32 %v292, %v1096
    %v1098 = vpop.f32.mrb[0].mxu0
    %1099 = vdwg.mxu0
    %1100 = vmatprep.subr.mxu0 0.0
    %1101 = vmatpush1.msra.mxu0 %v120
    %1102 = vmatprep.subr.mxu0 0.0
    %1103 = vmatpush1.msra.mxu0 %v121
    %1104 = vmatprep.subr.mxu0 0.0
    %1105 = vmatpush1.msra.mxu0 %v122
    %1106 = vmatprep.subr.mxu0 0.0
    %1107 = vmatpush1.msra.mxu0 %v123
    %1108 = vmatprep.subr.mxu0 0.0
    %1109 = vmatpush1.msra.mxu0 0.0
    %1110 = vmatprep.subr.mxu0 0.0
    %1111 = vmatpush1.msra.mxu0 0.0
    %1112 = vmatprep.subr.mxu0 0.0
    %1113 = vmatpush1.msra.mxu0 0.0
    %1114 = vmatprep.subr.mxu0 0.0
    %1115 = vmatpush1.msra.mxu0 0.0
    %1116 = vmatprep.subr.mxu0 0.0
    %1117 = vmatpush1.msra.mxu0 0.0
    %1118 = vmatprep.subr.mxu0 0.0
    %1119 = vmatpush1.msra.mxu0 0.0
    %1120 = vmatprep.subr.mxu0 0.0
    %1121 = vmatpush1.msra.mxu0 0.0
    %1122 = vmatprep.subr.mxu0 0.0
    %1123 = vmatpush1.msra.mxu0 0.0
    %1124 = vmatprep.subr.mxu0 0.0
    %1125 = vmatpush1.msra.mxu0 0.0
    %1126 = vmatprep.subr.mxu0 0.0
    %1127 = vmatpush1.msra.mxu0 0.0
    %1128 = vmatprep.subr.mxu0 0.0
    %1129 = vmatpush1.msra.mxu0 0.0
    %1130 = vmatprep.subr.mxu0 0.0
    %1131 = vmatpush1.msra.mxu0 0.0
    %1132 = vmatprep.subr.mxu0 0.0
    %1133 = vmatpush1.msra.mxu0 0.0
    %1134 = vmatprep.subr.mxu0 0.0
    %1135 = vmatpush1.msra.mxu0 0.0
    %1136 = vmatprep.subr.mxu0 0.0
    %1137 = vmatpush1.msra.mxu0 0.0
    %1138 = vmatprep.subr.mxu0 0.0
    %1139 = vmatpush1.msra.mxu0 0.0
    %1140 = vmatprep.subr.mxu0 0.0
    %1141 = vmatpush1.msra.mxu0 0.0
    %1142 = vmatprep.subr.mxu0 0.0
    %1143 = vmatpush1.msra.mxu0 0.0
    %1144 = vmatprep.subr.mxu0 0.0
    %1145 = vmatpush1.msra.mxu0 0.0
    %1146 = vmatprep.subr.mxu0 0.0
    %1147 = vmatpush1.msra.mxu0 0.0
    %1148 = vmatprep.subr.mxu0 0.0
    %1149 = vmatpush1.msra.mxu0 0.0
    %1150 = vmatprep.subr.mxu0 0.0
    %1151 = vmatpush1.msra.mxu0 0.0
    %1152 = vmatprep.subr.mxu0 0.0
    %1153 = vmatpush1.msra.mxu0 0.0
    %1154 = vmatprep.subr.mxu0 0.0
    %1155 = vmatpush1.msra.mxu0 0.0
    %1156 = vmatprep.subr.mxu0 0.0
    %1157 = vmatpush1.msra.mxu0 0.0
    %1158 = vmatprep.subr.mxu0 0.0
    %1159 = vmatpush1.msra.mxu0 0.0
    %1160 = vmatprep.subr.mxu0 0.0
    %1161 = vmatpush1.msra.mxu0 0.0
    %1162 = vmatprep.subr.mxu0 0.0
    %1163 = vmatpush1.msra.mxu0 0.0
    %1164 = vmatprep.mubr.f32.mxu0 0.0
    %1165 = vmatmul.mubr.f32.gmra.mrb[0].mxu0 %v880
    %v1166 = vpop.f32.mrb[0].mxu0
    %v1167 = vadd.f32 0.0, %v1166
    %v1168 = vpop.f32.mrb[0].mxu0
    %1169 = vdwg.mxu0
    %v1170 = vadd.f32 %v1097, %v1167
    %v1171 = vtanh.pop %v1170
    %1172 = vmatprep.subr.mxu0 0.0
    %1173 = vmatpush1.msra.mxu0 %v116
    %1174 = vmatprep.subr.mxu0 0.0
    %1175 = vmatpush1.msra.mxu0 %v117
    %1176 = vmatprep.subr.mxu0 0.0
    %1177 = vmatpush1.msra.mxu0 %v118
    %1178 = vmatprep.subr.mxu0 0.0
    %1179 = vmatpush1.msra.mxu0 %v119
    %1180 = vmatprep.subr.mxu0 0.0
    %1181 = vmatpush1.msra.mxu0 0.0
    %1182 = vmatprep.subr.mxu0 0.0
    %1183 = vmatpush1.msra.mxu0 0.0
    %1184 = vmatprep.subr.mxu0 0.0
    %1185 = vmatpush1.msra.mxu0 0.0
    %1186 = vmatprep.subr.mxu0 0.0
    %1187 = vmatpush1.msra.mxu0 0.0
    %1188 = vmatprep.subr.mxu0 0.0
    %1189 = vmatpush1.msra.mxu0 0.0
    %1190 = vmatprep.subr.mxu0 0.0
    %1191 = vmatpush1.msra.mxu0 0.0
    %1192 = vmatprep.subr.mxu0 0.0
    %1193 = vmatpush1.msra.mxu0 0.0
    %1194 = vmatprep.subr.mxu0 0.0
    %1195 = vmatpush1.msra.mxu0 0.0
    %1196 = vmatprep.subr.mxu0 0.0
    %1197 = vmatpush1.msra.mxu0 0.0
    %1198 = vmatprep.subr.mxu0 0.0
    %1199 = vmatpush1.msra.mxu0 0.0
    %1200 = vmatprep.subr.mxu0 0.0
    %1201 = vmatpush1.msra.mxu0 0.0
    %1202 = vmatprep.subr.mxu0 0.0
    %1203 = vmatpush1.msra.mxu0 0.0
    %1204 = vmatprep.subr.mxu0 0.0
    %1205 = vmatpush1.msra.mxu0 0.0
    %1206 = vmatprep.subr.mxu0 0.0
    %1207 = vmatpush1.msra.mxu0 0.0
    %1208 = vmatprep.subr.mxu0 0.0
    %1209 = vmatpush1.msra.mxu0 0.0
    %1210 = vmatprep.subr.mxu0 0.0
    %1211 = vmatpush1.msra.mxu0 0.0
    %1212 = vmatprep.subr.mxu0 0.0
    %1213 = vmatpush1.msra.mxu0 0.0
    %1214 = vmatprep.subr.mxu0 0.0
    %1215 = vmatpush1.msra.mxu0 0.0
    %1216 = vmatprep.subr.mxu0 0.0
    %1217 = vmatpush1.msra.mxu0 0.0
    %1218 = vmatprep.subr.mxu0 0.0
    %1219 = vmatpush1.msra.mxu0 0.0
    %1220 = vmatprep.subr.mxu0 0.0
    %1221 = vmatpush1.msra.mxu0 0.0
    %1222 = vmatprep.subr.mxu0 0.0
    %1223 = vmatpush1.msra.mxu0 0.0
    %1224 = vmatprep.subr.mxu0 0.0
    %1225 = vmatpush1.msra.mxu0 0.0
    %1226 = vmatprep.subr.mxu0 0.0
    %1227 = vmatpush1.msra.mxu0 0.0
    %1228 = vmatprep.subr.mxu0 0.0
    %1229 = vmatpush1.msra.mxu0 0.0
    %1230 = vmatprep.subr.mxu0 0.0
    %1231 = vmatpush1.msra.mxu0 0.0
    %1232 = vmatprep.subr.mxu0 0.0
    %1233 = vmatpush1.msra.mxu0 0.0
    %1234 = vmatprep.subr.mxu0 0.0
    %1235 = vmatpush1.msra.mxu0 0.0
    %1236 = vmatprep.mubr.f32.mxu0 0.0
    %1237 = vmatmul.mubr.f32.gmra.mrb[0].mxu0 %v1028
    %v1238 = vpop.f32.mrb[0].mxu0
    %v1239 = vadd.f32 0.0, %v1238
    %v1240 = vpop.f32.mrb[0].mxu0
    %1241 = vdwg.mxu0
    %v1242 = vadd.f32 %v207, %v1239
    %v1243 = vtanh.pop %v1242
    %v1245 = vsel %vm212, %v1171, 0
    %1247 = vmatprep.subr.mxu0 0.0
    %1248 = vmatpush1.msra.mxu0 %v112
    %1249 = vmatprep.subr.mxu0 0.0
    %1250 = vmatpush1.msra.mxu0 %v113
    %1251 = vmatprep.subr.mxu0 0.0
    %1252 = vmatpush1.msra.mxu0 %v114
    %1253 = vmatprep.subr.mxu0 0.0
    %1254 = vmatpush1.msra.mxu0 %v115
    %1255 = vmatprep.subr.mxu0 0.0
    %1256 = vmatpush1.msra.mxu0 0.0
    %1257 = vmatprep.subr.mxu0 0.0
    %1258 = vmatpush1.msra.mxu0 0.0
    %1259 = vmatprep.subr.mxu0 0.0
    %1260 = vmatpush1.msra.mxu0 0.0
    %1261 = vmatprep.subr.mxu0 0.0
    %1262 = vmatpush1.msra.mxu0 0.0
    %1263 = vmatprep.subr.mxu0 0.0
    %1264 = vmatpush1.msra.mxu0 0.0
    %1265 = vmatprep.subr.mxu0 0.0
    %1266 = vmatpush1.msra.mxu0 0.0
    %1267 = vmatprep.subr.mxu0 0.0
    %1268 = vmatpush1.msra.mxu0 0.0
    %1269 = vmatprep.subr.mxu0 0.0
    %1270 = vmatpush1.msra.mxu0 0.0
    %1271 = vmatprep.subr.mxu0 0.0
    %1272 = vmatpush1.msra.mxu0 0.0
    %1273 = vmatprep.subr.mxu0 0.0
    %1274 = vmatpush1.msra.mxu0 0.0
    %1275 = vmatprep.subr.mxu0 0.0
    %1276 = vmatpush1.msra.mxu0 0.0
    %1277 = vmatprep.subr.mxu0 0.0
    %1278 = vmatpush1.msra.mxu0 0.0
    %1279 = vmatprep.subr.mxu0 0.0
    %1280 = vmatpush1.msra.mxu0 0.0
    %1281 = vmatprep.subr.mxu0 0.0
    %1282 = vmatpush1.msra.mxu0 0.0
    %1283 = vmatprep.subr.mxu0 0.0
    %1284 = vmatpush1.msra.mxu0 0.0
    %1285 = vmatprep.subr.mxu0 0.0
    %1286 = vmatpush1.msra.mxu0 0.0
    %1287 = vmatprep.subr.mxu0 0.0
    %1288 = vmatpush1.msra.mxu0 0.0
    %1289 = vmatprep.subr.mxu0 0.0
    %1290 = vmatpush1.msra.mxu0 0.0
    %1291 = vmatprep.subr.mxu0 0.0
    %1292 = vmatpush1.msra.mxu0 0.0
    %1293 = vmatprep.subr.mxu0 0.0
    %1294 = vmatpush1.msra.mxu0 0.0
    %1295 = vmatprep.subr.mxu0 0.0
    %1296 = vmatpush1.msra.mxu0 0.0
    %1297 = vmatprep.subr.mxu0 0.0
    %1298 = vmatpush1.msra.mxu0 0.0
    %1299 = vmatprep.subr.mxu0 0.0
    %1300 = vmatpush1.msra.mxu0 0.0
    %1301 = vmatprep.subr.mxu0 0.0
    %1302 = vmatpush1.msra.mxu0 0.0
    %1303 = vmatprep.subr.mxu0 0.0
    %1304 = vmatpush1.msra.mxu0 0.0
    %1305 = vmatprep.subr.mxu0 0.0
    %1306 = vmatpush1.msra.mxu0 0.0
    %1307 = vmatprep.subr.mxu0 0.0
    %1308 = vmatpush1.msra.mxu0 0.0
    %1309 = vmatprep.subr.mxu0 0.0
    %1310 = vmatpush1.msra.mxu0 0.0
    %1311 = vmatprep.mubr.f32.mxu0 0.0
    %1312 = vmatmul.mubr.f32.gmra.mrb[0].mxu0 %v1245
    %v1313 = vpop.f32.mrb[0].mxu0
    %v1314 = vadd.f32 %v515, %v1313
    %v1315 = vpop.f32.mrb[0].mxu0
    %1316 = vdwg.mxu0
    %v1318 = vsel %vm212, %v1026, 0
    %1320 = vmatprep.subr.mxu0 0.0
    %1321 = vmatpush1.msra.mxu0 %v124
    %1322 = vmatprep.subr.mxu0 0.0
    %1323 = vmatpush1.msra.mxu0 %v125
    %1324 = vmatprep.subr.mxu0 0.0
    %1325 = vmatpush1.msra.mxu0 %v126
    %1326 = vmatprep.subr.mxu0 0.0
    %1327 = vmatpush1.msra.mxu0 %v127
    %1328 = vmatprep.subr.mxu0 0.0
    %1329 = vmatpush1.msra.mxu0 0.0
    %1330 = vmatprep.subr.mxu0 0.0
    %1331 = vmatpush1.msra.mxu0 0.0
    %1332 = vmatprep.subr.mxu0 0.0
    %1333 = vmatpush1.msra.mxu0 0.0
    %1334 = vmatprep.subr.mxu0 0.0
    %1335 = vmatpush1.msra.mxu0 0.0
    %1336 = vmatprep.subr.mxu0 0.0
    %1337 = vmatpush1.msra.mxu0 0.0
    %1338 = vmatprep.subr.mxu0 0.0
    %1339 = vmatpush1.msra.mxu0 0.0
    %1340 = vmatprep.subr.mxu0 0.0
    %1341 = vmatpush1.msra.mxu0 0.0
    %1342 = vmatprep.subr.mxu0 0.0
    %1343 = vmatpush1.msra.mxu0 0.0
    %1344 = vmatprep.subr.mxu0 0.0
    %1345 = vmatpush1.msra.mxu0 0.0
    %1346 = vmatprep.subr.mxu0 0.0
    %1347 = vmatpush1.msra.mxu0 0.0
    %1348 = vmatprep.subr.mxu0 0.0
    %1349 = vmatpush1.msra.mxu0 0.0
    %1350 = vmatprep.subr.mxu0 0.0
    %1351 = vmatpush1.msra.mxu0 0.0
    %1352 = vmatprep.subr.mxu0 0.0
    %1353 = vmatpush1.msra.mxu0 0.0
    %1354 = vmatprep.subr.mxu0 0.0
    %1355 = vmatpush1.msra.mxu0 0.0
    %1356 = vmatprep.subr.mxu0 0.0
    %1357 = vmatpush1.msra.mxu0 0.0
    %1358 = vmatprep.subr.mxu0 0.0
    %1359 = vmatpush1.msra.mxu0 0.0
    %1360 = vmatprep.subr.mxu0 0.0
    %1361 = vmatpush1.msra.mxu0 0.0
    %1362 = vmatprep.subr.mxu0 0.0
    %1363 = vmatpush1.msra.mxu0 0.0
    %1364 = vmatprep.subr.mxu0 0.0
    %1365 = vmatpush1.msra.mxu0 0.0
    %1366 = vmatprep.subr.mxu0 0.0
    %1367 = vmatpush1.msra.mxu0 0.0
    %1368 = vmatprep.subr.mxu0 0.0
    %1369 = vmatpush1.msra.mxu0 0.0
    %1370 = vmatprep.subr.mxu0 0.0
    %1371 = vmatpush1.msra.mxu0 0.0
    %1372 = vmatprep.subr.mxu0 0.0
    %1373 = vmatpush1.msra.mxu0 0.0
    %1374 = vmatprep.subr.mxu0 0.0
    %1375 = vmatpush1.msra.mxu0 0.0
    %1376 = vmatprep.subr.mxu0 0.0
    %1377 = vmatpush1.msra.mxu0 0.0
    %1378 = vmatprep.subr.mxu0 0.0
    %1379 = vmatpush1.msra.mxu0 0.0
    %1380 = vmatprep.subr.mxu0 0.0
    %1381 = vmatpush1.msra.mxu0 0.0
    %1382 = vmatprep.subr.mxu0 0.0
    %1383 = vmatpush1.msra.mxu0 0.0
    %1384 = vmatprep.mubr.f32.mxu0 0.0
    %1385 = vmatmul.mubr.f32.gmra.mrb[0].mxu0 %v1318
    %v1386 = vpop.f32.mrb[0].mxu0
    %v1387 = vadd.f32 0.0, %v1386
    %v1388 = vpop.f32.mrb[0].mxu0
    %1389 = vdwg.mxu0
    %v1390 = vadd.f32 %v1314, %v1387
    %v1391 = vtanh.pop %v1390
    %v1393 = vsel %vm212, %v1243, 0
    %1395 = vmatprep.subr.mxu0 0.0
    %1396 = vmatpush1.msra.mxu0 %v108
    %1397 = vmatprep.subr.mxu0 0.0
    %1398 = vmatpush1.msra.mxu0 %v109
    %1399 = vmatprep.subr.mxu0 0.0
    %1400 = vmatpush1.msra.mxu0 %v110
    %1401 = vmatprep.subr.mxu0 0.0
    %1402 = vmatpush1.msra.mxu0 %v111
    %1403 = vmatprep.subr.mxu0 0.0
    %1404 = vmatpush1.msra.mxu0 0.0
    %1405 = vmatprep.subr.mxu0 0.0
    %1406 = vmatpush1.msra.mxu0 0.0
    %1407 = vmatprep.subr.mxu0 0.0
    %1408 = vmatpush1.msra.mxu0 0.0
    %1409 = vmatprep.subr.mxu0 0.0
    %1410 = vmatpush1.msra.mxu0 0.0
    %1411 = vmatprep.subr.mxu0 0.0
    %1412 = vmatpush1.msra.mxu0 0.0
    %1413 = vmatprep.subr.mxu0 0.0
    %1414 = vmatpush1.msra.mxu0 0.0
    %1415 = vmatprep.subr.mxu0 0.0
    %1416 = vmatpush1.msra.mxu0 0.0
    %1417 = vmatprep.subr.mxu0 0.0
    %1418 = vmatpush1.msra.mxu0 0.0
    %1419 = vmatprep.subr.mxu0 0.0
    %1420 = vmatpush1.msra.mxu0 0.0
    %1421 = vmatprep.subr.mxu0 0.0
    %1422 = vmatpush1.msra.mxu0 0.0
    %1423 = vmatprep.subr.mxu0 0.0
    %1424 = vmatpush1.msra.mxu0 0.0
    %1425 = vmatprep.subr.mxu0 0.0
    %1426 = vmatpush1.msra.mxu0 0.0
    %1427 = vmatprep.subr.mxu0 0.0
    %1428 = vmatpush1.msra.mxu0 0.0
    %1429 = vmatprep.subr.mxu0 0.0
    %1430 = vmatpush1.msra.mxu0 0.0
    %1431 = vmatprep.subr.mxu0 0.0
    %1432 = vmatpush1.msra.mxu0 0.0
    %1433 = vmatprep.subr.mxu0 0.0
    %1434 = vmatpush1.msra.mxu0 0.0
    %1435 = vmatprep.subr.mxu0 0.0
    %1436 = vmatpush1.msra.mxu0 0.0
    %1437 = vmatprep.subr.mxu0 0.0
    %1438 = vmatpush1.msra.mxu0 0.0
    %1439 = vmatprep.subr.mxu0 0.0
    %1440 = vmatpush1.msra.mxu0 0.0
    %1441 = vmatprep.subr.mxu0 0.0
    %1442 = vmatpush1.msra.mxu0 0.0
    %1443 = vmatprep.subr.mxu0 0.0
    %1444 = vmatpush1.msra.mxu0 0.0
    %1445 = vmatprep.subr.mxu0 0.0
    %1446 = vmatpush1.msra.mxu0 0.0
    %1447 = vmatprep.subr.mxu0 0.0
    %1448 = vmatpush1.msra.mxu0 0.0
    %1449 = vmatprep.subr.mxu0 0.0
    %1450 = vmatpush1.msra.mxu0 0.0
    %1451 = vmatprep.subr.mxu0 0.0
    %1452 = vmatpush1.msra.mxu0 0.0
    %1453 = vmatprep.subr.mxu0 0.0
    %1454 = vmatpush1.msra.mxu0 0.0
    %1455 = vmatprep.subr.mxu0 0.0
    %1456 = vmatpush1.msra.mxu0 0.0
    %1457 = vmatprep.subr.mxu0 0.0
    %1458 = vmatpush1.msra.mxu0 0.0
    %1459 = vmatprep.mubr.f32.mxu0 0.0
    %1460 = vmatmul.mubr.f32.gmra.mrb[0].mxu0 %v1393
    %v1461 = vpop.f32.mrb[0].mxu0
    %v1462 = vadd.f32 %v292, %v1461
    %v1463 = vpop.f32.mrb[0].mxu0
    %1464 = vdwg.mxu0
    %1465 = vmatprep.subr.mxu0 0.0
    %1466 = vmatpush1.msra.mxu0 %v120
    %1467 = vmatprep.subr.mxu0 0.0
    %1468 = vmatpush1.msra.mxu0 %v121
    %1469 = vmatprep.subr.mxu0 0.0
    %1470 = vmatpush1.msra.mxu0 %v122
    %1471 = vmatprep.subr.mxu0 0.0
    %1472 = vmatpush1.msra.mxu0 %v123
    %1473 = vmatprep.subr.mxu0 0.0
    %1474 = vmatpush1.msra.mxu0 0.0
    %1475 = vmatprep.subr.mxu0 0.0
    %1476 = vmatpush1.msra.mxu0 0.0
    %1477 = vmatprep.subr.mxu0 0.0
    %1478 = vmatpush1.msra.mxu0 0.0
    %1479 = vmatprep.subr.mxu0 0.0
    %1480 = vmatpush1.msra.mxu0 0.0
    %1481 = vmatprep.subr.mxu0 0.0
    %1482 = vmatpush1.msra.mxu0 0.0
    %1483 = vmatprep.subr.mxu0 0.0
    %1484 = vmatpush1.msra.mxu0 0.0
    %1485 = vmatprep.subr.mxu0 0.0
    %1486 = vmatpush1.msra.mxu0 0.0
    %1487 = vmatprep.subr.mxu0 0.0
    %1488 = vmatpush1.msra.mxu0 0.0
    %1489 = vmatprep.subr.mxu0 0.0
    %1490 = vmatpush1.msra.mxu0 0.0
    %1491 = vmatprep.subr.mxu0 0.0
    %1492 = vmatpush1.msra.mxu0 0.0
    %1493 = vmatprep.subr.mxu0 0.0
    %1494 = vmatpush1.msra.mxu0 0.0
    %1495 = vmatprep.subr.mxu0 0.0
    %1496 = vmatpush1.msra.mxu0 0.0
    %1497 = vmatprep.subr.mxu0 0.0
    %1498 = vmatpush1.msra.mxu0 0.0
    %1499 = vmatprep.subr.mxu0 0.0
    %1500 = vmatpush1.msra.mxu0 0.0
    %1501 = vmatprep.subr.mxu0 0.0
    %1502 = vmatpush1.msra.mxu0 0.0
    %1503 = vmatprep.subr.mxu0 0.0
    %1504 = vmatpush1.msra.mxu0 0.0
    %1505 = vmatprep.subr.mxu0 0.0
    %1506 = vmatpush1.msra.mxu0 0.0
    %1507 = vmatprep.subr.mxu0 0.0
    %1508 = vmatpush1.msra.mxu0 0.0
    %1509 = vmatprep.subr.mxu0 0.0
    %1510 = vmatpush1.msra.mxu0 0.0
    %1511 = vmatprep.subr.mxu0 0.0
    %1512 = vmatpush1.msra.mxu0 0.0
    %1513 = vmatprep.subr.mxu0 0.0
    %1514 = vmatpush1.msra.mxu0 0.0
    %1515 = vmatprep.subr.mxu0 0.0
    %1516 = vmatpush1.msra.mxu0 0.0
    %1517 = vmatprep.subr.mxu0 0.0
    %1518 = vmatpush1.msra.mxu0 0.0
    %1519 = vmatprep.subr.mxu0 0.0
    %1520 = vmatpush1.msra.mxu0 0.0
    %1521 = vmatprep.subr.mxu0 0.0
    %1522 = vmatpush1.msra.mxu0 0.0
    %1523 = vmatprep.subr.mxu0 0.0
    %1524 = vmatpush1.msra.mxu0 0.0
    %1525 = vmatprep.subr.mxu0 0.0
    %1526 = vmatpush1.msra.mxu0 0.0
    %1527 = vmatprep.subr.mxu0 0.0
    %1528 = vmatpush1.msra.mxu0 0.0
    %1529 = vmatprep.mubr.f32.mxu0 0.0
    %1530 = vmatmul.mubr.f32.gmra.mrb[0].mxu0 %v1245
    %v1531 = vpop.f32.mrb[0].mxu0
    %v1532 = vadd.f32 0.0, %v1531
    %v1533 = vpop.f32.mrb[0].mxu0
    %1534 = vdwg.mxu0
    %v1535 = vadd.f32 %v1462, %v1532
    %v1536 = vtanh.pop %v1535
    %1537 = vmatprep.subr.mxu0 0.0
    %1538 = vmatpush1.msra.mxu0 %v116
    %1539 = vmatprep.subr.mxu0 0.0
    %1540 = vmatpush1.msra.mxu0 %v117
    %1541 = vmatprep.subr.mxu0 0.0
    %1542 = vmatpush1.msra.mxu0 %v118
    %1543 = vmatprep.subr.mxu0 0.0
    %1544 = vmatpush1.msra.mxu0 %v119
    %1545 = vmatprep.subr.mxu0 0.0
    %1546 = vmatpush1.msra.mxu0 0.0
    %1547 = vmatprep.subr.mxu0 0.0
    %1548 = vmatpush1.msra.mxu0 0.0
    %1549 = vmatprep.subr.mxu0 0.0
    %1550 = vmatpush1.msra.mxu0 0.0
    %1551 = vmatprep.subr.mxu0 0.0
    %1552 = vmatpush1.msra.mxu0 0.0
    %1553 = vmatprep.subr.mxu0 0.0
    %1554 = vmatpush1.msra.mxu0 0.0
    %1555 = vmatprep.subr.mxu0 0.0
    %1556 = vmatpush1.msra.mxu0 0.0
    %1557 = vmatprep.subr.mxu0 0.0
    %1558 = vmatpush1.msra.mxu0 0.0
    %1559 = vmatprep.subr.mxu0 0.0
    %1560 = vmatpush1.msra.mxu0 0.0
    %1561 = vmatprep.subr.mxu0 0.0
    %1562 = vmatpush1.msra.mxu0 0.0
    %1563 = vmatprep.subr.mxu0 0.0
    %1564 = vmatpush1.msra.mxu0 0.0
    %1565 = vmatprep.subr.mxu0 0.0
    %1566 = vmatpush1.msra.mxu0 0.0
    %1567 = vmatprep.subr.mxu0 0.0
    %1568 = vmatpush1.msra.mxu0 0.0
    %1569 = vmatprep.subr.mxu0 0.0
    %1570 = vmatpush1.msra.mxu0 0.0
    %1571 = vmatprep.subr.mxu0 0.0
    %1572 = vmatpush1.msra.mxu0 0.0
    %1573 = vmatprep.subr.mxu0 0.0
    %1574 = vmatpush1.msra.mxu0 0.0
    %1575 = vmatprep.subr.mxu0 0.0
    %1576 = vmatpush1.msra.mxu0 0.0
    %1577 = vmatprep.subr.mxu0 0.0
    %1578 = vmatpush1.msra.mxu0 0.0
    %1579 = vmatprep.subr.mxu0 0.0
    %1580 = vmatpush1.msra.mxu0 0.0
    %1581 = vmatprep.subr.mxu0 0.0
    %1582 = vmatpush1.msra.mxu0 0.0
    %1583 = vmatprep.subr.mxu0 0.0
    %1584 = vmatpush1.msra.mxu0 0.0
    %1585 = vmatprep.subr.mxu0 0.0
    %1586 = vmatpush1.msra.mxu0 0.0
    %1587 = vmatprep.subr.mxu0 0.0
    %1588 = vmatpush1.msra.mxu0 0.0
    %1589 = vmatprep.subr.mxu0 0.0
    %1590 = vmatpush1.msra.mxu0 0.0
    %1591 = vmatprep.subr.mxu0 0.0
    %1592 = vmatpush1.msra.mxu0 0.0
    %1593 = vmatprep.subr.mxu0 0.0
    %1594 = vmatpush1.msra.mxu0 0.0
    %1595 = vmatprep.subr.mxu0 0.0
    %1596 = vmatpush1.msra.mxu0 0.0
    %1597 = vmatprep.subr.mxu0 0.0
    %1598 = vmatpush1.msra.mxu0 0.0
    %1599 = vmatprep.subr.mxu0 0.0
    %1600 = vmatpush1.msra.mxu0 0.0
    %1601 = vmatprep.mubr.f32.mxu0 0.0
    %1602 = vmatmul.mubr.f32.gmra.mrb[0].mxu0 %v1393
    %v1603 = vpop.f32.mrb[0].mxu0
    %v1604 = vadd.f32 0.0, %v1603
    %v1605 = vpop.f32.mrb[0].mxu0
    %1606 = vdwg.mxu0
    %v1607 = vadd.f32 %v208, %v1604
    %v1608 = vtanh.pop %v1607
    %v1610 = vsel %vm212, %v1536, 0
    %1612 = vmatprep.subr.mxu0 0.0
    %1613 = vmatpush1.msra.mxu0 %v112
    %1614 = vmatprep.subr.mxu0 0.0
    %1615 = vmatpush1.msra.mxu0 %v113
    %1616 = vmatprep.subr.mxu0 0.0
    %1617 = vmatpush1.msra.mxu0 %v114
    %1618 = vmatprep.subr.mxu0 0.0
    %1619 = vmatpush1.msra.mxu0 %v115
    %1620 = vmatprep.subr.mxu0 0.0
    %1621 = vmatpush1.msra.mxu0 0.0
    %1622 = vmatprep.subr.mxu0 0.0
    %1623 = vmatpush1.msra.mxu0 0.0
    %1624 = vmatprep.subr.mxu0 0.0
    %1625 = vmatpush1.msra.mxu0 0.0
    %1626 = vmatprep.subr.mxu0 0.0
    %1627 = vmatpush1.msra.mxu0 0.0
    %1628 = vmatprep.subr.mxu0 0.0
    %1629 = vmatpush1.msra.mxu0 0.0
    %1630 = vmatprep.subr.mxu0 0.0
    %1631 = vmatpush1.msra.mxu0 0.0
    %1632 = vmatprep.subr.mxu0 0.0
    %1633 = vmatpush1.msra.mxu0 0.0
    %1634 = vmatprep.subr.mxu0 0.0
    %1635 = vmatpush1.msra.mxu0 0.0
    %1636 = vmatprep.subr.mxu0 0.0
    %1637 = vmatpush1.msra.mxu0 0.0
    %1638 = vmatprep.subr.mxu0 0.0
    %1639 = vmatpush1.msra.mxu0 0.0
    %1640 = vmatprep.subr.mxu0 0.0
    %1641 = vmatpush1.msra.mxu0 0.0
    %1642 = vmatprep.subr.mxu0 0.0
    %1643 = vmatpush1.msra.mxu0 0.0
    %1644 = vmatprep.subr.mxu0 0.0
    %1645 = vmatpush1.msra.mxu0 0.0
    %1646 = vmatprep.subr.mxu0 0.0
    %1647 = vmatpush1.msra.mxu0 0.0
    %1648 = vmatprep.subr.mxu0 0.0
    %1649 = vmatpush1.msra.mxu0 0.0
    %1650 = vmatprep.subr.mxu0 0.0
    %1651 = vmatpush1.msra.mxu0 0.0
    %1652 = vmatprep.subr.mxu0 0.0
    %1653 = vmatpush1.msra.mxu0 0.0
    %1654 = vmatprep.subr.mxu0 0.0
    %1655 = vmatpush1.msra.mxu0 0.0
    %1656 = vmatprep.subr.mxu0 0.0
    %1657 = vmatpush1.msra.mxu0 0.0
    %1658 = vmatprep.subr.mxu0 0.0
    %1659 = vmatpush1.msra.mxu0 0.0
    %1660 = vmatprep.subr.mxu0 0.0
    %1661 = vmatpush1.msra.mxu0 0.0
    %1662 = vmatprep.subr.mxu0 0.0
    %1663 = vmatpush1.msra.mxu0 0.0
    %1664 = vmatprep.subr.mxu0 0.0
    %1665 = vmatpush1.msra.mxu0 0.0
    %1666 = vmatprep.subr.mxu0 0.0
    %1667 = vmatpush1.msra.mxu0 0.0
    %1668 = vmatprep.subr.mxu0 0.0
    %1669 = vmatpush1.msra.mxu0 0.0
    %1670 = vmatprep.subr.mxu0 0.0
    %1671 = vmatpush1.msra.mxu0 0.0
    %1672 = vmatprep.subr.mxu0 0.0
    %1673 = vmatpush1.msra.mxu0 0.0
    %1674 = vmatprep.subr.mxu0 0.0
    %1675 = vmatpush1.msra.mxu0 0.0
    %1676 = vmatprep.mubr.f32.mxu0 0.0
    %1677 = vmatmul.mubr.f32.gmra.mrb[0].mxu0 %v1610
    %v1678 = vpop.f32.mrb[0].mxu0
    %v1679 = vadd.f32 %v515, %v1678
    %v1680 = vpop.f32.mrb[0].mxu0
    %1681 = vdwg.mxu0
    %v1683 = vsel %vm212, %v1391, 0
    %1685 = vmatprep.subr.mxu0 0.0
    %1686 = vmatpush1.msra.mxu0 %v124
    %1687 = vmatprep.subr.mxu0 0.0
    %1688 = vmatpush1.msra.mxu0 %v125
    %1689 = vmatprep.subr.mxu0 0.0
    %1690 = vmatpush1.msra.mxu0 %v126
    %1691 = vmatprep.subr.mxu0 0.0
    %1692 = vmatpush1.msra.mxu0 %v127
    %1693 = vmatprep.subr.mxu0 0.0
    %1694 = vmatpush1.msra.mxu0 0.0
    %1695 = vmatprep.subr.mxu0 0.0
    %1696 = vmatpush1.msra.mxu0 0.0
    %1697 = vmatprep.subr.mxu0 0.0
    %1698 = vmatpush1.msra.mxu0 0.0
    %1699 = vmatprep.subr.mxu0 0.0
    %1700 = vmatpush1.msra.mxu0 0.0
    %1701 = vmatprep.subr.mxu0 0.0
    %1702 = vmatpush1.msra.mxu0 0.0
    %1703 = vmatprep.subr.mxu0 0.0
    %1704 = vmatpush1.msra.mxu0 0.0
    %1705 = vmatprep.subr.mxu0 0.0
    %1706 = vmatpush1.msra.mxu0 0.0
    %1707 = vmatprep.subr.mxu0 0.0
    %1708 = vmatpush1.msra.mxu0 0.0
    %1709 = vmatprep.subr.mxu0 0.0
    %1710 = vmatpush1.msra.mxu0 0.0
    %1711 = vmatprep.subr.mxu0 0.0
    %1712 = vmatpush1.msra.mxu0 0.0
    %1713 = vmatprep.subr.mxu0 0.0
    %1714 = vmatpush1.msra.mxu0 0.0
    %1715 = vmatprep.subr.mxu0 0.0
    %1716 = vmatpush1.msra.mxu0 0.0
    %1717 = vmatprep.subr.mxu0 0.0
    %1718 = vmatpush1.msra.mxu0 0.0
    %1719 = vmatprep.subr.mxu0 0.0
    %1720 = vmatpush1.msra.mxu0 0.0
    %1721 = vmatprep.subr.mxu0 0.0
    %1722 = vmatpush1.msra.mxu0 0.0
    %1723 = vmatprep.subr.mxu0 0.0
    %1724 = vmatpush1.msra.mxu0 0.0
    %1725 = vmatprep.subr.mxu0 0.0
    %1726 = vmatpush1.msra.mxu0 0.0
    %1727 = vmatprep.subr.mxu0 0.0
    %1728 = vmatpush1.msra.mxu0 0.0
    %1729 = vmatprep.subr.mxu0 0.0
    %1730 = vmatpush1.msra.mxu0 0.0
    %1731 = vmatprep.subr.mxu0 0.0
    %1732 = vmatpush1.msra.mxu0 0.0
    %1733 = vmatprep.subr.mxu0 0.0
    %1734 = vmatpush1.msra.mxu0 0.0
    %1735 = vmatprep.subr.mxu0 0.0
    %1736 = vmatpush1.msra.mxu0 0.0
    %1737 = vmatprep.subr.mxu0 0.0
    %1738 = vmatpush1.msra.mxu0 0.0
    %1739 = vmatprep.subr.mxu0 0.0
    %1740 = vmatpush1.msra.mxu0 0.0
    %1741 = vmatprep.subr.mxu0 0.0
    %1742 = vmatpush1.msra.mxu0 0.0
    %1743 = vmatprep.subr.mxu0 0.0
    %1744 = vmatpush1.msra.mxu0 0.0
    %1745 = vmatprep.subr.mxu0 0.0
    %1746 = vmatpush1.msra.mxu0 0.0
    %1747 = vmatprep.subr.mxu0 0.0
    %1748 = vmatpush1.msra.mxu0 0.0
    %1749 = vmatprep.mubr.f32.mxu0 0.0
    %1750 = vmatmul.mubr.f32.gmra.mrb[0].mxu0 %v1683
    %v1751 = vpop.f32.mrb[0].mxu0
    %v1752 = vadd.f32 0.0, %v1751
    %v1753 = vpop.f32.mrb[0].mxu0
    %1754 = vdwg.mxu0
    %v1755 = vadd.f32 %v1679, %v1752
    %v1756 = vtanh.pop %v1755
    %v1758 = vsel %vm212, %v1608, 0
    %1760 = vmatprep.subr.mxu0 0.0
    %1761 = vmatpush1.msra.mxu0 %v108
    %1762 = vmatprep.subr.mxu0 0.0
    %1763 = vmatpush1.msra.mxu0 %v109
    %1764 = vmatprep.subr.mxu0 0.0
    %1765 = vmatpush1.msra.mxu0 %v110
    %1766 = vmatprep.subr.mxu0 0.0
    %1767 = vmatpush1.msra.mxu0 %v111
    %1768 = vmatprep.subr.mxu0 0.0
    %1769 = vmatpush1.msra.mxu0 0.0
    %1770 = vmatprep.subr.mxu0 0.0
    %1771 = vmatpush1.msra.mxu0 0.0
    %1772 = vmatprep.subr.mxu0 0.0
    %1773 = vmatpush1.msra.mxu0 0.0
    %1774 = vmatprep.subr.mxu0 0.0
    %1775 = vmatpush1.msra.mxu0 0.0
    %1776 = vmatprep.subr.mxu0 0.0
    %1777 = vmatpush1.msra.mxu0 0.0
    %1778 = vmatprep.subr.mxu0 0.0
    %1779 = vmatpush1.msra.mxu0 0.0
    %1780 = vmatprep.subr.mxu0 0.0
    %1781 = vmatpush1.msra.mxu0 0.0
    %1782 = vmatprep.subr.mxu0 0.0
    %1783 = vmatpush1.msra.mxu0 0.0
    %1784 = vmatprep.subr.mxu0 0.0
    %1785 = vmatpush1.msra.mxu0 0.0
    %1786 = vmatprep.subr.mxu0 0.0
    %1787 = vmatpush1.msra.mxu0 0.0
    %1788 = vmatprep.subr.mxu0 0.0
    %1789 = vmatpush1.msra.mxu0 0.0
    %1790 = vmatprep.subr.mxu0 0.0
    %1791 = vmatpush1.msra.mxu0 0.0
    %1792 = vmatprep.subr.mxu0 0.0
    %1793 = vmatpush1.msra.mxu0 0.0
    %1794 = vmatprep.subr.mxu0 0.0
    %1795 = vmatpush1.msra.mxu0 0.0
    %1796 = vmatprep.subr.mxu0 0.0
    %1797 = vmatpush1.msra.mxu0 0.0
    %1798 = vmatprep.subr.mxu0 0.0
    %1799 = vmatpush1.msra.mxu0 0.0
    %1800 = vmatprep.subr.mxu0 0.0
    %1801 = vmatpush1.msra.mxu0 0.0
    %1802 = vmatprep.subr.mxu0 0.0
    %1803 = vmatpush1.msra.mxu0 0.0
    %1804 = vmatprep.subr.mxu0 0.0
    %1805 = vmatpush1.msra.mxu0 0.0
    %1806 = vmatprep.subr.mxu0 0.0
    %1807 = vmatpush1.msra.mxu0 0.0
    %1808 = vmatprep.subr.mxu0 0.0
    %1809 = vmatpush1.msra.mxu0 0.0
    %1810 = vmatprep.subr.mxu0 0.0
    %1811 = vmatpush1.msra.mxu0 0.0
    %1812 = vmatprep.subr.mxu0 0.0
    %1813 = vmatpush1.msra.mxu0 0.0
    %1814 = vmatprep.subr.mxu0 0.0
    %1815 = vmatpush1.msra.mxu0 0.0
    %1816 = vmatprep.subr.mxu0 0.0
    %1817 = vmatpush1.msra.mxu0 0.0
    %1818 = vmatprep.subr.mxu0 0.0
    %1819 = vmatpush1.msra.mxu0 0.0
    %1820 = vmatprep.subr.mxu0 0.0
    %1821 = vmatpush1.msra.mxu0 0.0
    %1822 = vmatprep.subr.mxu0 0.0
    %1823 = vmatpush1.msra.mxu0 0.0
    %1824 = vmatprep.mubr.f32.mxu0 0.0
    %1825 = vmatmul.mubr.f32.gmra.mrb[0].mxu0 %v1758
    %v1826 = vpop.f32.mrb[0].mxu0
    %v1827 = vadd.f32 %v292, %v1826
    %v1828 = vpop.f32.mrb[0].mxu0
    %1829 = vdwg.mxu0
    %1830 = vmatprep.subr.mxu0 0.0
    %1831 = vmatpush1.msra.mxu0 %v120
    %1832 = vmatprep.subr.mxu0 0.0
    %1833 = vmatpush1.msra.mxu0 %v121
    %1834 = vmatprep.subr.mxu0 0.0
    %1835 = vmatpush1.msra.mxu0 %v122
    %1836 = vmatprep.subr.mxu0 0.0
    %1837 = vmatpush1.msra.mxu0 %v123
    %1838 = vmatprep.subr.mxu0 0.0
    %1839 = vmatpush1.msra.mxu0 0.0
    %1840 = vmatprep.subr.mxu0 0.0
    %1841 = vmatpush1.msra.mxu0 0.0
    %1842 = vmatprep.subr.mxu0 0.0
    %1843 = vmatpush1.msra.mxu0 0.0
    %1844 = vmatprep.subr.mxu0 0.0
    %1845 = vmatpush1.msra.mxu0 0.0
    %1846 = vmatprep.subr.mxu0 0.0
    %1847 = vmatpush1.msra.mxu0 0.0
    %1848 = vmatprep.subr.mxu0 0.0
    %1849 = vmatpush1.msra.mxu0 0.0
    %1850 = vmatprep.subr.mxu0 0.0
    %1851 = vmatpush1.msra.mxu0 0.0
    %1852 = vmatprep.subr.mxu0 0.0
    %1853 = vmatpush1.msra.mxu0 0.0
    %1854 = vmatprep.subr.mxu0 0.0
    %1855 = vmatpush1.msra.mxu0 0.0
    %1856 = vmatprep.subr.mxu0 0.0
    %1857 = vmatpush1.msra.mxu0 0.0
    %1858 = vmatprep.subr.mxu0 0.0
    %1859 = vmatpush1.msra.mxu0 0.0
    %1860 = vmatprep.subr.mxu0 0.0
    %1861 = vmatpush1.msra.mxu0 0.0
    %1862 = vmatprep.subr.mxu0 0.0
    %1863 = vmatpush1.msra.mxu0 0.0
    %1864 = vmatprep.subr.mxu0 0.0
    %1865 = vmatpush1.msra.mxu0 0.0
    %1866 = vmatprep.subr.mxu0 0.0
    %1867 = vmatpush1.msra.mxu0 0.0
    %1868 = vmatprep.subr.mxu0 0.0
    %1869 = vmatpush1.msra.mxu0 0.0
    %1870 = vmatprep.subr.mxu0 0.0
    %1871 = vmatpush1.msra.mxu0 0.0
    %1872 = vmatprep.subr.mxu0 0.0
    %1873 = vmatpush1.msra.mxu0 0.0
    %1874 = vmatprep.subr.mxu0 0.0
    %1875 = vmatpush1.msra.mxu0 0.0
    %1876 = vmatprep.subr.mxu0 0.0
    %1877 = vmatpush1.msra.mxu0 0.0
    %1878 = vmatprep.subr.mxu0 0.0
    %1879 = vmatpush1.msra.mxu0 0.0
    %1880 = vmatprep.subr.mxu0 0.0
    %1881 = vmatpush1.msra.mxu0 0.0
    %1882 = vmatprep.subr.mxu0 0.0
    %1883 = vmatpush1.msra.mxu0 0.0
    %1884 = vmatprep.subr.mxu0 0.0
    %1885 = vmatpush1.msra.mxu0 0.0
    %1886 = vmatprep.subr.mxu0 0.0
    %1887 = vmatpush1.msra.mxu0 0.0
    %1888 = vmatprep.subr.mxu0 0.0
    %1889 = vmatpush1.msra.mxu0 0.0
    %1890 = vmatprep.subr.mxu0 0.0
    %1891 = vmatpush1.msra.mxu0 0.0
    %1892 = vmatprep.subr.mxu0 0.0
    %1893 = vmatpush1.msra.mxu0 0.0
    %1894 = vmatprep.mubr.f32.mxu0 0.0
    %1895 = vmatmul.mubr.f32.gmra.mrb[0].mxu0 %v1610
    %v1896 = vpop.f32.mrb[0].mxu0
    %v1897 = vadd.f32 0.0, %v1896
    %v1898 = vpop.f32.mrb[0].mxu0
    %1899 = vdwg.mxu0
    %v1900 = vadd.f32 %v1827, %v1897
    %v1901 = vtanh.pop %v1900
    %1902 = vmatprep.subr.mxu0 0.0
    %1903 = vmatpush1.msra.mxu0 %v116
    %1904 = vmatprep.subr.mxu0 0.0
    %1905 = vmatpush1.msra.mxu0 %v117
    %1906 = vmatprep.subr.mxu0 0.0
    %1907 = vmatpush1.msra.mxu0 %v118
    %1908 = vmatprep.subr.mxu0 0.0
    %1909 = vmatpush1.msra.mxu0 %v119
    %1910 = vmatprep.subr.mxu0 0.0
    %1911 = vmatpush1.msra.mxu0 0.0
    %1912 = vmatprep.subr.mxu0 0.0
    %1913 = vmatpush1.msra.mxu0 0.0
    %1914 = vmatprep.subr.mxu0 0.0
    %1915 = vmatpush1.msra.mxu0 0.0
    %1916 = vmatprep.subr.mxu0 0.0
    %1917 = vmatpush1.msra.mxu0 0.0
    %1918 = vmatprep.subr.mxu0 0.0
    %1919 = vmatpush1.msra.mxu0 0.0
    %1920 = vmatprep.subr.mxu0 0.0
    %1921 = vmatpush1.msra.mxu0 0.0
    %1922 = vmatprep.subr.mxu0 0.0
    %1923 = vmatpush1.msra.mxu0 0.0
    %1924 = vmatprep.subr.mxu0 0.0
    %1925 = vmatpush1.msra.mxu0 0.0
    %1926 = vmatprep.subr.mxu0 0.0
    %1927 = vmatpush1.msra.mxu0 0.0
    %1928 = vmatprep.subr.mxu0 0.0
    %1929 = vmatpush1.msra.mxu0 0.0
    %1930 = vmatprep.subr.mxu0 0.0
    %1931 = vmatpush1.msra.mxu0 0.0
    %1932 = vmatprep.subr.mxu0 0.0
    %1933 = vmatpush1.msra.mxu0 0.0
    %1934 = vmatprep.subr.mxu0 0.0
    %1935 = vmatpush1.msra.mxu0 0.0
    %1936 = vmatprep.subr.mxu0 0.0
    %1937 = vmatpush1.msra.mxu0 0.0
    %1938 = vmatprep.subr.mxu0 0.0
    %1939 = vmatpush1.msra.mxu0 0.0
    %1940 = vmatprep.subr.mxu0 0.0
    %1941 = vmatpush1.msra.mxu0 0.0
    %1942 = vmatprep.subr.mxu0 0.0
    %1943 = vmatpush1.msra.mxu0 0.0
    %1944 = vmatprep.subr.mxu0 0.0
    %1945 = vmatpush1.msra.mxu0 0.0
    %1946 = vmatprep.subr.mxu0 0.0
    %1947 = vmatpush1.msra.mxu0 0.0
    %1948 = vmatprep.subr.mxu0 0.0
    %1949 = vmatpush1.msra.mxu0 0.0
    %1950 = vmatprep.subr.mxu0 0.0
    %1951 = vmatpush1.msra.mxu0 0.0
    %1952 = vmatprep.subr.mxu0 0.0
    %1953 = vmatpush1.msra.mxu0 0.0
    %1954 = vmatprep.subr.mxu0 0.0
    %1955 = vmatpush1.msra.mxu0 0.0
    %1956 = vmatprep.subr.mxu0 0.0
    %1957 = vmatpush1.msra.mxu0 0.0
    %1958 = vmatprep.subr.mxu0 0.0
    %1959 = vmatpush1.msra.mxu0 0.0
    %1960 = vmatprep.subr.mxu0 0.0
    %1961 = vmatpush1.msra.mxu0 0.0
    %1962 = vmatprep.subr.mxu0 0.0
    %1963 = vmatpush1.msra.mxu0 0.0
    %1964 = vmatprep.subr.mxu0 0.0
    %1965 = vmatpush1.msra.mxu0 0.0
    %1966 = vmatprep.mubr.f32.mxu0 0.0
    %1967 = vmatmul.mubr.f32.gmra.mrb[0].mxu0 %v1758
    %v1968 = vpop.f32.mrb[0].mxu0
    %v1969 = vadd.f32 0.0, %v1968
    %v1970 = vpop.f32.mrb[0].mxu0
    %1971 = vdwg.mxu0
    %v1972 = vadd.f32 %v209, %v1969
    %v1973 = vtanh.pop %v1972
    %v1975 = vsel %vm212, %v1901, 0
    %1977 = vmatprep.subr.mxu0 0.0
    %1978 = vmatpush1.msra.mxu0 %v112
    %1979 = vmatprep.subr.mxu0 0.0
    %1980 = vmatpush1.msra.mxu0 %v113
    %1981 = vmatprep.subr.mxu0 0.0
    %1982 = vmatpush1.msra.mxu0 %v114
    %1983 = vmatprep.subr.mxu0 0.0
    %1984 = vmatpush1.msra.mxu0 %v115
    %1985 = vmatprep.subr.mxu0 0.0
    %1986 = vmatpush1.msra.mxu0 0.0
    %1987 = vmatprep.subr.mxu0 0.0
    %1988 = vmatpush1.msra.mxu0 0.0
    %1989 = vmatprep.subr.mxu0 0.0
    %1990 = vmatpush1.msra.mxu0 0.0
    %1991 = vmatprep.subr.mxu0 0.0
    %1992 = vmatpush1.msra.mxu0 0.0
    %1993 = vmatprep.subr.mxu0 0.0
    %1994 = vmatpush1.msra.mxu0 0.0
    %1995 = vmatprep.subr.mxu0 0.0
    %1996 = vmatpush1.msra.mxu0 0.0
    %1997 = vmatprep.subr.mxu0 0.0
    %1998 = vmatpush1.msra.mxu0 0.0
    %1999 = vmatprep.subr.mxu0 0.0
    %2000 = vmatpush1.msra.mxu0 0.0
    %2001 = vmatprep.subr.mxu0 0.0
    %2002 = vmatpush1.msra.mxu0 0.0
    %2003 = vmatprep.subr.mxu0 0.0
    %2004 = vmatpush1.msra.mxu0 0.0
    %2005 = vmatprep.subr.mxu0 0.0
    %2006 = vmatpush1.msra.mxu0 0.0
    %2007 = vmatprep.subr.mxu0 0.0
    %2008 = vmatpush1.msra.mxu0 0.0
    %2009 = vmatprep.subr.mxu0 0.0
    %2010 = vmatpush1.msra.mxu0 0.0
    %2011 = vmatprep.subr.mxu0 0.0
    %2012 = vmatpush1.msra.mxu0 0.0
    %2013 = vmatprep.subr.mxu0 0.0
    %2014 = vmatpush1.msra.mxu0 0.0
    %2015 = vmatprep.subr.mxu0 0.0
    %2016 = vmatpush1.msra.mxu0 0.0
    %2017 = vmatprep.subr.mxu0 0.0
    %2018 = vmatpush1.msra.mxu0 0.0
    %2019 = vmatprep.subr.mxu0 0.0
    %2020 = vmatpush1.msra.mxu0 0.0
    %2021 = vmatprep.subr.mxu0 0.0
    %2022 = vmatpush1.msra.mxu0 0.0
    %2023 = vmatprep.subr.mxu0 0.0
    %2024 = vmatpush1.msra.mxu0 0.0
    %2025 = vmatprep.subr.mxu0 0.0
    %2026 = vmatpush1.msra.mxu0 0.0
    %2027 = vmatprep.subr.mxu0 0.0
    %2028 = vmatpush1.msra.mxu0 0.0
    %2029 = vmatprep.subr.mxu0 0.0
    %2030 = vmatpush1.msra.mxu0 0.0
    %2031 = vmatprep.subr.mxu0 0.0
    %2032 = vmatpush1.msra.mxu0 0.0
    %2033 = vmatprep.subr.mxu0 0.0
    %2034 = vmatpush1.msra.mxu0 0.0
    %2035 = vmatprep.subr.mxu0 0.0
    %2036 = vmatpush1.msra.mxu0 0.0
    %2037 = vmatprep.subr.mxu0 0.0
    %2038 = vmatpush1.msra.mxu0 0.0
    %2039 = vmatprep.subr.mxu0 0.0
    %2040 = vmatpush1.msra.mxu0 0.0
    %2041 = vmatprep.mubr.f32.mxu0 0.0
    %2042 = vmatmul.mubr.f32.gmra.mrb[0].mxu0 %v1975
    %v2043 = vpop.f32.mrb[0].mxu0
    %v2044 = vadd.f32 %v515, %v2043
    %v2045 = vpop.f32.mrb[0].mxu0
    %2046 = vdwg.mxu0
    %v2048 = vsel %vm212, %v1756, 0
    %2050 = vmatprep.subr.mxu0 0.0
    %2051 = vmatpush1.msra.mxu0 %v124
    %2052 = vmatprep.subr.mxu0 0.0
    %2053 = vmatpush1.msra.mxu0 %v125
    %2054 = vmatprep.subr.mxu0 0.0
    %2055 = vmatpush1.msra.mxu0 %v126
    %2056 = vmatprep.subr.mxu0 0.0
    %2057 = vmatpush1.msra.mxu0 %v127
    %2058 = vmatprep.subr.mxu0 0.0
    %2059 = vmatpush1.msra.mxu0 0.0
    %2060 = vmatprep.subr.mxu0 0.0
    %2061 = vmatpush1.msra.mxu0 0.0
    %2062 = vmatprep.subr.mxu0 0.0
    %2063 = vmatpush1.msra.mxu0 0.0
    %2064 = vmatprep.subr.mxu0 0.0
    %2065 = vmatpush1.msra.mxu0 0.0
    %2066 = vmatprep.subr.mxu0 0.0
    %2067 = vmatpush1.msra.mxu0 0.0
    %2068 = vmatprep.subr.mxu0 0.0
    %2069 = vmatpush1.msra.mxu0 0.0
    %2070 = vmatprep.subr.mxu0 0.0
    %2071 = vmatpush1.msra.mxu0 0.0
    %2072 = vmatprep.subr.mxu0 0.0
    %2073 = vmatpush1.msra.mxu0 0.0
    %2074 = vmatprep.subr.mxu0 0.0
    %2075 = vmatpush1.msra.mxu0 0.0
    %2076 = vmatprep.subr.mxu0 0.0
    %2077 = vmatpush1.msra.mxu0 0.0
    %2078 = vmatprep.subr.mxu0 0.0
    %2079 = vmatpush1.msra.mxu0 0.0
    %2080 = vmatprep.subr.mxu0 0.0
    %2081 = vmatpush1.msra.mxu0 0.0
    %2082 = vmatprep.subr.mxu0 0.0
    %2083 = vmatpush1.msra.mxu0 0.0
    %2084 = vmatprep.subr.mxu0 0.0
    %2085 = vmatpush1.msra.mxu0 0.0
    %2086 = vmatprep.subr.mxu0 0.0
    %2087 = vmatpush1.msra.mxu0 0.0
    %2088 = vmatprep.subr.mxu0 0.0
    %2089 = vmatpush1.msra.mxu0 0.0
    %2090 = vmatprep.subr.mxu0 0.0
    %2091 = vmatpush1.msra.mxu0 0.0
    %2092 = vmatprep.subr.mxu0 0.0
    %2093 = vmatpush1.msra.mxu0 0.0
    %2094 = vmatprep.subr.mxu0 0.0
    %2095 = vmatpush1.msra.mxu0 0.0
    %2096 = vmatprep.subr.mxu0 0.0
    %2097 = vmatpush1.msra.mxu0 0.0
    %2098 = vmatprep.subr.mxu0 0.0
    %2099 = vmatpush1.msra.mxu0 0.0
    %2100 = vmatprep.subr.mxu0 0.0
    %2101 = vmatpush1.msra.mxu0 0.0
    %2102 = vmatprep.subr.mxu0 0.0
    %2103 = vmatpush1.msra.mxu0 0.0
    %2104 = vmatprep.subr.mxu0 0.0
    %2105 = vmatpush1.msra.mxu0 0.0
    %2106 = vmatprep.subr.mxu0 0.0
    %2107 = vmatpush1.msra.mxu0 0.0
    %2108 = vmatprep.subr.mxu0 0.0
    %2109 = vmatpush1.msra.mxu0 0.0
    %2110 = vmatprep.subr.mxu0 0.0
    %2111 = vmatpush1.msra.mxu0 0.0
    %2112 = vmatprep.subr.mxu0 0.0
    %2113 = vmatpush1.msra.mxu0 0.0
    %2114 = vmatprep.mubr.f32.mxu0 0.0
    %2115 = vmatmul.mubr.f32.gmra.mrb[0].mxu0 %v2048
    %v2116 = vpop.f32.mrb[0].mxu0
    %v2117 = vadd.f32 0.0, %v2116
    %v2118 = vpop.f32.mrb[0].mxu0
    %2119 = vdwg.mxu0
    %v2120 = vadd.f32 %v2044, %v2117
    %v2121 = vtanh.pop %v2120
    %v2123 = vsel %vm212, %v1973, 0
    %2125 = vmatprep.subr.mxu0 0.0
    %2126 = vmatpush1.msra.mxu0 %v108
    %2127 = vmatprep.subr.mxu0 0.0
    %2128 = vmatpush1.msra.mxu0 %v109
    %2129 = vmatprep.subr.mxu0 0.0
    %2130 = vmatpush1.msra.mxu0 %v110
    %2131 = vmatprep.subr.mxu0 0.0
    %2132 = vmatpush1.msra.mxu0 %v111
    %2133 = vmatprep.subr.mxu0 0.0
    %2134 = vmatpush1.msra.mxu0 0.0
    %2135 = vmatprep.subr.mxu0 0.0
    %2136 = vmatpush1.msra.mxu0 0.0
    %2137 = vmatprep.subr.mxu0 0.0
    %2138 = vmatpush1.msra.mxu0 0.0
    %2139 = vmatprep.subr.mxu0 0.0
    %2140 = vmatpush1.msra.mxu0 0.0
    %2141 = vmatprep.subr.mxu0 0.0
    %2142 = vmatpush1.msra.mxu0 0.0
    %2143 = vmatprep.subr.mxu0 0.0
    %2144 = vmatpush1.msra.mxu0 0.0
    %2145 = vmatprep.subr.mxu0 0.0
    %2146 = vmatpush1.msra.mxu0 0.0
    %2147 = vmatprep.subr.mxu0 0.0
    %2148 = vmatpush1.msra.mxu0 0.0
    %2149 = vmatprep.subr.mxu0 0.0
    %2150 = vmatpush1.msra.mxu0 0.0
    %2151 = vmatprep.subr.mxu0 0.0
    %2152 = vmatpush1.msra.mxu0 0.0
    %2153 = vmatprep.subr.mxu0 0.0
    %2154 = vmatpush1.msra.mxu0 0.0
    %2155 = vmatprep.subr.mxu0 0.0
    %2156 = vmatpush1.msra.mxu0 0.0
    %2157 = vmatprep.subr.mxu0 0.0
    %2158 = vmatpush1.msra.mxu0 0.0
    %2159 = vmatprep.subr.mxu0 0.0
    %2160 = vmatpush1.msra.mxu0 0.0
    %2161 = vmatprep.subr.mxu0 0.0
    %2162 = vmatpush1.msra.mxu0 0.0
    %2163 = vmatprep.subr.mxu0 0.0
    %2164 = vmatpush1.msra.mxu0 0.0
    %2165 = vmatprep.subr.mxu0 0.0
    %2166 = vmatpush1.msra.mxu0 0.0
    %2167 = vmatprep.subr.mxu0 0.0
    %2168 = vmatpush1.msra.mxu0 0.0
    %2169 = vmatprep.subr.mxu0 0.0
    %2170 = vmatpush1.msra.mxu0 0.0
    %2171 = vmatprep.subr.mxu0 0.0
    %2172 = vmatpush1.msra.mxu0 0.0
    %2173 = vmatprep.subr.mxu0 0.0
    %2174 = vmatpush1.msra.mxu0 0.0
    %2175 = vmatprep.subr.mxu0 0.0
    %2176 = vmatpush1.msra.mxu0 0.0
    %2177 = vmatprep.subr.mxu0 0.0
    %2178 = vmatpush1.msra.mxu0 0.0
    %2179 = vmatprep.subr.mxu0 0.0
    %2180 = vmatpush1.msra.mxu0 0.0
    %2181 = vmatprep.subr.mxu0 0.0
    %2182 = vmatpush1.msra.mxu0 0.0
    %2183 = vmatprep.subr.mxu0 0.0
    %2184 = vmatpush1.msra.mxu0 0.0
    %2185 = vmatprep.subr.mxu0 0.0
    %2186 = vmatpush1.msra.mxu0 0.0
    %2187 = vmatprep.subr.mxu0 0.0
    %2188 = vmatpush1.msra.mxu0 0.0
    %2189 = vmatprep.mubr.f32.mxu0 0.0
    %2190 = vmatmul.mubr.f32.gmra.mrb[0].mxu0 %v2123
    %v2191 = vpop.f32.mrb[0].mxu0
    %v2192 = vadd.f32 %v292, %v2191
    %v2193 = vpop.f32.mrb[0].mxu0
    %2194 = vdwg.mxu0
    %2195 = vmatprep.subr.mxu0 0.0
    %2196 = vmatpush1.msra.mxu0 %v120
    %2197 = vmatprep.subr.mxu0 0.0
    %2198 = vmatpush1.msra.mxu0 %v121
    %2199 = vmatprep.subr.mxu0 0.0
    %2200 = vmatpush1.msra.mxu0 %v122
    %2201 = vmatprep.subr.mxu0 0.0
    %2202 = vmatpush1.msra.mxu0 %v123
    %2203 = vmatprep.subr.mxu0 0.0
    %2204 = vmatpush1.msra.mxu0 0.0
    %2205 = vmatprep.subr.mxu0 0.0
    %2206 = vmatpush1.msra.mxu0 0.0
    %2207 = vmatprep.subr.mxu0 0.0
    %2208 = vmatpush1.msra.mxu0 0.0
    %2209 = vmatprep.subr.mxu0 0.0
    %2210 = vmatpush1.msra.mxu0 0.0
    %2211 = vmatprep.subr.mxu0 0.0
    %2212 = vmatpush1.msra.mxu0 0.0
    %2213 = vmatprep.subr.mxu0 0.0
    %2214 = vmatpush1.msra.mxu0 0.0
    %2215 = vmatprep.subr.mxu0 0.0
    %2216 = vmatpush1.msra.mxu0 0.0
    %2217 = vmatprep.subr.mxu0 0.0
    %2218 = vmatpush1.msra.mxu0 0.0
    %2219 = vmatprep.subr.mxu0 0.0
    %2220 = vmatpush1.msra.mxu0 0.0
    %2221 = vmatprep.subr.mxu0 0.0
    %2222 = vmatpush1.msra.mxu0 0.0
    %2223 = vmatprep.subr.mxu0 0.0
    %2224 = vmatpush1.msra.mxu0 0.0
    %2225 = vmatprep.subr.mxu0 0.0
    %2226 = vmatpush1.msra.mxu0 0.0
    %2227 = vmatprep.subr.mxu0 0.0
    %2228 = vmatpush1.msra.mxu0 0.0
    %2229 = vmatprep.subr.mxu0 0.0
    %2230 = vmatpush1.msra.mxu0 0.0
    %2231 = vmatprep.subr.mxu0 0.0
    %2232 = vmatpush1.msra.mxu0 0.0
    %2233 = vmatprep.subr.mxu0 0.0
    %2234 = vmatpush1.msra.mxu0 0.0
    %2235 = vmatprep.subr.mxu0 0.0
    %2236 = vmatpush1.msra.mxu0 0.0
    %2237 = vmatprep.subr.mxu0 0.0
    %2238 = vmatpush1.msra.mxu0 0.0
    %2239 = vmatprep.subr.mxu0 0.0
    %2240 = vmatpush1.msra.mxu0 0.0
    %2241 = vmatprep.subr.mxu0 0.0
    %2242 = vmatpush1.msra.mxu0 0.0
    %2243 = vmatprep.subr.mxu0 0.0
    %2244 = vmatpush1.msra.mxu0 0.0
    %2245 = vmatprep.subr.mxu0 0.0
    %2246 = vmatpush1.msra.mxu0 0.0
    %2247 = vmatprep.subr.mxu0 0.0
    %2248 = vmatpush1.msra.mxu0 0.0
    %2249 = vmatprep.subr.mxu0 0.0
    %2250 = vmatpush1.msra.mxu0 0.0
    %2251 = vmatprep.subr.mxu0 0.0
    %2252 = vmatpush1.msra.mxu0 0.0
    %2253 = vmatprep.subr.mxu0 0.0
    %2254 = vmatpush1.msra.mxu0 0.0
    %2255 = vmatprep.subr.mxu0 0.0
    %2256 = vmatpush1.msra.mxu0 0.0
    %2257 = vmatprep.subr.mxu0 0.0
    %2258 = vmatpush1.msra.mxu0 0.0
    %2259 = vmatprep.mubr.f32.mxu0 0.0
    %2260 = vmatmul.mubr.f32.gmra.mrb[0].mxu0 %v1975
    %v2261 = vpop.f32.mrb[0].mxu0
    %v2262 = vadd.f32 0.0, %v2261
    %v2263 = vpop.f32.mrb[0].mxu0
    %2264 = vdwg.mxu0
    %v2265 = vadd.f32 %v2192, %v2262
    %v2266 = vtanh.pop %v2265
    %2267 = vmatprep.subr.mxu0 0.0
    %2268 = vmatpush1.msra.mxu0 %v116
    %2269 = vmatprep.subr.mxu0 0.0
    %2270 = vmatpush1.msra.mxu0 %v117
    %2271 = vmatprep.subr.mxu0 0.0
    %2272 = vmatpush1.msra.mxu0 %v118
    %2273 = vmatprep.subr.mxu0 0.0
    %2274 = vmatpush1.msra.mxu0 %v119
    %2275 = vmatprep.subr.mxu0 0.0
    %2276 = vmatpush1.msra.mxu0 0.0
    %2277 = vmatprep.subr.mxu0 0.0
    %2278 = vmatpush1.msra.mxu0 0.0
    %2279 = vmatprep.subr.mxu0 0.0
    %2280 = vmatpush1.msra.mxu0 0.0
    %2281 = vmatprep.subr.mxu0 0.0
    %2282 = vmatpush1.msra.mxu0 0.0
    %2283 = vmatprep.subr.mxu0 0.0
    %2284 = vmatpush1.msra.mxu0 0.0
    %2285 = vmatprep.subr.mxu0 0.0
    %2286 = vmatpush1.msra.mxu0 0.0
    %2287 = vmatprep.subr.mxu0 0.0
    %2288 = vmatpush1.msra.mxu0 0.0
    %2289 = vmatprep.subr.mxu0 0.0
    %2290 = vmatpush1.msra.mxu0 0.0
    %2291 = vmatprep.subr.mxu0 0.0
    %2292 = vmatpush1.msra.mxu0 0.0
    %2293 = vmatprep.subr.mxu0 0.0
    %2294 = vmatpush1.msra.mxu0 0.0
    %2295 = vmatprep.subr.mxu0 0.0
    %2296 = vmatpush1.msra.mxu0 0.0
    %2297 = vmatprep.subr.mxu0 0.0
    %2298 = vmatpush1.msra.mxu0 0.0
    %2299 = vmatprep.subr.mxu0 0.0
    %2300 = vmatpush1.msra.mxu0 0.0
    %2301 = vmatprep.subr.mxu0 0.0
    %2302 = vmatpush1.msra.mxu0 0.0
    %2303 = vmatprep.subr.mxu0 0.0
    %2304 = vmatpush1.msra.mxu0 0.0
    %2305 = vmatprep.subr.mxu0 0.0
    %2306 = vmatpush1.msra.mxu0 0.0
    %2307 = vmatprep.subr.mxu0 0.0
    %2308 = vmatpush1.msra.mxu0 0.0
    %2309 = vmatprep.subr.mxu0 0.0
    %2310 = vmatpush1.msra.mxu0 0.0
    %2311 = vmatprep.subr.mxu0 0.0
    %2312 = vmatpush1.msra.mxu0 0.0
    %2313 = vmatprep.subr.mxu0 0.0
    %2314 = vmatpush1.msra.mxu0 0.0
    %2315 = vmatprep.subr.mxu0 0.0
    %2316 = vmatpush1.msra.mxu0 0.0
    %2317 = vmatprep.subr.mxu0 0.0
    %2318 = vmatpush1.msra.mxu0 0.0
    %2319 = vmatprep.subr.mxu0 0.0
    %2320 = vmatpush1.msra.mxu0 0.0
    %2321 = vmatprep.subr.mxu0 0.0
    %2322 = vmatpush1.msra.mxu0 0.0
    %2323 = vmatprep.subr.mxu0 0.0
    %2324 = vmatpush1.msra.mxu0 0.0
    %2325 = vmatprep.subr.mxu0 0.0
    %2326 = vmatpush1.msra.mxu0 0.0
    %2327 = vmatprep.subr.mxu0 0.0
    %2328 = vmatpush1.msra.mxu0 0.0
    %2329 = vmatprep.subr.mxu0 0.0
    %2330 = vmatpush1.msra.mxu0 0.0
    %2331 = vmatprep.mubr.f32.mxu0 0.0
    %2332 = vmatmul.mubr.f32.gmra.mrb[0].mxu0 %v2123
    %v2333 = vpop.f32.mrb[0].mxu0
    %v2334 = vadd.f32 0.0, %v2333
    %v2335 = vpop.f32.mrb[0].mxu0
    %2336 = vdwg.mxu0
    %v2337 = vadd.f32 %v210, %v2334
    %v2338 = vtanh.pop %v2337
    %v2340 = vsel %vm212, %v2266, 0
    %2342 = vmatprep.subr.mxu0 0.0
    %2343 = vmatpush1.msra.mxu0 %v112
    %2344 = vmatprep.subr.mxu0 0.0
    %2345 = vmatpush1.msra.mxu0 %v113
    %2346 = vmatprep.subr.mxu0 0.0
    %2347 = vmatpush1.msra.mxu0 %v114
    %2348 = vmatprep.subr.mxu0 0.0
    %2349 = vmatpush1.msra.mxu0 %v115
    %2350 = vmatprep.subr.mxu0 0.0
    %2351 = vmatpush1.msra.mxu0 0.0
    %2352 = vmatprep.subr.mxu0 0.0
    %2353 = vmatpush1.msra.mxu0 0.0
    %2354 = vmatprep.subr.mxu0 0.0
    %2355 = vmatpush1.msra.mxu0 0.0
    %2356 = vmatprep.subr.mxu0 0.0
    %2357 = vmatpush1.msra.mxu0 0.0
    %2358 = vmatprep.subr.mxu0 0.0
    %2359 = vmatpush1.msra.mxu0 0.0
    %2360 = vmatprep.subr.mxu0 0.0
    %2361 = vmatpush1.msra.mxu0 0.0
    %2362 = vmatprep.subr.mxu0 0.0
    %2363 = vmatpush1.msra.mxu0 0.0
    %2364 = vmatprep.subr.mxu0 0.0
    %2365 = vmatpush1.msra.mxu0 0.0
    %2366 = vmatprep.subr.mxu0 0.0
    %2367 = vmatpush1.msra.mxu0 0.0
    %2368 = vmatprep.subr.mxu0 0.0
    %2369 = vmatpush1.msra.mxu0 0.0
    %2370 = vmatprep.subr.mxu0 0.0
    %2371 = vmatpush1.msra.mxu0 0.0
    %2372 = vmatprep.subr.mxu0 0.0
    %2373 = vmatpush1.msra.mxu0 0.0
    %2374 = vmatprep.subr.mxu0 0.0
    %2375 = vmatpush1.msra.mxu0 0.0
    %2376 = vmatprep.subr.mxu0 0.0
    %2377 = vmatpush1.msra.mxu0 0.0
    %2378 = vmatprep.subr.mxu0 0.0
    %2379 = vmatpush1.msra.mxu0 0.0
    %2380 = vmatprep.subr.mxu0 0.0
    %2381 = vmatpush1.msra.mxu0 0.0
    %2382 = vmatprep.subr.mxu0 0.0
    %2383 = vmatpush1.msra.mxu0 0.0
    %2384 = vmatprep.subr.mxu0 0.0
    %2385 = vmatpush1.msra.mxu0 0.0
    %2386 = vmatprep.subr.mxu0 0.0
    %2387 = vmatpush1.msra.mxu0 0.0
    %2388 = vmatprep.subr.mxu0 0.0
    %2389 = vmatpush1.msra.mxu0 0.0
    %2390 = vmatprep.subr.mxu0 0.0
    %2391 = vmatpush1.msra.mxu0 0.0
    %2392 = vmatprep.subr.mxu0 0.0
    %2393 = vmatpush1.msra.mxu0 0.0
    %2394 = vmatprep.subr.mxu0 0.0
    %2395 = vmatpush1.msra.mxu0 0.0
    %2396 = vmatprep.subr.mxu0 0.0
    %2397 = vmatpush1.msra.mxu0 0.0
    %2398 = vmatprep.subr.mxu0 0.0
    %2399 = vmatpush1.msra.mxu0 0.0
    %2400 = vmatprep.subr.mxu0 0.0
    %2401 = vmatpush1.msra.mxu0 0.0
    %2402 = vmatprep.subr.mxu0 0.0
    %2403 = vmatpush1.msra.mxu0 0.0
    %2404 = vmatprep.subr.mxu0 0.0
    %2405 = vmatpush1.msra.mxu0 0.0
    %2406 = vmatprep.mubr.f32.mxu0 0.0
    %2407 = vmatmul.mubr.f32.gmra.mrb[0].mxu0 %v2340
    %v2408 = vpop.f32.mrb[0].mxu0
    %v2409 = vadd.f32 %v515, %v2408
    %v2410 = vpop.f32.mrb[0].mxu0
    %2411 = vdwg.mxu0
    %v2413 = vsel %vm212, %v2121, 0
    %2415 = vmatprep.subr.mxu0 0.0
    %2416 = vmatpush1.msra.mxu0 %v124
    %2417 = vmatprep.subr.mxu0 0.0
    %2418 = vmatpush1.msra.mxu0 %v125
    %2419 = vmatprep.subr.mxu0 0.0
    %2420 = vmatpush1.msra.mxu0 %v126
    %2421 = vmatprep.subr.mxu0 0.0
    %2422 = vmatpush1.msra.mxu0 %v127
    %2423 = vmatprep.subr.mxu0 0.0
    %2424 = vmatpush1.msra.mxu0 0.0
    %2425 = vmatprep.subr.mxu0 0.0
    %2426 = vmatpush1.msra.mxu0 0.0
    %2427 = vmatprep.subr.mxu0 0.0
    %2428 = vmatpush1.msra.mxu0 0.0
    %2429 = vmatprep.subr.mxu0 0.0
    %2430 = vmatpush1.msra.mxu0 0.0
    %2431 = vmatprep.subr.mxu0 0.0
    %2432 = vmatpush1.msra.mxu0 0.0
    %2433 = vmatprep.subr.mxu0 0.0
    %2434 = vmatpush1.msra.mxu0 0.0
    %2435 = vmatprep.subr.mxu0 0.0
    %2436 = vmatpush1.msra.mxu0 0.0
    %2437 = vmatprep.subr.mxu0 0.0
    %2438 = vmatpush1.msra.mxu0 0.0
    %2439 = vmatprep.subr.mxu0 0.0
    %2440 = vmatpush1.msra.mxu0 0.0
    %2441 = vmatprep.subr.mxu0 0.0
    %2442 = vmatpush1.msra.mxu0 0.0
    %2443 = vmatprep.subr.mxu0 0.0
    %2444 = vmatpush1.msra.mxu0 0.0
    %2445 = vmatprep.subr.mxu0 0.0
    %2446 = vmatpush1.msra.mxu0 0.0
    %2447 = vmatprep.subr.mxu0 0.0
    %2448 = vmatpush1.msra.mxu0 0.0
    %2449 = vmatprep.subr.mxu0 0.0
    %2450 = vmatpush1.msra.mxu0 0.0
    %2451 = vmatprep.subr.mxu0 0.0
    %2452 = vmatpush1.msra.mxu0 0.0
    %2453 = vmatprep.subr.mxu0 0.0
    %2454 = vmatpush1.msra.mxu0 0.0
    %2455 = vmatprep.subr.mxu0 0.0
    %2456 = vmatpush1.msra.mxu0 0.0
    %2457 = vmatprep.subr.mxu0 0.0
    %2458 = vmatpush1.msra.mxu0 0.0
    %2459 = vmatprep.subr.mxu0 0.0
    %2460 = vmatpush1.msra.mxu0 0.0
    %2461 = vmatprep.subr.mxu0 0.0
    %2462 = vmatpush1.msra.mxu0 0.0
    %2463 = vmatprep.subr.mxu0 0.0
    %2464 = vmatpush1.msra.mxu0 0.0
    %2465 = vmatprep.subr.mxu0 0.0
    %2466 = vmatpush1.msra.mxu0 0.0
    %2467 = vmatprep.subr.mxu0 0.0
    %2468 = vmatpush1.msra.mxu0 0.0
    %2469 = vmatprep.subr.mxu0 0.0
    %2470 = vmatpush1.msra.mxu0 0.0
    %2471 = vmatprep.subr.mxu0 0.0
    %2472 = vmatpush1.msra.mxu0 0.0
    %2473 = vmatprep.subr.mxu0 0.0
    %2474 = vmatpush1.msra.mxu0 0.0
    %2475 = vmatprep.subr.mxu0 0.0
    %2476 = vmatpush1.msra.mxu0 0.0
    %2477 = vmatprep.subr.mxu0 0.0
    %2478 = vmatpush1.msra.mxu0 0.0
    %2479 = vmatprep.mubr.f32.mxu0 0.0
    %2480 = vmatmul.mubr.f32.gmra.mrb[0].mxu0 %v2413
    %v2481 = vpop.f32.mrb[0].mxu0
    %v2482 = vadd.f32 0.0, %v2481
    %v2483 = vpop.f32.mrb[0].mxu0
    %2484 = vdwg.mxu0
    %v2485 = vadd.f32 %v2409, %v2482
    %v2486 = vtanh.pop %v2485
    %v2488 = vsel %vm212, %v2338, 0
    %2490 = vmatprep.subr.mxu0 0.0
    %2491 = vmatpush1.msra.mxu0 %v108
    %2492 = vmatprep.subr.mxu0 0.0
    %2493 = vmatpush1.msra.mxu0 %v109
    %2494 = vmatprep.subr.mxu0 0.0
    %2495 = vmatpush1.msra.mxu0 %v110
    %2496 = vmatprep.subr.mxu0 0.0
    %2497 = vmatpush1.msra.mxu0 %v111
    %2498 = vmatprep.subr.mxu0 0.0
    %2499 = vmatpush1.msra.mxu0 0.0
    %2500 = vmatprep.subr.mxu0 0.0
    %2501 = vmatpush1.msra.mxu0 0.0
    %2502 = vmatprep.subr.mxu0 0.0
    %2503 = vmatpush1.msra.mxu0 0.0
    %2504 = vmatprep.subr.mxu0 0.0
    %2505 = vmatpush1.msra.mxu0 0.0
    %2506 = vmatprep.subr.mxu0 0.0
    %2507 = vmatpush1.msra.mxu0 0.0
    %2508 = vmatprep.subr.mxu0 0.0
    %2509 = vmatpush1.msra.mxu0 0.0
    %2510 = vmatprep.subr.mxu0 0.0
    %2511 = vmatpush1.msra.mxu0 0.0
    %2512 = vmatprep.subr.mxu0 0.0
    %2513 = vmatpush1.msra.mxu0 0.0
    %2514 = vmatprep.subr.mxu0 0.0
    %2515 = vmatpush1.msra.mxu0 0.0
    %2516 = vmatprep.subr.mxu0 0.0
    %2517 = vmatpush1.msra.mxu0 0.0
    %2518 = vmatprep.subr.mxu0 0.0
    %2519 = vmatpush1.msra.mxu0 0.0
    %2520 = vmatprep.subr.mxu0 0.0
    %2521 = vmatpush1.msra.mxu0 0.0
    %2522 = vmatprep.subr.mxu0 0.0
    %2523 = vmatpush1.msra.mxu0 0.0
    %2524 = vmatprep.subr.mxu0 0.0
    %2525 = vmatpush1.msra.mxu0 0.0
    %2526 = vmatprep.subr.mxu0 0.0
    %2527 = vmatpush1.msra.mxu0 0.0
    %2528 = vmatprep.subr.mxu0 0.0
    %2529 = vmatpush1.msra.mxu0 0.0
    %2530 = vmatprep.subr.mxu0 0.0
    %2531 = vmatpush1.msra.mxu0 0.0
    %2532 = vmatprep.subr.mxu0 0.0
    %2533 = vmatpush1.msra.mxu0 0.0
    %2534 = vmatprep.subr.mxu0 0.0
    %2535 = vmatpush1.msra.mxu0 0.0
    %2536 = vmatprep.subr.mxu0 0.0
    %2537 = vmatpush1.msra.mxu0 0.0
    %2538 = vmatprep.subr.mxu0 0.0
    %2539 = vmatpush1.msra.mxu0 0.0
    %2540 = vmatprep.subr.mxu0 0.0
    %2541 = vmatpush1.msra.mxu0 0.0
    %2542 = vmatprep.subr.mxu0 0.0
    %2543 = vmatpush1.msra.mxu0 0.0
    %2544 = vmatprep.subr.mxu0 0.0
    %2545 = vmatpush1.msra.mxu0 0.0
    %2546 = vmatprep.subr.mxu0 0.0
    %2547 = vmatpush1.msra.mxu0 0.0
    %2548 = vmatprep.subr.mxu0 0.0
    %2549 = vmatpush1.msra.mxu0 0.0
    %2550 = vmatprep.subr.mxu0 0.0
    %2551 = vmatpush1.msra.mxu0 0.0
    %2552 = vmatprep.subr.mxu0 0.0
    %2553 = vmatpush1.msra.mxu0 0.0
    %2554 = vmatprep.mubr.f32.mxu0 0.0
    %2555 = vmatmul.mubr.f32.gmra.mrb[0].mxu0 %v2488
    %v2556 = vpop.f32.mrb[0].mxu0
    %v2557 = vadd.f32 %v292, %v2556
    %v2558 = vpop.f32.mrb[0].mxu0
    %2559 = vdwg.mxu0
    %2560 = vmatprep.subr.mxu0 0.0
    %2561 = vmatpush1.msra.mxu0 %v120
    %2562 = vmatprep.subr.mxu0 0.0
    %2563 = vmatpush1.msra.mxu0 %v121
    %2564 = vmatprep.subr.mxu0 0.0
    %2565 = vmatpush1.msra.mxu0 %v122
    %2566 = vmatprep.subr.mxu0 0.0
    %2567 = vmatpush1.msra.mxu0 %v123
    %2568 = vmatprep.subr.mxu0 0.0
    %2569 = vmatpush1.msra.mxu0 0.0
    %2570 = vmatprep.subr.mxu0 0.0
    %2571 = vmatpush1.msra.mxu0 0.0
    %2572 = vmatprep.subr.mxu0 0.0
    %2573 = vmatpush1.msra.mxu0 0.0
    %2574 = vmatprep.subr.mxu0 0.0
    %2575 = vmatpush1.msra.mxu0 0.0
    %2576 = vmatprep.subr.mxu0 0.0
    %2577 = vmatpush1.msra.mxu0 0.0
    %2578 = vmatprep.subr.mxu0 0.0
    %2579 = vmatpush1.msra.mxu0 0.0
    %2580 = vmatprep.subr.mxu0 0.0
    %2581 = vmatpush1.msra.mxu0 0.0
    %2582 = vmatprep.subr.mxu0 0.0
    %2583 = vmatpush1.msra.mxu0 0.0
    %2584 = vmatprep.subr.mxu0 0.0
    %2585 = vmatpush1.msra.mxu0 0.0
    %2586 = vmatprep.subr.mxu0 0.0
    %2587 = vmatpush1.msra.mxu0 0.0
    %2588 = vmatprep.subr.mxu0 0.0
    %2589 = vmatpush1.msra.mxu0 0.0
    %2590 = vmatprep.subr.mxu0 0.0
    %2591 = vmatpush1.msra.mxu0 0.0
    %2592 = vmatprep.subr.mxu0 0.0
    %2593 = vmatpush1.msra.mxu0 0.0
    %2594 = vmatprep.subr.mxu0 0.0
    %2595 = vmatpush1.msra.mxu0 0.0
    %2596 = vmatprep.subr.mxu0 0.0
    %2597 = vmatpush1.msra.mxu0 0.0
    %2598 = vmatprep.subr.mxu0 0.0
    %2599 = vmatpush1.msra.mxu0 0.0
    %2600 = vmatprep.subr.mxu0 0.0
    %2601 = vmatpush1.msra.mxu0 0.0
    %2602 = vmatprep.subr.mxu0 0.0
    %2603 = vmatpush1.msra.mxu0 0.0
    %2604 = vmatprep.subr.mxu0 0.0
    %2605 = vmatpush1.msra.mxu0 0.0
    %2606 = vmatprep.subr.mxu0 0.0
    %2607 = vmatpush1.msra.mxu0 0.0
    %2608 = vmatprep.subr.mxu0 0.0
    %2609 = vmatpush1.msra.mxu0 0.0
    %2610 = vmatprep.subr.mxu0 0.0
    %2611 = vmatpush1.msra.mxu0 0.0
    %2612 = vmatprep.subr.mxu0 0.0
    %2613 = vmatpush1.msra.mxu0 0.0
    %2614 = vmatprep.subr.mxu0 0.0
    %2615 = vmatpush1.msra.mxu0 0.0
    %2616 = vmatprep.subr.mxu0 0.0
    %2617 = vmatpush1.msra.mxu0 0.0
    %2618 = vmatprep.subr.mxu0 0.0
    %2619 = vmatpush1.msra.mxu0 0.0
    %2620 = vmatprep.subr.mxu0 0.0
    %2621 = vmatpush1.msra.mxu0 0.0
    %2622 = vmatprep.subr.mxu0 0.0
    %2623 = vmatpush1.msra.mxu0 0.0
    %2624 = vmatprep.mubr.f32.mxu0 0.0
    %2625 = vmatmul.mubr.f32.gmra.mrb[0].mxu0 %v2340
    %v2626 = vpop.f32.mrb[0].mxu0
    %v2627 = vadd.f32 0.0, %v2626
    %v2628 = vpop.f32.mrb[0].mxu0
    %2629 = vdwg.mxu0
    %v2630 = vadd.f32 %v2557, %v2627
    %v2631 = vtanh.pop %v2630
    %2632 = vmatprep.subr.mxu0 0.0
    %2633 = vmatpush1.msra.mxu0 %v116
    %2634 = vmatprep.subr.mxu0 0.0
    %2635 = vmatpush1.msra.mxu0 %v117
    %2636 = vmatprep.subr.mxu0 0.0
    %2637 = vmatpush1.msra.mxu0 %v118
    %2638 = vmatprep.subr.mxu0 0.0
    %2639 = vmatpush1.msra.mxu0 %v119
    %2640 = vmatprep.subr.mxu0 0.0
    %2641 = vmatpush1.msra.mxu0 0.0
    %2642 = vmatprep.subr.mxu0 0.0
    %2643 = vmatpush1.msra.mxu0 0.0
    %2644 = vmatprep.subr.mxu0 0.0
    %2645 = vmatpush1.msra.mxu0 0.0
    %2646 = vmatprep.subr.mxu0 0.0
    %2647 = vmatpush1.msra.mxu0 0.0
    %2648 = vmatprep.subr.mxu0 0.0
    %2649 = vmatpush1.msra.mxu0 0.0
    %2650 = vmatprep.subr.mxu0 0.0
    %2651 = vmatpush1.msra.mxu0 0.0
    %2652 = vmatprep.subr.mxu0 0.0
    %2653 = vmatpush1.msra.mxu0 0.0
    %2654 = vmatprep.subr.mxu0 0.0
    %2655 = vmatpush1.msra.mxu0 0.0
    %2656 = vmatprep.subr.mxu0 0.0
    %2657 = vmatpush1.msra.mxu0 0.0
    %2658 = vmatprep.subr.mxu0 0.0
    %2659 = vmatpush1.msra.mxu0 0.0
    %2660 = vmatprep.subr.mxu0 0.0
    %2661 = vmatpush1.msra.mxu0 0.0
    %2662 = vmatprep.subr.mxu0 0.0
    %2663 = vmatpush1.msra.mxu0 0.0
    %2664 = vmatprep.subr.mxu0 0.0
    %2665 = vmatpush1.msra.mxu0 0.0
    %2666 = vmatprep.subr.mxu0 0.0
    %2667 = vmatpush1.msra.mxu0 0.0
    %2668 = vmatprep.subr.mxu0 0.0
    %2669 = vmatpush1.msra.mxu0 0.0
    %2670 = vmatprep.subr.mxu0 0.0
    %2671 = vmatpush1.msra.mxu0 0.0
    %2672 = vmatprep.subr.mxu0 0.0
    %2673 = vmatpush1.msra.mxu0 0.0
    %2674 = vmatprep.subr.mxu0 0.0
    %2675 = vmatpush1.msra.mxu0 0.0
    %2676 = vmatprep.subr.mxu0 0.0
    %2677 = vmatpush1.msra.mxu0 0.0
    %2678 = vmatprep.subr.mxu0 0.0
    %2679 = vmatpush1.msra.mxu0 0.0
    %2680 = vmatprep.subr.mxu0 0.0
    %2681 = vmatpush1.msra.mxu0 0.0
    %2682 = vmatprep.subr.mxu0 0.0
    %2683 = vmatpush1.msra.mxu0 0.0
    %2684 = vmatprep.subr.mxu0 0.0
    %2685 = vmatpush1.msra.mxu0 0.0
    %2686 = vmatprep.subr.mxu0 0.0
    %2687 = vmatpush1.msra.mxu0 0.0
    %2688 = vmatprep.subr.mxu0 0.0
    %2689 = vmatpush1.msra.mxu0 0.0
    %2690 = vmatprep.subr.mxu0 0.0
    %2691 = vmatpush1.msra.mxu0 0.0
    %2692 = vmatprep.subr.mxu0 0.0
    %2693 = vmatpush1.msra.mxu0 0.0
    %2694 = vmatprep.subr.mxu0 0.0
    %2695 = vmatpush1.msra.mxu0 0.0
    %2696 = vmatprep.mubr.f32.mxu0 0.0
    %2697 = vmatmul.mubr.f32.gmra.mrb[0].mxu0 %v2488
    %v2698 = vpop.f32.mrb[0].mxu0
    %v2699 = vadd.f32 0.0, %v2698
    %v2700 = vpop.f32.mrb[0].mxu0
    %2701 = vdwg.mxu0
    %v2702 = vadd.f32 %v211, %v2699
    %v2703 = vtanh.pop %v2702
    %v2705 = vsel %vm212, %v2631, 0
    %2707 = vmatprep.subr.mxu0 0.0
    %2708 = vmatpush1.msra.mxu0 %v112
    %2709 = vmatprep.subr.mxu0 0.0
    %2710 = vmatpush1.msra.mxu0 %v113
    %2711 = vmatprep.subr.mxu0 0.0
    %2712 = vmatpush1.msra.mxu0 %v114
    %2713 = vmatprep.subr.mxu0 0.0
    %2714 = vmatpush1.msra.mxu0 %v115
    %2715 = vmatprep.subr.mxu0 0.0
    %2716 = vmatpush1.msra.mxu0 0.0
    %2717 = vmatprep.subr.mxu0 0.0
    %2718 = vmatpush1.msra.mxu0 0.0
    %2719 = vmatprep.subr.mxu0 0.0
    %2720 = vmatpush1.msra.mxu0 0.0
    %2721 = vmatprep.subr.mxu0 0.0
    %2722 = vmatpush1.msra.mxu0 0.0
    %2723 = vmatprep.subr.mxu0 0.0
    %2724 = vmatpush1.msra.mxu0 0.0
    %2725 = vmatprep.subr.mxu0 0.0
    %2726 = vmatpush1.msra.mxu0 0.0
    %2727 = vmatprep.subr.mxu0 0.0
    %2728 = vmatpush1.msra.mxu0 0.0
    %2729 = vmatprep.subr.mxu0 0.0
    %2730 = vmatpush1.msra.mxu0 0.0
    %2731 = vmatprep.subr.mxu0 0.0
    %2732 = vmatpush1.msra.mxu0 0.0
    %2733 = vmatprep.subr.mxu0 0.0
    %2734 = vmatpush1.msra.mxu0 0.0
    %2735 = vmatprep.subr.mxu0 0.0
    %2736 = vmatpush1.msra.mxu0 0.0
    %2737 = vmatprep.subr.mxu0 0.0
    %2738 = vmatpush1.msra.mxu0 0.0
    %2739 = vmatprep.subr.mxu0 0.0
    %2740 = vmatpush1.msra.mxu0 0.0
    %2741 = vmatprep.subr.mxu0 0.0
    %2742 = vmatpush1.msra.mxu0 0.0
    %2743 = vmatprep.subr.mxu0 0.0
    %2744 = vmatpush1.msra.mxu0 0.0
    %2745 = vmatprep.subr.mxu0 0.0
    %2746 = vmatpush1.msra.mxu0 0.0
    %2747 = vmatprep.subr.mxu0 0.0
    %2748 = vmatpush1.msra.mxu0 0.0
    %2749 = vmatprep.subr.mxu0 0.0
    %2750 = vmatpush1.msra.mxu0 0.0
    %2751 = vmatprep.subr.mxu0 0.0
    %2752 = vmatpush1.msra.mxu0 0.0
    %2753 = vmatprep.subr.mxu0 0.0
    %2754 = vmatpush1.msra.mxu0 0.0
    %2755 = vmatprep.subr.mxu0 0.0
    %2756 = vmatpush1.msra.mxu0 0.0
    %2757 = vmatprep.subr.mxu0 0.0
    %2758 = vmatpush1.msra.mxu0 0.0
    %2759 = vmatprep.subr.mxu0 0.0
    %2760 = vmatpush1.msra.mxu0 0.0
    %2761 = vmatprep.subr.mxu0 0.0
    %2762 = vmatpush1.msra.mxu0 0.0
    %2763 = vmatprep.subr.mxu0 0.0
    %2764 = vmatpush1.msra.mxu0 0.0
    %2765 = vmatprep.subr.mxu0 0.0
    %2766 = vmatpush1.msra.mxu0 0.0
    %2767 = vmatprep.subr.mxu0 0.0
    %2768 = vmatpush1.msra.mxu0 0.0
    %2769 = vmatprep.subr.mxu0 0.0
    %2770 = vmatpush1.msra.mxu0 0.0
    %2771 = vmatprep.mubr.f32.mxu0 0.0
    %2772 = vmatmul.mubr.f32.gmra.mrb[0].mxu0 %v2705
    %v2773 = vpop.f32.mrb[0].mxu0
    %v2774 = vadd.f32 %v515, %v2773
    %v2775 = vpop.f32.mrb[0].mxu0
    %2776 = vdwg.mxu0
    %v2778 = vsel %vm212, %v2486, 0
    %2780 = vmatprep.subr.mxu0 0.0
    %2781 = vmatpush1.msra.mxu0 %v124
    %2782 = vmatprep.subr.mxu0 0.0
    %2783 = vmatpush1.msra.mxu0 %v125
    %2784 = vmatprep.subr.mxu0 0.0
    %2785 = vmatpush1.msra.mxu0 %v126
    %2786 = vmatprep.subr.mxu0 0.0
    %2787 = vmatpush1.msra.mxu0 %v127
    %2788 = vmatprep.subr.mxu0 0.0
    %2789 = vmatpush1.msra.mxu0 0.0
    %2790 = vmatprep.subr.mxu0 0.0
    %2791 = vmatpush1.msra.mxu0 0.0
    %2792 = vmatprep.subr.mxu0 0.0
    %2793 = vmatpush1.msra.mxu0 0.0
    %2794 = vmatprep.subr.mxu0 0.0
    %2795 = vmatpush1.msra.mxu0 0.0
    %2796 = vmatprep.subr.mxu0 0.0
    %2797 = vmatpush1.msra.mxu0 0.0
    %2798 = vmatprep.subr.mxu0 0.0
    %2799 = vmatpush1.msra.mxu0 0.0
    %2800 = vmatprep.subr.mxu0 0.0
    %2801 = vmatpush1.msra.mxu0 0.0
    %2802 = vmatprep.subr.mxu0 0.0
    %2803 = vmatpush1.msra.mxu0 0.0
    %2804 = vmatprep.subr.mxu0 0.0
    %2805 = vmatpush1.msra.mxu0 0.0
    %2806 = vmatprep.subr.mxu0 0.0
    %2807 = vmatpush1.msra.mxu0 0.0
    %2808 = vmatprep.subr.mxu0 0.0
    %2809 = vmatpush1.msra.mxu0 0.0
    %2810 = vmatprep.subr.mxu0 0.0
    %2811 = vmatpush1.msra.mxu0 0.0
    %2812 = vmatprep.subr.mxu0 0.0
    %2813 = vmatpush1.msra.mxu0 0.0
    %2814 = vmatprep.subr.mxu0 0.0
    %2815 = vmatpush1.msra.mxu0 0.0
    %2816 = vmatprep.subr.mxu0 0.0
    %2817 = vmatpush1.msra.mxu0 0.0
    %2818 = vmatprep.subr.mxu0 0.0
    %2819 = vmatpush1.msra.mxu0 0.0
    %2820 = vmatprep.subr.mxu0 0.0
    %2821 = vmatpush1.msra.mxu0 0.0
    %2822 = vmatprep.subr.mxu0 0.0
    %2823 = vmatpush1.msra.mxu0 0.0
    %2824 = vmatprep.subr.mxu0 0.0
    %2825 = vmatpush1.msra.mxu0 0.0
    %2826 = vmatprep.subr.mxu0 0.0
    %2827 = vmatpush1.msra.mxu0 0.0
    %2828 = vmatprep.subr.mxu0 0.0
    %2829 = vmatpush1.msra.mxu0 0.0
    %2830 = vmatprep.subr.mxu0 0.0
    %2831 = vmatpush1.msra.mxu0 0.0
    %2832 = vmatprep.subr.mxu0 0.0
    %2833 = vmatpush1.msra.mxu0 0.0
    %2834 = vmatprep.subr.mxu0 0.0
    %2835 = vmatpush1.msra.mxu0 0.0
    %2836 = vmatprep.subr.mxu0 0.0
    %2837 = vmatpush1.msra.mxu0 0.0
    %2838 = vmatprep.subr.mxu0 0.0
    %2839 = vmatpush1.msra.mxu0 0.0
    %2840 = vmatprep.subr.mxu0 0.0
    %2841 = vmatpush1.msra.mxu0 0.0
    %2842 = vmatprep.subr.mxu0 0.0
    %2843 = vmatpush1.msra.mxu0 0.0
    %2844 = vmatprep.mubr.f32.mxu0 0.0
    %2845 = vmatmul.mubr.f32.gmra.mrb[0].mxu0 %v2778
    %v2846 = vpop.f32.mrb[0].mxu0
    %v2847 = vadd.f32 0.0, %v2846
    %v2848 = vpop.f32.mrb[0].mxu0
    %2849 = vdwg.mxu0
    %v2850 = vadd.f32 %v2774, %v2847
    %v2851 = vtanh.pop %v2850
    %v2853 = vsel %vm212, %v2703, 0
    %2855 = vmatprep.subr.mxu0 0.0
    %2856 = vmatpush1.msra.mxu0 %v108
    %2857 = vmatprep.subr.mxu0 0.0
    %2858 = vmatpush1.msra.mxu0 %v109
    %2859 = vmatprep.subr.mxu0 0.0
    %2860 = vmatpush1.msra.mxu0 %v110
    %2861 = vmatprep.subr.mxu0 0.0
    %2862 = vmatpush1.msra.mxu0 %v111
    %2863 = vmatprep.subr.mxu0 0.0
    %2864 = vmatpush1.msra.mxu0 0.0
    %2865 = vmatprep.subr.mxu0 0.0
    %2866 = vmatpush1.msra.mxu0 0.0
    %2867 = vmatprep.subr.mxu0 0.0
    %2868 = vmatpush1.msra.mxu0 0.0
    %2869 = vmatprep.subr.mxu0 0.0
    %2870 = vmatpush1.msra.mxu0 0.0
    %2871 = vmatprep.subr.mxu0 0.0
    %2872 = vmatpush1.msra.mxu0 0.0
    %2873 = vmatprep.subr.mxu0 0.0
    %2874 = vmatpush1.msra.mxu0 0.0
    %2875 = vmatprep.subr.mxu0 0.0
    %2876 = vmatpush1.msra.mxu0 0.0
    %2877 = vmatprep.subr.mxu0 0.0
    %2878 = vmatpush1.msra.mxu0 0.0
    %2879 = vmatprep.subr.mxu0 0.0
    %2880 = vmatpush1.msra.mxu0 0.0
    %2881 = vmatprep.subr.mxu0 0.0
    %2882 = vmatpush1.msra.mxu0 0.0
    %2883 = vmatprep.subr.mxu0 0.0
    %2884 = vmatpush1.msra.mxu0 0.0
    %2885 = vmatprep.subr.mxu0 0.0
    %2886 = vmatpush1.msra.mxu0 0.0
    %2887 = vmatprep.subr.mxu0 0.0
    %2888 = vmatpush1.msra.mxu0 0.0
    %2889 = vmatprep.subr.mxu0 0.0
    %2890 = vmatpush1.msra.mxu0 0.0
    %2891 = vmatprep.subr.mxu0 0.0
    %2892 = vmatpush1.msra.mxu0 0.0
    %2893 = vmatprep.subr.mxu0 0.0
    %2894 = vmatpush1.msra.mxu0 0.0
    %2895 = vmatprep.subr.mxu0 0.0
    %2896 = vmatpush1.msra.mxu0 0.0
    %2897 = vmatprep.subr.mxu0 0.0
    %2898 = vmatpush1.msra.mxu0 0.0
    %2899 = vmatprep.subr.mxu0 0.0
    %2900 = vmatpush1.msra.mxu0 0.0
    %2901 = vmatprep.subr.mxu0 0.0
    %2902 = vmatpush1.msra.mxu0 0.0
    %2903 = vmatprep.subr.mxu0 0.0
    %2904 = vmatpush1.msra.mxu0 0.0
    %2905 = vmatprep.subr.mxu0 0.0
    %2906 = vmatpush1.msra.mxu0 0.0
    %2907 = vmatprep.subr.mxu0 0.0
    %2908 = vmatpush1.msra.mxu0 0.0
    %2909 = vmatprep.subr.mxu0 0.0
    %2910 = vmatpush1.msra.mxu0 0.0
    %2911 = vmatprep.subr.mxu0 0.0
    %2912 = vmatpush1.msra.mxu0 0.0
    %2913 = vmatprep.subr.mxu0 0.0
    %2914 = vmatpush1.msra.mxu0 0.0
    %2915 = vmatprep.subr.mxu0 0.0
    %2916 = vmatpush1.msra.mxu0 0.0
    %2917 = vmatprep.subr.mxu0 0.0
    %2918 = vmatpush1.msra.mxu0 0.0
    %2919 = vmatprep.mubr.f32.mxu0 0.0
    %2920 = vmatmul.mubr.f32.gmra.mrb[0].mxu0 %v2853
    %v2921 = vpop.f32.mrb[0].mxu0
    %v2922 = vadd.f32 %v292, %v2921
    %v2923 = vpop.f32.mrb[0].mxu0
    %2924 = vdwg.mxu0
    %2925 = vmatprep.subr.mxu0 0.0
    %2926 = vmatpush1.msra.mxu0 %v120
    %2927 = vmatprep.subr.mxu0 0.0
    %2928 = vmatpush1.msra.mxu0 %v121
    %2929 = vmatprep.subr.mxu0 0.0
    %2930 = vmatpush1.msra.mxu0 %v122
    %2931 = vmatprep.subr.mxu0 0.0
    %2932 = vmatpush1.msra.mxu0 %v123
    %2933 = vmatprep.subr.mxu0 0.0
    %2934 = vmatpush1.msra.mxu0 0.0
    %2935 = vmatprep.subr.mxu0 0.0
    %2936 = vmatpush1.msra.mxu0 0.0
    %2937 = vmatprep.subr.mxu0 0.0
    %2938 = vmatpush1.msra.mxu0 0.0
    %2939 = vmatprep.subr.mxu0 0.0
    %2940 = vmatpush1.msra.mxu0 0.0
    %2941 = vmatprep.subr.mxu0 0.0
    %2942 = vmatpush1.msra.mxu0 0.0
    %2943 = vmatprep.subr.mxu0 0.0
    %2944 = vmatpush1.msra.mxu0 0.0
    %2945 = vmatprep.subr.mxu0 0.0
    %2946 = vmatpush1.msra.mxu0 0.0
    %2947 = vmatprep.subr.mxu0 0.0
    %2948 = vmatpush1.msra.mxu0 0.0
    %2949 = vmatprep.subr.mxu0 0.0
    %2950 = vmatpush1.msra.mxu0 0.0
    %2951 = vmatprep.subr.mxu0 0.0
    %2952 = vmatpush1.msra.mxu0 0.0
    %2953 = vmatprep.subr.mxu0 0.0
    %2954 = vmatpush1.msra.mxu0 0.0
    %2955 = vmatprep.subr.mxu0 0.0
    %2956 = vmatpush1.msra.mxu0 0.0
    %2957 = vmatprep.subr.mxu0 0.0
    %2958 = vmatpush1.msra.mxu0 0.0
    %2959 = vmatprep.subr.mxu0 0.0
    %2960 = vmatpush1.msra.mxu0 0.0
    %2961 = vmatprep.subr.mxu0 0.0
    %2962 = vmatpush1.msra.mxu0 0.0
    %2963 = vmatprep.subr.mxu0 0.0
    %2964 = vmatpush1.msra.mxu0 0.0
    %2965 = vmatprep.subr.mxu0 0.0
    %2966 = vmatpush1.msra.mxu0 0.0
    %2967 = vmatprep.subr.mxu0 0.0
    %2968 = vmatpush1.msra.mxu0 0.0
    %2969 = vmatprep.subr.mxu0 0.0
    %2970 = vmatpush1.msra.mxu0 0.0
    %2971 = vmatprep.subr.mxu0 0.0
    %2972 = vmatpush1.msra.mxu0 0.0
    %2973 = vmatprep.subr.mxu0 0.0
    %2974 = vmatpush1.msra.mxu0 0.0
    %2975 = vmatprep.subr.mxu0 0.0
    %2976 = vmatpush1.msra.mxu0 0.0
    %2977 = vmatprep.subr.mxu0 0.0
    %2978 = vmatpush1.msra.mxu0 0.0
    %2979 = vmatprep.subr.mxu0 0.0
    %2980 = vmatpush1.msra.mxu0 0.0
    %2981 = vmatprep.subr.mxu0 0.0
    %2982 = vmatpush1.msra.mxu0 0.0
    %2983 = vmatprep.subr.mxu0 0.0
    %2984 = vmatpush1.msra.mxu0 0.0
    %2985 = vmatprep.subr.mxu0 0.0
    %2986 = vmatpush1.msra.mxu0 0.0
    %2987 = vmatprep.subr.mxu0 0.0
    %2988 = vmatpush1.msra.mxu0 0.0
    %2989 = vmatprep.mubr.f32.mxu0 0.0
    %2990 = vmatmul.mubr.f32.gmra.mrb[0].mxu0 %v2705
    %v2991 = vpop.f32.mrb[0].mxu0
    %v2992 = vadd.f32 0.0, %v2991
    %v2993 = vpop.f32.mrb[0].mxu0
    %2994 = vdwg.mxu0
    %v2995 = vadd.f32 %v2922, %v2992
    %v2996 = vtanh.pop %v2995
    %v2998 = vsel %vm212, %v2996, 0
    %3000 = vmatprep.subr.mxu0 0.0
    %3001 = vmatpush1.msra.mxu0 %v112
    %3002 = vmatprep.subr.mxu0 0.0
    %3003 = vmatpush1.msra.mxu0 %v113
    %3004 = vmatprep.subr.mxu0 0.0
    %3005 = vmatpush1.msra.mxu0 %v114
    %3006 = vmatprep.subr.mxu0 0.0
    %3007 = vmatpush1.msra.mxu0 %v115
    %3008 = vmatprep.subr.mxu0 0.0
    %3009 = vmatpush1.msra.mxu0 0.0
    %3010 = vmatprep.subr.mxu0 0.0
    %3011 = vmatpush1.msra.mxu0 0.0
    %3012 = vmatprep.subr.mxu0 0.0
    %3013 = vmatpush1.msra.mxu0 0.0
    %3014 = vmatprep.subr.mxu0 0.0
    %3015 = vmatpush1.msra.mxu0 0.0
    %3016 = vmatprep.subr.mxu0 0.0
    %3017 = vmatpush1.msra.mxu0 0.0
    %3018 = vmatprep.subr.mxu0 0.0
    %3019 = vmatpush1.msra.mxu0 0.0
    %3020 = vmatprep.subr.mxu0 0.0
    %3021 = vmatpush1.msra.mxu0 0.0
    %3022 = vmatprep.subr.mxu0 0.0
    %3023 = vmatpush1.msra.mxu0 0.0
    %3024 = vmatprep.subr.mxu0 0.0
    %3025 = vmatpush1.msra.mxu0 0.0
    %3026 = vmatprep.subr.mxu0 0.0
    %3027 = vmatpush1.msra.mxu0 0.0
    %3028 = vmatprep.subr.mxu0 0.0
    %3029 = vmatpush1.msra.mxu0 0.0
    %3030 = vmatprep.subr.mxu0 0.0
    %3031 = vmatpush1.msra.mxu0 0.0
    %3032 = vmatprep.subr.mxu0 0.0
    %3033 = vmatpush1.msra.mxu0 0.0
    %3034 = vmatprep.subr.mxu0 0.0
    %3035 = vmatpush1.msra.mxu0 0.0
    %3036 = vmatprep.subr.mxu0 0.0
    %3037 = vmatpush1.msra.mxu0 0.0
    %3038 = vmatprep.subr.mxu0 0.0
    %3039 = vmatpush1.msra.mxu0 0.0
    %3040 = vmatprep.subr.mxu0 0.0
    %3041 = vmatpush1.msra.mxu0 0.0
    %3042 = vmatprep.subr.mxu0 0.0
    %3043 = vmatpush1.msra.mxu0 0.0
    %3044 = vmatprep.subr.mxu0 0.0
    %3045 = vmatpush1.msra.mxu0 0.0
    %3046 = vmatprep.subr.mxu0 0.0
    %3047 = vmatpush1.msra.mxu0 0.0
    %3048 = vmatprep.subr.mxu0 0.0
    %3049 = vmatpush1.msra.mxu0 0.0
    %3050 = vmatprep.subr.mxu0 0.0
    %3051 = vmatpush1.msra.mxu0 0.0
    %3052 = vmatprep.subr.mxu0 0.0
    %3053 = vmatpush1.msra.mxu0 0.0
    %3054 = vmatprep.subr.mxu0 0.0
    %3055 = vmatpush1.msra.mxu0 0.0
    %3056 = vmatprep.subr.mxu0 0.0
    %3057 = vmatpush1.msra.mxu0 0.0
    %3058 = vmatprep.subr.mxu0 0.0
    %3059 = vmatpush1.msra.mxu0 0.0
    %3060 = vmatprep.subr.mxu0 0.0
    %3061 = vmatpush1.msra.mxu0 0.0
    %3062 = vmatprep.subr.mxu0 0.0
    %3063 = vmatpush1.msra.mxu0 0.0
    %3064 = vmatprep.mubr.f32.mxu0 0.0
    %3065 = vmatmul.mubr.f32.gmra.mrb[0].mxu0 %v2998
    %v3066 = vpop.f32.mrb[0].mxu0
    %v3067 = vadd.f32 %v515, %v3066
    %v3068 = vpop.f32.mrb[0].mxu0
    %3069 = vdwg.mxu0
    %v3071 = vsel %vm212, %v2851, 0
    %3073 = vmatprep.subr.mxu0 0.0
    %3074 = vmatpush1.msra.mxu0 %v124
    %3075 = vmatprep.subr.mxu0 0.0
    %3076 = vmatpush1.msra.mxu0 %v125
    %3077 = vmatprep.subr.mxu0 0.0
    %3078 = vmatpush1.msra.mxu0 %v126
    %3079 = vmatprep.subr.mxu0 0.0
    %3080 = vmatpush1.msra.mxu0 %v127
    %3081 = vmatprep.subr.mxu0 0.0
    %3082 = vmatpush1.msra.mxu0 0.0
    %3083 = vmatprep.subr.mxu0 0.0
    %3084 = vmatpush1.msra.mxu0 0.0
    %3085 = vmatprep.subr.mxu0 0.0
    %3086 = vmatpush1.msra.mxu0 0.0
    %3087 = vmatprep.subr.mxu0 0.0
    %3088 = vmatpush1.msra.mxu0 0.0
    %3089 = vmatprep.subr.mxu0 0.0
    %3090 = vmatpush1.msra.mxu0 0.0
    %3091 = vmatprep.subr.mxu0 0.0
    %3092 = vmatpush1.msra.mxu0 0.0
    %3093 = vmatprep.subr.mxu0 0.0
    %3094 = vmatpush1.msra.mxu0 0.0
    %3095 = vmatprep.subr.mxu0 0.0
    %3096 = vmatpush1.msra.mxu0 0.0
    %3097 = vmatprep.subr.mxu0 0.0
    %3098 = vmatpush1.msra.mxu0 0.0
    %3099 = vmatprep.subr.mxu0 0.0
    %3100 = vmatpush1.msra.mxu0 0.0
    %3101 = vmatprep.subr.mxu0 0.0
    %3102 = vmatpush1.msra.mxu0 0.0
    %3103 = vmatprep.subr.mxu0 0.0
    %3104 = vmatpush1.msra.mxu0 0.0
    %3105 = vmatprep.subr.mxu0 0.0
    %3106 = vmatpush1.msra.mxu0 0.0
    %3107 = vmatprep.subr.mxu0 0.0
    %3108 = vmatpush1.msra.mxu0 0.0
    %3109 = vmatprep.subr.mxu0 0.0
    %3110 = vmatpush1.msra.mxu0 0.0
    %3111 = vmatprep.subr.mxu0 0.0
    %3112 = vmatpush1.msra.mxu0 0.0
    %3113 = vmatprep.subr.mxu0 0.0
    %3114 = vmatpush1.msra.mxu0 0.0
    %3115 = vmatprep.subr.mxu0 0.0
    %3116 = vmatpush1.msra.mxu0 0.0
    %3117 = vmatprep.subr.mxu0 0.0
    %3118 = vmatpush1.msra.mxu0 0.0
    %3119 = vmatprep.subr.mxu0 0.0
    %3120 = vmatpush1.msra.mxu0 0.0
    %3121 = vmatprep.subr.mxu0 0.0
    %3122 = vmatpush1.msra.mxu0 0.0
    %3123 = vmatprep.subr.mxu0 0.0
    %3124 = vmatpush1.msra.mxu0 0.0
    %3125 = vmatprep.subr.mxu0 0.0
    %3126 = vmatpush1.msra.mxu0 0.0
    %3127 = vmatprep.subr.mxu0 0.0
    %3128 = vmatpush1.msra.mxu0 0.0
    %3129 = vmatprep.subr.mxu0 0.0
    %3130 = vmatpush1.msra.mxu0 0.0
    %3131 = vmatprep.subr.mxu0 0.0
    %3132 = vmatpush1.msra.mxu0 0.0
    %3133 = vmatprep.subr.mxu0 0.0
    %3134 = vmatpush1.msra.mxu0 0.0
    %3135 = vmatprep.subr.mxu0 0.0
    %3136 = vmatpush1.msra.mxu0 0.0
    %3137 = vmatprep.mubr.f32.mxu0 0.0
    %3138 = vmatmul.mubr.f32.gmra.mrb[0].mxu0 %v3071
    %v3139 = vpop.f32.mrb[0].mxu0
    %v3140 = vadd.f32 0.0, %v3139
    %v3141 = vpop.f32.mrb[0].mxu0
    %3142 = vdwg.mxu0
    %v3143 = vadd.f32 %v3067, %v3140
    %v3144 = vtanh.pop %v3143
    %v3146 = vlaneseq
    %v3147 = vshrl.u32 %v3146, 7
    %v3148 = vsub.s32 0, %v3147
    %v3149 = vrot.slane %v135, %v3148
    %v3152 = vsel %vm212, %v3144, 0
    %3154 = vmatprep.subr.mxu0 0.0
    %3155 = vmatpush1.msra.mxu0 %v131
    %3156 = vmatprep.subr.mxu0 0.0
    %3157 = vmatpush1.msra.mxu0 %v132
    %3158 = vmatprep.subr.mxu0 0.0
    %3159 = vmatpush1.msra.mxu0 %v133
    %3160 = vmatprep.subr.mxu0 0.0
    %3161 = vmatpush1.msra.mxu0 %v134
    %3162 = vmatprep.subr.mxu0 0.0
    %3163 = vmatpush1.msra.mxu0 0.0
    %3164 = vmatprep.subr.mxu0 0.0
    %3165 = vmatpush1.msra.mxu0 0.0
    %3166 = vmatprep.subr.mxu0 0.0
    %3167 = vmatpush1.msra.mxu0 0.0
    %3168 = vmatprep.subr.mxu0 0.0
    %3169 = vmatpush1.msra.mxu0 0.0
    %3170 = vmatprep.subr.mxu0 0.0
    %3171 = vmatpush1.msra.mxu0 0.0
    %3172 = vmatprep.subr.mxu0 0.0
    %3173 = vmatpush1.msra.mxu0 0.0
    %3174 = vmatprep.subr.mxu0 0.0
    %3175 = vmatpush1.msra.mxu0 0.0
    %3176 = vmatprep.subr.mxu0 0.0
    %3177 = vmatpush1.msra.mxu0 0.0
    %3178 = vmatprep.subr.mxu0 0.0
    %3179 = vmatpush1.msra.mxu0 0.0
    %3180 = vmatprep.subr.mxu0 0.0
    %3181 = vmatpush1.msra.mxu0 0.0
    %3182 = vmatprep.subr.mxu0 0.0
    %3183 = vmatpush1.msra.mxu0 0.0
    %3184 = vmatprep.subr.mxu0 0.0
    %3185 = vmatpush1.msra.mxu0 0.0
    %3186 = vmatprep.subr.mxu0 0.0
    %3187 = vmatpush1.msra.mxu0 0.0
    %3188 = vmatprep.subr.mxu0 0.0
    %3189 = vmatpush1.msra.mxu0 0.0
    %3190 = vmatprep.subr.mxu0 0.0
    %3191 = vmatpush1.msra.mxu0 0.0
    %3192 = vmatprep.subr.mxu0 0.0
    %3193 = vmatpush1.msra.mxu0 0.0
    %3194 = vmatprep.subr.mxu0 0.0
    %3195 = vmatpush1.msra.mxu0 0.0
    %3196 = vmatprep.subr.mxu0 0.0
    %3197 = vmatpush1.msra.mxu0 0.0
    %3198 = vmatprep.subr.mxu0 0.0
    %3199 = vmatpush1.msra.mxu0 0.0
    %3200 = vmatprep.subr.mxu0 0.0
    %3201 = vmatpush1.msra.mxu0 0.0
    %3202 = vmatprep.subr.mxu0 0.0
    %3203 = vmatpush1.msra.mxu0 0.0
    %3204 = vmatprep.subr.mxu0 0.0
    %3205 = vmatpush1.msra.mxu0 0.0
    %3206 = vmatprep.subr.mxu0 0.0
    %3207 = vmatpush1.msra.mxu0 0.0
    %3208 = vmatprep.subr.mxu0 0.0
    %3209 = vmatpush1.msra.mxu0 0.0
    %3210 = vmatprep.subr.mxu0 0.0
    %3211 = vmatpush1.msra.mxu0 0.0
    %3212 = vmatprep.subr.mxu0 0.0
    %3213 = vmatpush1.msra.mxu0 0.0
    %3214 = vmatprep.subr.mxu0 0.0
    %3215 = vmatpush1.msra.mxu0 0.0
    %3216 = vmatprep.subr.mxu0 0.0
    %3217 = vmatpush1.msra.mxu0 0.0
    %3218 = vmatprep.mubr.f32.mxu0 0.0
    %3219 = vmatmul.mubr.f32.gmra.mrb[0].mxu0 %v3152
    %v3220 = vpop.f32.mrb[0].mxu0
    %v3221 = vadd.f32 %v3149, %v3220
    %v3222 = vpop.f32.mrb[0].mxu0
    %3223 = vdwg.mxu0
    %v3224 = vmul.f32 %v3221, 0.5
    %v3225 = vtanh.pop %v3224
    %v3226 = vadd.f32 %v3225, 1.0
    %v3227 = vmul.f32 %v3226, 0.5
    %vm3228 = vcmask 74752
    %v3229 = vsel %vm3228, %v3221, -inf
    %v3230 = vrot.slane %v3229, 4
    %v3231 = vmax.f32 %v3229, %v3230
    %v3232 = vrot.slane %v3231, 2
    %v3233 = vmax.f32 %v3231, %v3232
    %v3234 = vrot.slane %v3233, 1
    %v3235 = vmax.f32 %v3233, %v3234
    %v3236 = vsub.f32 %v3221, %v3235
    %v3237 = vmul.f32 %v3236, 1.442695
    %v3238 = vpow.pop %v3237
    %v3239 = vsel %vm3228, %v3238, 0.0
    %v3240 = vrot.slane %v3239, 4
    %v3241 = vadd.f32 %v3239, %v3240
    %v3242 = vrot.slane %v3241, 2
    %v3243 = vadd.f32 %v3241, %v3242
    %v3244 = vrot.slane %v3243, 1
    %v3245 = vadd.f32 %v3243, %v3244
    %v3246 = vrcp.pop %v3245
    %v3247 = vmul.f32 %v3238, %v3246
    %3248 = vst.msk [vmem:[#allocation11] sm:$0x3] %vm3228, %v3227
    %3249 = vst.msk [vmem:[#allocation12] sm:$0x3] %vm3228, %v3247
    // Predicated region
    $region70: #{transit_model_pallas.1} parent=1 // pred_check
      _
    $region71: #{transit_model_pallas.1} parent=1 // pred_check_branch
      %3251 = sbr.rel (0) target = $region73
    $region72: #{transit_model_pallas.1} parent=1 // pred_region
      %s3253 = ssub.s32 32, 32
      %3254 = vsyncadd [#allocation4], %s3253
      %s3256 = sshll.u32 [#allocation11], 4
      %s3257 = int_to_ptr.vmem [resolvable:$true] %s3256
      %3259 = dma.vmem_to_hbm [thread:$0]  %s3257, 32, %s12, [#allocation4]
    $region73: #{transit_model_pallas.1} parent=1 // pred_fallthru
      _
    // Predicated region
    $region74: #{transit_model_pallas.1} parent=1 // pred_check
      _
    $region75: #{transit_model_pallas.1} parent=1 // pred_check_branch
      %3261 = sbr.rel (0) target = $region77
    $region76: #{transit_model_pallas.1} parent=1 // pred_region
      %s3263 = ssub.s32 32, 32
      %3264 = vsyncadd [#allocation13], %s3263
      %s3266 = sshll.u32 [#allocation12], 4
      %s3267 = int_to_ptr.vmem [resolvable:$true] %s3266
      %3269 = dma.vmem_to_hbm [thread:$0]  %s3267, 32, %s13, [#allocation13]
    $region77: #{transit_model_pallas.1} parent=1 // pred_fallthru
      _
    // Predicated region
    $region78: #{transit_model_pallas.1} parent=1 // pred_check
      _
    $region79: #{transit_model_pallas.1} parent=1 // pred_check_branch
      %3271 = sbr.rel (0) target = $region81
    $region80: #{transit_model_pallas.1} parent=1 // pred_region
      %3272 = dma.done [#allocation4], 32
    $region81: #{transit_model_pallas.1} parent=1 // pred_fallthru
      _
    // Predicated region
    $region82: #{transit_model_pallas.1} parent=1 // pred_check
      _
    $region83: #{transit_model_pallas.1} parent=1 // pred_check_branch
      %3274 = sbr.rel (0) target = $region85
    $region84: #{transit_model_pallas.1} parent=1 // pred_region
      %3275 = dma.done [#allocation13], 32
    $region85: #{transit_model_pallas.1} parent=1 // pred_fallthru
      _
    %3276 = vsyncpa [#allocation3], 1
    %3277 = vsyncpa [#allocation6], 1
    %3278 = vsyncpa [#allocation9], 1
    %3279 = vsyncpa [#allocation4], 1
    %3280 = vsyncpa [#allocation13], 1

</llo_original>
